<compile_context>
chip_gen: v7x
topology: tpu7x:2x2x1
jax: 0.10.0
libtpu: 0.0.40
codegen_flags: <defaults>
</compile_context>

<pallas_src>
import jax
import jax.numpy as jnp
from jax.experimental import pallas as pl
from jax.experimental.pallas import tpu as pltpu


C_POOL, C_1X1, C_5X5, C_3X3 = 24, 16, 24, 24
C_MID = 16                                   # width of the 1x1 reduce in the 5x5/3x3 branches
C_OUT = C_POOL + C_1X1 + C_5X5 + C_3X3       # 88
C48 = C_1X1 + 2 * C_MID                      # 48 = fused 1x1 output width


# ---------------------------------------------------------------------------
# Fused Inception kernel factory (shapes are static at trace time).
# ---------------------------------------------------------------------------
def _make_inception_call(N, H, W, Cin, dtype):
    HW = H * W

    def tap_offsets(K):
        pad = K // 2
        return [(kh * K + kw, (kh - pad) * W + (kw - pad))
                for kh in range(K) for kw in range(K)]

    OFF3 = tap_offsets(3)
    OFF5 = tap_offsets(5)

    def kernel(x_ref, m3_ref, m5_ref, w1_ref, b1_ref, wp_ref, bp_ref,
               w5_ref, b5_ref, w3a_ref, b3a_ref, w3b_ref, b3b_ref,
               out_ref, col5_ref, col3a_ref, col3b_ref):
        f32 = jnp.float32
        x = x_ref[...]                                   # (Cin, HW) lane-dense

        def tap(src, off, mask_ref, t):
            # src shifted by `off` pixels in flat (h*W + w) order; the boundary
            # mask zeroes positions whose neighbour falls outside the image
            # (which also kills the flat-roll row wrap-around).
            if off == 0:
                return src
            rolled = pltpu.roll(src, shift=(-off) % HW, axis=1)
            return rolled * mask_ref[t:t + 1, :]

        def fill_col(src, offsets, mask_ref, col_ref, C):
            # col rows [t*C:(t+1)*C] = tap t; offsets are multiples of 8
            # (C = 16 or 24) so every store is sublane-aligned and lane-dense.
            for t, off in offsets:
                col_ref[t * C:(t + 1) * C, :] = tap(src, off, mask_ref, t)

        # --- fused 1x1 convs on x: [branch1x1 | conv5x5_1 | conv3x3_1] -> (48, HW)
        y1 = jnp.dot(w1_ref[...], x, preferred_element_type=f32) + b1_ref[...]
        out_ref[C_POOL:C_POOL + C_1X1, :] = y1[0:C_1X1, :].astype(out_ref.dtype)

        # --- branch_pool: 3x3 avg pool (count_include_pad, /9) then 1x1 conv
        pooled = x
        for t, off in OFF3:
            if off != 0:
                pooled = pooled + tap(x, off, m3_ref, t)
        pooled = pooled * (1.0 / 9.0)
        out_ref[0:C_POOL, :] = (
            jnp.dot(wp_ref[...], pooled, preferred_element_type=f32) + bp_ref[...]
        ).astype(out_ref.dtype)

        # --- branch 5x5: stage-2 5x5 conv as roll-im2col (400, HW) + one matmul
        mid5 = y1[C_1X1:C_1X1 + C_MID, :]
        fill_col(mid5, OFF5, m5_ref, col5_ref, C_MID)
        out_ref[C_POOL + C_1X1:C_POOL + C_1X1 + C_5X5, :] = (
            jnp.dot(w5_ref[...], col5_ref[...], preferred_element_type=f32) + b5_ref[...]
        ).astype(out_ref.dtype)

        # --- branch 3x3: stage-2 and stage-3 3x3 convs
        mid3 = y1[C_1X1 + C_MID:C48, :]
        fill_col(mid3, OFF3, m3_ref, col3a_ref, C_MID)
        m3b = jnp.dot(w3a_ref[...], col3a_ref[...], preferred_element_type=f32) + b3a_ref[...]
        fill_col(m3b, OFF3, m3_ref, col3b_ref, C_3X3)
        out_ref[C_POOL + C_1X1 + C_5X5:C_OUT, :] = (
            jnp.dot(w3b_ref[...], col3b_ref[...], preferred_element_type=f32) + b3b_ref[...]
        ).astype(out_ref.dtype)

    return pl.pallas_call(
        kernel,
        out_shape=jax.ShapeDtypeStruct((N, C_OUT, HW), dtype),
        grid=(N,),
        in_specs=[
            pl.BlockSpec((None, Cin, HW), lambda n: (n, 0, 0)),   # x (N, Cin, HW)
            pl.BlockSpec((9, HW), lambda n: (0, 0)),              # 3x3 boundary masks
            pl.BlockSpec((25, HW), lambda n: (0, 0)),             # 5x5 boundary masks
            pl.BlockSpec((C48, Cin), lambda n: (0, 0)),           # fused 1x1 weights
            pl.BlockSpec((C48, 1), lambda n: (0, 0)),             # fused 1x1 biases
            pl.BlockSpec((C_POOL, Cin), lambda n: (0, 0)),        # branch_pool 1x1 w
            pl.BlockSpec((C_POOL, 1), lambda n: (0, 0)),
            pl.BlockSpec((C_5X5, 25 * C_MID), lambda n: (0, 0)),  # 5x5 im2col weight
            pl.BlockSpec((C_5X5, 1), lambda n: (0, 0)),
            pl.BlockSpec((C_3X3, 9 * C_MID), lambda n: (0, 0)),   # 3x3 #2 im2col weight
            pl.BlockSpec((C_3X3, 1), lambda n: (0, 0)),
            pl.BlockSpec((C_3X3, 9 * C_3X3), lambda n: (0, 0)),   # 3x3 #3 im2col weight
            pl.BlockSpec((C_3X3, 1), lambda n: (0, 0)),
        ],
        out_specs=pl.BlockSpec((None, C_OUT, HW), lambda n: (n, 0, 0)),
        scratch_shapes=[
            pltpu.VMEM((25 * C_MID, HW), jnp.float32),   # col5  (400, HW)
            pltpu.VMEM((9 * C_MID, HW), jnp.float32),    # col3a (144, HW)
            pltpu.VMEM((9 * C_3X3, HW), jnp.float32),    # col3b (216, HW)
        ],
        compiler_params=pltpu.CompilerParams(
            dimension_semantics=("parallel",),
            vmem_limit_bytes=32 * 1024 * 1024),
    )


# ---------------------------------------------------------------------------
# Per-tap boundary masks (valid-neighbour indicator), shape (K*K, H*W), f32.
# ---------------------------------------------------------------------------
def _tap_masks(H, W, K):
    pad = K // 2
    hh = jnp.arange(H).reshape(H, 1)
    ww = jnp.arange(W).reshape(1, W)
    rows = []
    for kh in range(K):
        for kw in range(K):
            dh, dw = kh - pad, kw - pad
            ok = ((hh + dh >= 0) & (hh + dh < H) & (ww + dw >= 0) & (ww + dw < W))
            rows.append(ok.reshape(H * W))
    return jnp.stack(rows, axis=0).astype(jnp.float32)


# ---------------------------------------------------------------------------
# Weight packing: (kh, kw, cin, cout) HWIO params -> (cout, kh*kw*cin) matrices
# matching the tap-major / cin-minor row order of the roll-based im2col.
# ---------------------------------------------------------------------------
def _pack_params(p, cin):
    w1 = jnp.concatenate([
        p["branch1x1_w"].reshape(cin, C_1X1),
        p["conv5x5_1_w"].reshape(cin, C_MID),
        p["conv3x3_1_w"].reshape(cin, C_MID)], axis=1).T            # (48, Cin)
    b1 = jnp.concatenate([p["branch1x1_b"], p["conv5x5_1_b"],
                          p["conv3x3_1_b"]]).reshape(-1, 1)          # (48, 1)
    wp = p["branch_pool_w"].reshape(cin, C_POOL).T                   # (24, Cin)
    bp = p["branch_pool_b"].reshape(-1, 1)
    w5 = p["conv5x5_2_w"].reshape(25 * C_MID, C_5X5).T               # (24, 400)
    b5 = p["conv5x5_2_b"].reshape(-1, 1)
    w3a = p["conv3x3_2_w"].reshape(9 * C_MID, C_3X3).T               # (24, 144)
    b3a = p["conv3x3_2_b"].reshape(-1, 1)
    w3b = p["conv3x3_3_w"].reshape(9 * C_3X3, C_3X3).T               # (24, 216)
    b3b = p["conv3x3_3_b"].reshape(-1, 1)
    return (w1, b1, wp, bp, w5, b5, w3a, b3a, w3b, b3b)


# ---------------------------------------------------------------------------
# Parameter init (deterministic, mimics PyTorch Conv2d U(-1/sqrt(fan_in), .)).
# ---------------------------------------------------------------------------
def _init_conv(key, kh, kw, cin, cout):
    kw_key, kb_key = jax.random.split(key)
    fan_in = cin * kh * kw
    bound = 1.0 / jnp.sqrt(jnp.float32(fan_in))
    w = jax.random.uniform(kw_key, (kh, kw, cin, cout), jnp.float32, -bound, bound)
    b = jax.random.uniform(kb_key, (cout,), jnp.float32, -bound, bound)
    return w, b


def init_inception_params(key, in_channels):
    keys = jax.random.split(key, 7)
    p = {}
    p["branch_pool_w"], p["branch_pool_b"] = _init_conv(keys[0], 1, 1, in_channels, 24)
    p["branch1x1_w"], p["branch1x1_b"] = _init_conv(keys[1], 1, 1, in_channels, 16)
    p["conv5x5_1_w"], p["conv5x5_1_b"] = _init_conv(keys[2], 1, 1, in_channels, 16)
    p["conv5x5_2_w"], p["conv5x5_2_b"] = _init_conv(keys[3], 5, 5, 16, 24)
    p["conv3x3_1_w"], p["conv3x3_1_b"] = _init_conv(keys[4], 1, 1, in_channels, 16)
    p["conv3x3_2_w"], p["conv3x3_2_b"] = _init_conv(keys[5], 3, 3, 16, 24)
    p["conv3x3_3_w"], p["conv3x3_3_b"] = _init_conv(keys[6], 3, 3, 24, 24)
    return p


# ---------------------------------------------------------------------------
# Inception forward (matches the PyTorch module: NCHW in, NCHW out, channels
# ordered [branch_pool 24, branch1x1 16, branch5x5 24, branch3x3 24]).
# ---------------------------------------------------------------------------
@jax.jit
def inception_forward(x_nchw, params):
    N, Cin, H, W = x_nchw.shape
    x = x_nchw.reshape(N, Cin, H * W)              # free reshape, stays NCHW-ordered
    mask3 = _tap_masks(H, W, 3)
    mask5 = _tap_masks(H, W, 5)
    packed = _pack_params(params, Cin)
    call = _make_inception_call(N, H, W, Cin, x.dtype)
    out = call(x, mask3, mask5, *packed)           # (N, 88, H*W), written NCHW in-kernel
    return out.reshape(N, C_OUT, H, W)             # free contiguous reshape


# ---------------------------------------------------------------------------
# Pure-JAX (XLA conv) reference for the correctness check.
# ---------------------------------------------------------------------------
def _conv_ref(x_nhwc, w, b, pad):
    y = jax.lax.conv_general_dilated(
        x_nhwc, w, window_strides=(1, 1), padding=[(pad, pad), (pad, pad)],
        dimension_numbers=("NHWC", "HWIO", "NHWC"),
        precision=jax.lax.Precision.HIGHEST)
    return y + b.reshape(1, 1, 1, -1)


def inception_ref(x_nchw, p):
    x = jnp.transpose(x_nchw, (0, 2, 3, 1))
    xp = jnp.pad(x, ((0, 0), (1, 1), (1, 1), (0, 0)))
    pool = sum(xp[:, i:i + x.shape[1], j:j + x.shape[2], :]
               for i in range(3) for j in range(3)) / 9.0
    bp = _conv_ref(pool, p["branch_pool_w"], p["branch_pool_b"], 0)
    b1 = _conv_ref(x, p["branch1x1_w"], p["branch1x1_b"], 0)
    b5 = _conv_ref(x, p["conv5x5_1_w"], p["conv5x5_1_b"], 0)
    b5 = _conv_ref(b5, p["conv5x5_2_w"], p["conv5x5_2_b"], 2)
    b3 = _conv_ref(x, p["conv3x3_1_w"], p["conv3x3_1_b"], 0)
    b3 = _conv_ref(b3, p["conv3x3_2_w"], p["conv3x3_2_b"], 1)
    b3 = _conv_ref(b3, p["conv3x3_3_w"], p["conv3x3_3_b"], 1)
    out = jnp.concatenate([bp, b1, b5, b3], axis=-1)
    return jnp.transpose(out, (0, 3, 1, 2))


if __name__ == "__main__":
    key = jax.random.PRNGKey(0)
    k_x, k_p = jax.random.split(key)

    N, C_IN, H, W = 2, 4, 16, 16
    x = jax.random.normal(k_x, (N, C_IN, H, W), jnp.float32)
    params = init_inception_params(k_p, C_IN)

    out = jax.block_until_ready(inception_forward(x, params))

    assert out.shape == (N, C_OUT, H, W), out.shape
    assert out.dtype == jnp.float32

    ref = inception_ref(x, params)
    assert jnp.allclose(out, ref, rtol=1e-4, atol=1e-4), (
        float(jnp.max(jnp.abs(out - ref))))

    print("KERNEL_OK")
</pallas_src>

<mosaic_0001>
module attributes {stable_mosaic.version = 11 : i64} {
  func.func @kernel(%arg0: i32, %arg1: memref<1x4x256xf32, #tpu.memory_space<vmem>>, %arg2: memref<9x256xf32, #tpu.memory_space<vmem>>, %arg3: memref<25x256xf32, #tpu.memory_space<vmem>>, %arg4: memref<48x4xf32, #tpu.memory_space<vmem>>, %arg5: memref<48x1xf32, #tpu.memory_space<vmem>>, %arg6: memref<24x4xf32, #tpu.memory_space<vmem>>, %arg7: memref<24x1xf32, #tpu.memory_space<vmem>>, %arg8: memref<24x400xf32, #tpu.memory_space<vmem>>, %arg9: memref<24x1xf32, #tpu.memory_space<vmem>>, %arg10: memref<24x144xf32, #tpu.memory_space<vmem>>, %arg11: memref<24x1xf32, #tpu.memory_space<vmem>>, %arg12: memref<24x216xf32, #tpu.memory_space<vmem>>, %arg13: memref<24x1xf32, #tpu.memory_space<vmem>>, %arg14: memref<1x88x256xf32, #tpu.memory_space<vmem>>, %arg15: memref<400x256xf32, #tpu.memory_space<vmem>>, %arg16: memref<144x256xf32, #tpu.memory_space<vmem>>, %arg17: memref<216x256xf32, #tpu.memory_space<vmem>>) attributes {dimension_semantics = [#tpu.dimension_semantics<parallel>], iteration_bounds = array<i64: 2>, scalar_prefetch = 0 : i64, scratch_operands = 3 : i64, tpu.core_type = #tpu.core_type<tc>, window_params = [{transform_indices = @transform_0, window_bounds = array<i64: 1, 4, 256>}, {pipeline_mode = #tpu.pipeline_mode<synchronous>, transform_indices = @transform_1, window_bounds = array<i64: 9, 256>}, {pipeline_mode = #tpu.pipeline_mode<synchronous>, transform_indices = @transform_2, window_bounds = array<i64: 25, 256>}, {pipeline_mode = #tpu.pipeline_mode<synchronous>, transform_indices = @transform_3, window_bounds = array<i64: 48, 4>}, {pipeline_mode = #tpu.pipeline_mode<synchronous>, transform_indices = @transform_4, window_bounds = array<i64: 48, 1>}, {pipeline_mode = #tpu.pipeline_mode<synchronous>, transform_indices = @transform_5, window_bounds = array<i64: 24, 4>}, {pipeline_mode = #tpu.pipeline_mode<synchronous>, transform_indices = @transform_6, window_bounds = array<i64: 24, 1>}, {pipeline_mode = #tpu.pipeline_mode<synchronous>, transform_indices = @transform_7, window_bounds = array<i64: 24, 400>}, {pipeline_mode = #tpu.pipeline_mode<synchronous>, transform_indices = @transform_8, window_bounds = array<i64: 24, 1>}, {pipeline_mode = #tpu.pipeline_mode<synchronous>, transform_indices = @transform_9, window_bounds = array<i64: 24, 144>}, {pipeline_mode = #tpu.pipeline_mode<synchronous>, transform_indices = @transform_10, window_bounds = array<i64: 24, 1>}, {pipeline_mode = #tpu.pipeline_mode<synchronous>, transform_indices = @transform_11, window_bounds = array<i64: 24, 216>}, {pipeline_mode = #tpu.pipeline_mode<synchronous>, transform_indices = @transform_12, window_bounds = array<i64: 24, 1>}, {transform_indices = @transform_13, window_bounds = array<i64: 1, 88, 256>}]} {
    %c0 = arith.constant 0 : index
    %c0_0 = arith.constant 0 : index
    %c0_1 = arith.constant 0 : index
    %0 = vector.load %arg1[%c0, %c0_0, %c0_1] : memref<1x4x256xf32, #tpu.memory_space<vmem>>, vector<1x4x256xf32>
    %1 = vector.shape_cast %0 : vector<1x4x256xf32> to vector<4x256xf32>
    %c0_2 = arith.constant 0 : index
    %c0_3 = arith.constant 0 : index
    %2 = vector.load %arg4[%c0_2, %c0_3] : memref<48x4xf32, #tpu.memory_space<vmem>>, vector<48x4xf32>
    %cst = arith.constant dense<0.000000e+00> : vector<48x256xf32>
    %3 = tpu.matmul %2, %1, %cst {dimension_numbers = #tpu.dot_dimension_numbers<[1], [0], [0], [1], [0, 0, 1, 1], [], []>} : vector<48x4xf32>, vector<4x256xf32>, vector<48x256xf32> -> vector<48x256xf32>
    %c0_4 = arith.constant 0 : index
    %c0_5 = arith.constant 0 : index
    %4 = vector.load %arg5[%c0_4, %c0_5] : memref<48x1xf32, #tpu.memory_space<vmem>>, vector<48x1xf32>
    %5 = vector.broadcast %4 : vector<48x1xf32> to vector<48x256xf32>
    %6 = arith.addf %3, %5 : vector<48x256xf32>
    %7 = vector.extract_strided_slice %6 {offsets = [0, 0], sizes = [16, 256], strides = [1, 1]} : vector<48x256xf32> to vector<16x256xf32>
    %c0_6 = arith.constant 0 : index
    %c24 = arith.constant 24 : index
    %c0_7 = arith.constant 0 : index
    %8 = vector.load %arg14[%c0_6, %c24, %c0_7] : memref<1x88x256xf32, #tpu.memory_space<vmem>>, vector<1x16x256xf32>
    %9 = vector.shape_cast %8 : vector<1x16x256xf32> to vector<16x256xf32>
    %10 = vector.shape_cast %7 : vector<16x256xf32> to vector<1x16x256xf32>
    tpu.vector_store %arg14[%c0_6, %c24, %c0_7], %10 {strides = array<i32>} : memref<1x88x256xf32, #tpu.memory_space<vmem>>, vector<1x16x256xf32>,
    %c17_i32 = arith.constant 17 : i32
    %11 = tpu.dynamic_rotate %1 by %c17_i32 dim 1 : vector<4x256xf32>, i32 -> vector<4x256xf32>
    %c0_8 = arith.constant 0 : index
    %c0_9 = arith.constant 0 : index
    %12 = vector.load %arg2[%c0_8, %c0_9] : memref<9x256xf32, #tpu.memory_space<vmem>>, vector<1x256xf32>
    %13 = vector.broadcast %12 : vector<1x256xf32> to vector<4x256xf32>
    %14 = arith.mulf %11, %13 : vector<4x256xf32>
    %15 = arith.addf %1, %14 : vector<4x256xf32>
    %c16_i32 = arith.constant 16 : i32
    %16 = tpu.dynamic_rotate %1 by %c16_i32 dim 1 : vector<4x256xf32>, i32 -> vector<4x256xf32>
    %c1 = arith.constant 1 : index
    %c0_10 = arith.constant 0 : index
    %17 = vector.load %arg2[%c1, %c0_10] : memref<9x256xf32, #tpu.memory_space<vmem>>, vector<1x256xf32>
    %18 = vector.broadcast %17 : vector<1x256xf32> to vector<4x256xf32>
    %19 = arith.mulf %16, %18 : vector<4x256xf32>
    %20 = arith.addf %15, %19 : vector<4x256xf32>
    %c15_i32 = arith.constant 15 : i32
    %21 = tpu.dynamic_rotate %1 by %c15_i32 dim 1 : vector<4x256xf32>, i32 -> vector<4x256xf32>
    %c2 = arith.constant 2 : index
    %c0_11 = arith.constant 0 : index
    %22 = vector.load %arg2[%c2, %c0_11] : memref<9x256xf32, #tpu.memory_space<vmem>>, vector<1x256xf32>
    %23 = vector.broadcast %22 : vector<1x256xf32> to vector<4x256xf32>
    %24 = arith.mulf %21, %23 : vector<4x256xf32>
    %25 = arith.addf %20, %24 : vector<4x256xf32>
    %c1_i32 = arith.constant 1 : i32
    %26 = tpu.dynamic_rotate %1 by %c1_i32 dim 1 : vector<4x256xf32>, i32 -> vector<4x256xf32>
    %c3 = arith.constant 3 : index
    %c0_12 = arith.constant 0 : index
    %27 = vector.load %arg2[%c3, %c0_12] : memref<9x256xf32, #tpu.memory_space<vmem>>, vector<1x256xf32>
    %28 = vector.broadcast %27 : vector<1x256xf32> to vector<4x256xf32>
    %29 = arith.mulf %26, %28 : vector<4x256xf32>
    %30 = arith.addf %25, %29 : vector<4x256xf32>
    %c255_i32 = arith.constant 255 : i32
    %31 = tpu.dynamic_rotate %1 by %c255_i32 dim 1 : vector<4x256xf32>, i32 -> vector<4x256xf32>
    %c5 = arith.constant 5 : index
    %c0_13 = arith.constant 0 : index
    %32 = vector.load %arg2[%c5, %c0_13] : memref<9x256xf32, #tpu.memory_space<vmem>>, vector<1x256xf32>
    %33 = vector.broadcast %32 : vector<1x256xf32> to vector<4x256xf32>
    %34 = arith.mulf %31, %33 : vector<4x256xf32>
    %35 = arith.addf %30, %34 : vector<4x256xf32>
    %c241_i32 = arith.constant 241 : i32
    %36 = tpu.dynamic_rotate %1 by %c241_i32 dim 1 : vector<4x256xf32>, i32 -> vector<4x256xf32>
    %c6 = arith.constant 6 : index
    %c0_14 = arith.constant 0 : index
    %37 = vector.load %arg2[%c6, %c0_14] : memref<9x256xf32, #tpu.memory_space<vmem>>, vector<1x256xf32>
    %38 = vector.broadcast %37 : vector<1x256xf32> to vector<4x256xf32>
    %39 = arith.mulf %36, %38 : vector<4x256xf32>
    %40 = arith.addf %35, %39 : vector<4x256xf32>
    %c240_i32 = arith.constant 240 : i32
    %41 = tpu.dynamic_rotate %1 by %c240_i32 dim 1 : vector<4x256xf32>, i32 -> vector<4x256xf32>
    %c7 = arith.constant 7 : index
    %c0_15 = arith.constant 0 : index
    %42 = vector.load %arg2[%c7, %c0_15] : memref<9x256xf32, #tpu.memory_space<vmem>>, vector<1x256xf32>
    %43 = vector.broadcast %42 : vector<1x256xf32> to vector<4x256xf32>
    %44 = arith.mulf %41, %43 : vector<4x256xf32>
    %45 = arith.addf %40, %44 : vector<4x256xf32>
    %c239_i32 = arith.constant 239 : i32
    %46 = tpu.dynamic_rotate %1 by %c239_i32 dim 1 : vector<4x256xf32>, i32 -> vector<4x256xf32>
    %c8 = arith.constant 8 : index
    %c0_16 = arith.constant 0 : index
    %47 = vector.load %arg2[%c8, %c0_16] : memref<9x256xf32, #tpu.memory_space<vmem>>, vector<1x256xf32>
    %48 = vector.broadcast %47 : vector<1x256xf32> to vector<4x256xf32>
    %49 = arith.mulf %46, %48 : vector<4x256xf32>
    %50 = arith.addf %45, %49 : vector<4x256xf32>
    %cst_17 = arith.constant 0.111111112 : f32
    %51 = vector.broadcast %cst_17 : f32 to vector<4x256xf32>
    %52 = arith.mulf %50, %51 : vector<4x256xf32>
    %c0_18 = arith.constant 0 : index
    %c0_19 = arith.constant 0 : index
    %53 = vector.load %arg6[%c0_18, %c0_19] : memref<24x4xf32, #tpu.memory_space<vmem>>, vector<24x4xf32>
    %cst_20 = arith.constant dense<0.000000e+00> : vector<24x256xf32>
    %54 = tpu.matmul %53, %52, %cst_20 {dimension_numbers = #tpu.dot_dimension_numbers<[1], [0], [0], [1], [0, 0, 1, 1], [], []>} : vector<24x4xf32>, vector<4x256xf32>, vector<24x256xf32> -> vector<24x256xf32>
    %c0_21 = arith.constant 0 : index
    %c0_22 = arith.constant 0 : index
    %55 = vector.load %arg7[%c0_21, %c0_22] : memref<24x1xf32, #tpu.memory_space<vmem>>, vector<24x1xf32>
    %56 = vector.broadcast %55 : vector<24x1xf32> to vector<24x256xf32>
    %57 = arith.addf %54, %56 : vector<24x256xf32>
    %c0_23 = arith.constant 0 : index
    %c0_24 = arith.constant 0 : index
    %c0_25 = arith.constant 0 : index
    %58 = vector.load %arg14[%c0_23, %c0_24, %c0_25] : memref<1x88x256xf32, #tpu.memory_space<vmem>>, vector<1x24x256xf32>
    %59 = vector.shape_cast %58 : vector<1x24x256xf32> to vector<24x256xf32>
    %60 = vector.shape_cast %57 : vector<24x256xf32> to vector<1x24x256xf32>
    tpu.vector_store %arg14[%c0_23, %c0_24, %c0_25], %60 {strides = array<i32>} : memref<1x88x256xf32, #tpu.memory_space<vmem>>, vector<1x24x256xf32>,
    %61 = vector.extract_strided_slice %6 {offsets = [16, 0], sizes = [16, 256], strides = [1, 1]} : vector<48x256xf32> to vector<16x256xf32>
    %c34_i32 = arith.constant 34 : i32
    %62 = tpu.dynamic_rotate %61 by %c34_i32 dim 1 : vector<16x256xf32>, i32 -> vector<16x256xf32>
    %c0_26 = arith.constant 0 : index
    %c0_27 = arith.constant 0 : index
    %63 = vector.load %arg3[%c0_26, %c0_27] : memref<25x256xf32, #tpu.memory_space<vmem>>, vector<1x256xf32>
    %64 = vector.broadcast %63 : vector<1x256xf32> to vector<16x256xf32>
    %65 = arith.mulf %62, %64 : vector<16x256xf32>
    %c0_28 = arith.constant 0 : index
    %c0_29 = arith.constant 0 : index
    %66 = vector.load %arg15[%c0_28, %c0_29] : memref<400x256xf32, #tpu.memory_space<vmem>>, vector<16x256xf32>
    tpu.vector_store %arg15[%c0_28, %c0_29], %65 {strides = array<i32>} : memref<400x256xf32, #tpu.memory_space<vmem>>, vector<16x256xf32>,
    %c33_i32 = arith.constant 33 : i32
    %67 = tpu.dynamic_rotate %61 by %c33_i32 dim 1 : vector<16x256xf32>, i32 -> vector<16x256xf32>
    %c1_30 = arith.constant 1 : index
    %c0_31 = arith.constant 0 : index
    %68 = vector.load %arg3[%c1_30, %c0_31] : memref<25x256xf32, #tpu.memory_space<vmem>>, vector<1x256xf32>
    %69 = vector.broadcast %68 : vector<1x256xf32> to vector<16x256xf32>
    %70 = arith.mulf %67, %69 : vector<16x256xf32>
    %c16 = arith.constant 16 : index
    %c0_32 = arith.constant 0 : index
    %71 = vector.load %arg15[%c16, %c0_32] : memref<400x256xf32, #tpu.memory_space<vmem>>, vector<16x256xf32>
    tpu.vector_store %arg15[%c16, %c0_32], %70 {strides = array<i32>} : memref<400x256xf32, #tpu.memory_space<vmem>>, vector<16x256xf32>,
    %c32_i32 = arith.constant 32 : i32
    %72 = tpu.dynamic_rotate %61 by %c32_i32 dim 1 : vector<16x256xf32>, i32 -> vector<16x256xf32>
    %c2_33 = arith.constant 2 : index
    %c0_34 = arith.constant 0 : index
    %73 = vector.load %arg3[%c2_33, %c0_34] : memref<25x256xf32, #tpu.memory_space<vmem>>, vector<1x256xf32>
    %74 = vector.broadcast %73 : vector<1x256xf32> to vector<16x256xf32>
    %75 = arith.mulf %72, %74 : vector<16x256xf32>
    %c32 = arith.constant 32 : index
    %c0_35 = arith.constant 0 : index
    %76 = vector.load %arg15[%c32, %c0_35] : memref<400x256xf32, #tpu.memory_space<vmem>>, vector<16x256xf32>
    tpu.vector_store %arg15[%c32, %c0_35], %75 {strides = array<i32>} : memref<400x256xf32, #tpu.memory_space<vmem>>, vector<16x256xf32>,
    %c31_i32 = arith.constant 31 : i32
    %77 = tpu.dynamic_rotate %61 by %c31_i32 dim 1 : vector<16x256xf32>, i32 -> vector<16x256xf32>
    %c3_36 = arith.constant 3 : index
    %c0_37 = arith.constant 0 : index
    %78 = vector.load %arg3[%c3_36, %c0_37] : memref<25x256xf32, #tpu.memory_space<vmem>>, vector<1x256xf32>
    %79 = vector.broadcast %78 : vector<1x256xf32> to vector<16x256xf32>
    %80 = arith.mulf %77, %79 : vector<16x256xf32>
    %c48 = arith.constant 48 : index
    %c0_38 = arith.constant 0 : index
    %81 = vector.load %arg15[%c48, %c0_38] : memref<400x256xf32, #tpu.memory_space<vmem>>, vector<16x256xf32>
    tpu.vector_store %arg15[%c48, %c0_38], %80 {strides = array<i32>} : memref<400x256xf32, #tpu.memory_space<vmem>>, vector<16x256xf32>,
    %c30_i32 = arith.constant 30 : i32
    %82 = tpu.dynamic_rotate %61 by %c30_i32 dim 1 : vector<16x256xf32>, i32 -> vector<16x256xf32>
    %c4 = arith.constant 4 : index
    %c0_39 = arith.constant 0 : index
    %83 = vector.load %arg3[%c4, %c0_39] : memref<25x256xf32, #tpu.memory_space<vmem>>, vector<1x256xf32>
    %84 = vector.broadcast %83 : vector<1x256xf32> to vector<16x256xf32>
    %85 = arith.mulf %82, %84 : vector<16x256xf32>
    %c64 = arith.constant 64 : index
    %c0_40 = arith.constant 0 : index
    %86 = vector.load %arg15[%c64, %c0_40] : memref<400x256xf32, #tpu.memory_space<vmem>>, vector<16x256xf32>
    tpu.vector_store %arg15[%c64, %c0_40], %85 {strides = array<i32>} : memref<400x256xf32, #tpu.memory_space<vmem>>, vector<16x256xf32>,
    %c18_i32 = arith.constant 18 : i32
    %87 = tpu.dynamic_rotate %61 by %c18_i32 dim 1 : vector<16x256xf32>, i32 -> vector<16x256xf32>
    %c5_41 = arith.constant 5 : index
    %c0_42 = arith.constant 0 : index
    %88 = vector.load %arg3[%c5_41, %c0_42] : memref<25x256xf32, #tpu.memory_space<vmem>>, vector<1x256xf32>
    %89 = vector.broadcast %88 : vector<1x256xf32> to vector<16x256xf32>
    %90 = arith.mulf %87, %89 : vector<16x256xf32>
    %c80 = arith.constant 80 : index
    %c0_43 = arith.constant 0 : index
    %91 = vector.load %arg15[%c80, %c0_43] : memref<400x256xf32, #tpu.memory_space<vmem>>, vector<16x256xf32>
    tpu.vector_store %arg15[%c80, %c0_43], %90 {strides = array<i32>} : memref<400x256xf32, #tpu.memory_space<vmem>>, vector<16x256xf32>,
    %c17_i32_44 = arith.constant 17 : i32
    %92 = tpu.dynamic_rotate %61 by %c17_i32_44 dim 1 : vector<16x256xf32>, i32 -> vector<16x256xf32>
    %c6_45 = arith.constant 6 : index
    %c0_46 = arith.constant 0 : index
    %93 = vector.load %arg3[%c6_45, %c0_46] : memref<25x256xf32, #tpu.memory_space<vmem>>, vector<1x256xf32>
    %94 = vector.broadcast %93 : vector<1x256xf32> to vector<16x256xf32>
    %95 = arith.mulf %92, %94 : vector<16x256xf32>
    %c96 = arith.constant 96 : index
    %c0_47 = arith.constant 0 : index
    %96 = vector.load %arg15[%c96, %c0_47] : memref<400x256xf32, #tpu.memory_space<vmem>>, vector<16x256xf32>
    tpu.vector_store %arg15[%c96, %c0_47], %95 {strides = array<i32>} : memref<400x256xf32, #tpu.memory_space<vmem>>, vector<16x256xf32>,
    %c16_i32_48 = arith.constant 16 : i32
    %97 = tpu.dynamic_rotate %61 by %c16_i32_48 dim 1 : vector<16x256xf32>, i32 -> vector<16x256xf32>
    %c7_49 = arith.constant 7 : index
    %c0_50 = arith.constant 0 : index
    %98 = vector.load %arg3[%c7_49, %c0_50] : memref<25x256xf32, #tpu.memory_space<vmem>>, vector<1x256xf32>
    %99 = vector.broadcast %98 : vector<1x256xf32> to vector<16x256xf32>
    %100 = arith.mulf %97, %99 : vector<16x256xf32>
    %c112 = arith.constant 112 : index
    %c0_51 = arith.constant 0 : index
    %101 = vector.load %arg15[%c112, %c0_51] : memref<400x256xf32, #tpu.memory_space<vmem>>, vector<16x256xf32>
    tpu.vector_store %arg15[%c112, %c0_51], %100 {strides = array<i32>} : memref<400x256xf32, #tpu.memory_space<vmem>>, vector<16x256xf32>,
    %c15_i32_52 = arith.constant 15 : i32
    %102 = tpu.dynamic_rotate %61 by %c15_i32_52 dim 1 : vector<16x256xf32>, i32 -> vector<16x256xf32>
    %c8_53 = arith.constant 8 : index
    %c0_54 = arith.constant 0 : index
    %103 = vector.load %arg3[%c8_53, %c0_54] : memref<25x256xf32, #tpu.memory_space<vmem>>, vector<1x256xf32>
    %104 = vector.broadcast %103 : vector<1x256xf32> to vector<16x256xf32>
    %105 = arith.mulf %102, %104 : vector<16x256xf32>
    %c128 = arith.constant 128 : index
    %c0_55 = arith.constant 0 : index
    %106 = vector.load %arg15[%c128, %c0_55] : memref<400x256xf32, #tpu.memory_space<vmem>>, vector<16x256xf32>
    tpu.vector_store %arg15[%c128, %c0_55], %105 {strides = array<i32>} : memref<400x256xf32, #tpu.memory_space<vmem>>, vector<16x256xf32>,
    %c14_i32 = arith.constant 14 : i32
    %107 = tpu.dynamic_rotate %61 by %c14_i32 dim 1 : vector<16x256xf32>, i32 -> vector<16x256xf32>
    %c9 = arith.constant 9 : index
    %c0_56 = arith.constant 0 : index
    %108 = vector.load %arg3[%c9, %c0_56] : memref<25x256xf32, #tpu.memory_space<vmem>>, vector<1x256xf32>
    %109 = vector.broadcast %108 : vector<1x256xf32> to vector<16x256xf32>
    %110 = arith.mulf %107, %109 : vector<16x256xf32>
    %c144 = arith.constant 144 : index
    %c0_57 = arith.constant 0 : index
    %111 = vector.load %arg15[%c144, %c0_57] : memref<400x256xf32, #tpu.memory_space<vmem>>, vector<16x256xf32>
    tpu.vector_store %arg15[%c144, %c0_57], %110 {strides = array<i32>} : memref<400x256xf32, #tpu.memory_space<vmem>>, vector<16x256xf32>,
    %c2_i32 = arith.constant 2 : i32
    %112 = tpu.dynamic_rotate %61 by %c2_i32 dim 1 : vector<16x256xf32>, i32 -> vector<16x256xf32>
    %c10 = arith.constant 10 : index
    %c0_58 = arith.constant 0 : index
    %113 = vector.load %arg3[%c10, %c0_58] : memref<25x256xf32, #tpu.memory_space<vmem>>, vector<1x256xf32>
    %114 = vector.broadcast %113 : vector<1x256xf32> to vector<16x256xf32>
    %115 = arith.mulf %112, %114 : vector<16x256xf32>
    %c160 = arith.constant 160 : index
    %c0_59 = arith.constant 0 : index
    %116 = vector.load %arg15[%c160, %c0_59] : memref<400x256xf32, #tpu.memory_space<vmem>>, vector<16x256xf32>
    tpu.vector_store %arg15[%c160, %c0_59], %115 {strides = array<i32>} : memref<400x256xf32, #tpu.memory_space<vmem>>, vector<16x256xf32>,
    %c1_i32_60 = arith.constant 1 : i32
    %117 = tpu.dynamic_rotate %61 by %c1_i32_60 dim 1 : vector<16x256xf32>, i32 -> vector<16x256xf32>
    %c11 = arith.constant 11 : index
    %c0_61 = arith.constant 0 : index
    %118 = vector.load %arg3[%c11, %c0_61] : memref<25x256xf32, #tpu.memory_space<vmem>>, vector<1x256xf32>
    %119 = vector.broadcast %118 : vector<1x256xf32> to vector<16x256xf32>
    %120 = arith.mulf %117, %119 : vector<16x256xf32>
    %c176 = arith.constant 176 : index
    %c0_62 = arith.constant 0 : index
    %121 = vector.load %arg15[%c176, %c0_62] : memref<400x256xf32, #tpu.memory_space<vmem>>, vector<16x256xf32>
    tpu.vector_store %arg15[%c176, %c0_62], %120 {strides = array<i32>} : memref<400x256xf32, #tpu.memory_space<vmem>>, vector<16x256xf32>,
    %c192 = arith.constant 192 : index
    %c0_63 = arith.constant 0 : index
    %122 = vector.load %arg15[%c192, %c0_63] : memref<400x256xf32, #tpu.memory_space<vmem>>, vector<16x256xf32>
    tpu.vector_store %arg15[%c192, %c0_63], %61 {strides = array<i32>} : memref<400x256xf32, #tpu.memory_space<vmem>>, vector<16x256xf32>,
    %c255_i32_64 = arith.constant 255 : i32
    %123 = tpu.dynamic_rotate %61 by %c255_i32_64 dim 1 : vector<16x256xf32>, i32 -> vector<16x256xf32>
    %c13 = arith.constant 13 : index
    %c0_65 = arith.constant 0 : index
    %124 = vector.load %arg3[%c13, %c0_65] : memref<25x256xf32, #tpu.memory_space<vmem>>, vector<1x256xf32>
    %125 = vector.broadcast %124 : vector<1x256xf32> to vector<16x256xf32>
    %126 = arith.mulf %123, %125 : vector<16x256xf32>
    %c208 = arith.constant 208 : index
    %c0_66 = arith.constant 0 : index
    %127 = vector.load %arg15[%c208, %c0_66] : memref<400x256xf32, #tpu.memory_space<vmem>>, vector<16x256xf32>
    tpu.vector_store %arg15[%c208, %c0_66], %126 {strides = array<i32>} : memref<400x256xf32, #tpu.memory_space<vmem>>, vector<16x256xf32>,
    %c254_i32 = arith.constant 254 : i32
    %128 = tpu.dynamic_rotate %61 by %c254_i32 dim 1 : vector<16x256xf32>, i32 -> vector<16x256xf32>
    %c14 = arith.constant 14 : index
    %c0_67 = arith.constant 0 : index
    %129 = vector.load %arg3[%c14, %c0_67] : memref<25x256xf32, #tpu.memory_space<vmem>>, vector<1x256xf32>
    %130 = vector.broadcast %129 : vector<1x256xf32> to vector<16x256xf32>
    %131 = arith.mulf %128, %130 : vector<16x256xf32>
    %c224 = arith.constant 224 : index
    %c0_68 = arith.constant 0 : index
    %132 = vector.load %arg15[%c224, %c0_68] : memref<400x256xf32, #tpu.memory_space<vmem>>, vector<16x256xf32>
    tpu.vector_store %arg15[%c224, %c0_68], %131 {strides = array<i32>} : memref<400x256xf32, #tpu.memory_space<vmem>>, vector<16x256xf32>,
    %c242_i32 = arith.constant 242 : i32
    %133 = tpu.dynamic_rotate %61 by %c242_i32 dim 1 : vector<16x256xf32>, i32 -> vector<16x256xf32>
    %c15 = arith.constant 15 : index
    %c0_69 = arith.constant 0 : index
    %134 = vector.load %arg3[%c15, %c0_69] : memref<25x256xf32, #tpu.memory_space<vmem>>, vector<1x256xf32>
    %135 = vector.broadcast %134 : vector<1x256xf32> to vector<16x256xf32>
    %136 = arith.mulf %133, %135 : vector<16x256xf32>
    %c240 = arith.constant 240 : index
    %c0_70 = arith.constant 0 : index
    %137 = vector.load %arg15[%c240, %c0_70] : memref<400x256xf32, #tpu.memory_space<vmem>>, vector<16x256xf32>
    tpu.vector_store %arg15[%c240, %c0_70], %136 {strides = array<i32>} : memref<400x256xf32, #tpu.memory_space<vmem>>, vector<16x256xf32>,
    %c241_i32_71 = arith.constant 241 : i32
    %138 = tpu.dynamic_rotate %61 by %c241_i32_71 dim 1 : vector<16x256xf32>, i32 -> vector<16x256xf32>
    %c16_72 = arith.constant 16 : index
    %c0_73 = arith.constant 0 : index
    %139 = vector.load %arg3[%c16_72, %c0_73] : memref<25x256xf32, #tpu.memory_space<vmem>>, vector<1x256xf32>
    %140 = vector.broadcast %139 : vector<1x256xf32> to vector<16x256xf32>
    %141 = arith.mulf %138, %140 : vector<16x256xf32>
    %c256 = arith.constant 256 : index
    %c0_74 = arith.constant 0 : index
    %142 = vector.load %arg15[%c256, %c0_74] : memref<400x256xf32, #tpu.memory_space<vmem>>, vector<16x256xf32>
    tpu.vector_store %arg15[%c256, %c0_74], %141 {strides = array<i32>} : memref<400x256xf32, #tpu.memory_space<vmem>>, vector<16x256xf32>,
    %c240_i32_75 = arith.constant 240 : i32
    %143 = tpu.dynamic_rotate %61 by %c240_i32_75 dim 1 : vector<16x256xf32>, i32 -> vector<16x256xf32>
    %c17 = arith.constant 17 : index
    %c0_76 = arith.constant 0 : index
    %144 = vector.load %arg3[%c17, %c0_76] : memref<25x256xf32, #tpu.memory_space<vmem>>, vector<1x256xf32>
    %145 = vector.broadcast %144 : vector<1x256xf32> to vector<16x256xf32>
    %146 = arith.mulf %143, %145 : vector<16x256xf32>
    %c272 = arith.constant 272 : index
    %c0_77 = arith.constant 0 : index
    %147 = vector.load %arg15[%c272, %c0_77] : memref<400x256xf32, #tpu.memory_space<vmem>>, vector<16x256xf32>
    tpu.vector_store %arg15[%c272, %c0_77], %146 {strides = array<i32>} : memref<400x256xf32, #tpu.memory_space<vmem>>, vector<16x256xf32>,
    %c239_i32_78 = arith.constant 239 : i32
    %148 = tpu.dynamic_rotate %61 by %c239_i32_78 dim 1 : vector<16x256xf32>, i32 -> vector<16x256xf32>
    %c18 = arith.constant 18 : index
    %c0_79 = arith.constant 0 : index
    %149 = vector.load %arg3[%c18, %c0_79] : memref<25x256xf32, #tpu.memory_space<vmem>>, vector<1x256xf32>
    %150 = vector.broadcast %149 : vector<1x256xf32> to vector<16x256xf32>
    %151 = arith.mulf %148, %150 : vector<16x256xf32>
    %c288 = arith.constant 288 : index
    %c0_80 = arith.constant 0 : index
    %152 = vector.load %arg15[%c288, %c0_80] : memref<400x256xf32, #tpu.memory_space<vmem>>, vector<16x256xf32>
    tpu.vector_store %arg15[%c288, %c0_80], %151 {strides = array<i32>} : memref<400x256xf32, #tpu.memory_space<vmem>>, vector<16x256xf32>,
    %c238_i32 = arith.constant 238 : i32
    %153 = tpu.dynamic_rotate %61 by %c238_i32 dim 1 : vector<16x256xf32>, i32 -> vector<16x256xf32>
    %c19 = arith.constant 19 : index
    %c0_81 = arith.constant 0 : index
    %154 = vector.load %arg3[%c19, %c0_81] : memref<25x256xf32, #tpu.memory_space<vmem>>, vector<1x256xf32>
    %155 = vector.broadcast %154 : vector<1x256xf32> to vector<16x256xf32>
    %156 = arith.mulf %153, %155 : vector<16x256xf32>
    %c304 = arith.constant 304 : index
    %c0_82 = arith.constant 0 : index
    %157 = vector.load %arg15[%c304, %c0_82] : memref<400x256xf32, #tpu.memory_space<vmem>>, vector<16x256xf32>
    tpu.vector_store %arg15[%c304, %c0_82], %156 {strides = array<i32>} : memref<400x256xf32, #tpu.memory_space<vmem>>, vector<16x256xf32>,
    %c226_i32 = arith.constant 226 : i32
    %158 = tpu.dynamic_rotate %61 by %c226_i32 dim 1 : vector<16x256xf32>, i32 -> vector<16x256xf32>
    %c20 = arith.constant 20 : index
    %c0_83 = arith.constant 0 : index
    %159 = vector.load %arg3[%c20, %c0_83] : memref<25x256xf32, #tpu.memory_space<vmem>>, vector<1x256xf32>
    %160 = vector.broadcast %159 : vector<1x256xf32> to vector<16x256xf32>
    %161 = arith.mulf %158, %160 : vector<16x256xf32>
    %c320 = arith.constant 320 : index
    %c0_84 = arith.constant 0 : index
    %162 = vector.load %arg15[%c320, %c0_84] : memref<400x256xf32, #tpu.memory_space<vmem>>, vector<16x256xf32>
    tpu.vector_store %arg15[%c320, %c0_84], %161 {strides = array<i32>} : memref<400x256xf32, #tpu.memory_space<vmem>>, vector<16x256xf32>,
    %c225_i32 = arith.constant 225 : i32
    %163 = tpu.dynamic_rotate %61 by %c225_i32 dim 1 : vector<16x256xf32>, i32 -> vector<16x256xf32>
    %c21 = arith.constant 21 : index
    %c0_85 = arith.constant 0 : index
    %164 = vector.load %arg3[%c21, %c0_85] : memref<25x256xf32, #tpu.memory_space<vmem>>, vector<1x256xf32>
    %165 = vector.broadcast %164 : vector<1x256xf32> to vector<16x256xf32>
    %166 = arith.mulf %163, %165 : vector<16x256xf32>
    %c336 = arith.constant 336 : index
    %c0_86 = arith.constant 0 : index
    %167 = vector.load %arg15[%c336, %c0_86] : memref<400x256xf32, #tpu.memory_space<vmem>>, vector<16x256xf32>
    tpu.vector_store %arg15[%c336, %c0_86], %166 {strides = array<i32>} : memref<400x256xf32, #tpu.memory_space<vmem>>, vector<16x256xf32>,
    %c224_i32 = arith.constant 224 : i32
    %168 = tpu.dynamic_rotate %61 by %c224_i32 dim 1 : vector<16x256xf32>, i32 -> vector<16x256xf32>
    %c22 = arith.constant 22 : index
    %c0_87 = arith.constant 0 : index
    %169 = vector.load %arg3[%c22, %c0_87] : memref<25x256xf32, #tpu.memory_space<vmem>>, vector<1x256xf32>
    %170 = vector.broadcast %169 : vector<1x256xf32> to vector<16x256xf32>
    %171 = arith.mulf %168, %170 : vector<16x256xf32>
    %c352 = arith.constant 352 : index
    %c0_88 = arith.constant 0 : index
    %172 = vector.load %arg15[%c352, %c0_88] : memref<400x256xf32, #tpu.memory_space<vmem>>, vector<16x256xf32>
    tpu.vector_store %arg15[%c352, %c0_88], %171 {strides = array<i32>} : memref<400x256xf32, #tpu.memory_space<vmem>>, vector<16x256xf32>,
    %c223_i32 = arith.constant 223 : i32
    %173 = tpu.dynamic_rotate %61 by %c223_i32 dim 1 : vector<16x256xf32>, i32 -> vector<16x256xf32>
    %c23 = arith.constant 23 : index
    %c0_89 = arith.constant 0 : index
    %174 = vector.load %arg3[%c23, %c0_89] : memref<25x256xf32, #tpu.memory_space<vmem>>, vector<1x256xf32>
    %175 = vector.broadcast %174 : vector<1x256xf32> to vector<16x256xf32>
    %176 = arith.mulf %173, %175 : vector<16x256xf32>
    %c368 = arith.constant 368 : index
    %c0_90 = arith.constant 0 : index
    %177 = vector.load %arg15[%c368, %c0_90] : memref<400x256xf32, #tpu.memory_space<vmem>>, vector<16x256xf32>
    tpu.vector_store %arg15[%c368, %c0_90], %176 {strides = array<i32>} : memref<400x256xf32, #tpu.memory_space<vmem>>, vector<16x256xf32>,
    %c222_i32 = arith.constant 222 : i32
    %178 = tpu.dynamic_rotate %61 by %c222_i32 dim 1 : vector<16x256xf32>, i32 -> vector<16x256xf32>
    %c24_91 = arith.constant 24 : index
    %c0_92 = arith.constant 0 : index
    %179 = vector.load %arg3[%c24_91, %c0_92] : memref<25x256xf32, #tpu.memory_space<vmem>>, vector<1x256xf32>
    %180 = vector.broadcast %179 : vector<1x256xf32> to vector<16x256xf32>
    %181 = arith.mulf %178, %180 : vector<16x256xf32>
    %c384 = arith.constant 384 : index
    %c0_93 = arith.constant 0 : index
    %182 = vector.load %arg15[%c384, %c0_93] : memref<400x256xf32, #tpu.memory_space<vmem>>, vector<16x256xf32>
    tpu.vector_store %arg15[%c384, %c0_93], %181 {strides = array<i32>} : memref<400x256xf32, #tpu.memory_space<vmem>>, vector<16x256xf32>,
    %c0_94 = arith.constant 0 : index
    %c0_95 = arith.constant 0 : index
    %183 = vector.load %arg8[%c0_94, %c0_95] : memref<24x400xf32, #tpu.memory_space<vmem>>, vector<24x400xf32>
    %c0_96 = arith.constant 0 : index
    %c0_97 = arith.constant 0 : index
    %184 = vector.load %arg15[%c0_96, %c0_97] : memref<400x256xf32, #tpu.memory_space<vmem>>, vector<400x256xf32>
    %cst_98 = arith.constant dense<0.000000e+00> : vector<24x256xf32>
    %185 = tpu.matmul %183, %184, %cst_98 {dimension_numbers = #tpu.dot_dimension_numbers<[1], [0], [0], [1], [0, 0, 1, 1], [], []>} : vector<24x400xf32>, vector<400x256xf32>, vector<24x256xf32> -> vector<24x256xf32>
    %c0_99 = arith.constant 0 : index
    %c0_100 = arith.constant 0 : index
    %186 = vector.load %arg9[%c0_99, %c0_100] : memref<24x1xf32, #tpu.memory_space<vmem>>, vector<24x1xf32>
    %187 = vector.broadcast %186 : vector<24x1xf32> to vector<24x256xf32>
    %188 = arith.addf %185, %187 : vector<24x256xf32>
    %c0_101 = arith.constant 0 : index
    %c40 = arith.constant 40 : index
    %c0_102 = arith.constant 0 : index
    %189 = vector.load %arg14[%c0_101, %c40, %c0_102] : memref<1x88x256xf32, #tpu.memory_space<vmem>>, vector<1x24x256xf32>
    %190 = vector.shape_cast %189 : vector<1x24x256xf32> to vector<24x256xf32>
    %191 = vector.shape_cast %188 : vector<24x256xf32> to vector<1x24x256xf32>
    tpu.vector_store %arg14[%c0_101, %c40, %c0_102], %191 {strides = array<i32>} : memref<1x88x256xf32, #tpu.memory_space<vmem>>, vector<1x24x256xf32>,
    %192 = vector.extract_strided_slice %6 {offsets = [32, 0], sizes = [16, 256], strides = [1, 1]} : vector<48x256xf32> to vector<16x256xf32>
    %c17_i32_103 = arith.constant 17 : i32
    %193 = tpu.dynamic_rotate %192 by %c17_i32_103 dim 1 : vector<16x256xf32>, i32 -> vector<16x256xf32>
    %c0_104 = arith.constant 0 : index
    %c0_105 = arith.constant 0 : index
    %194 = vector.load %arg2[%c0_104, %c0_105] : memref<9x256xf32, #tpu.memory_space<vmem>>, vector<1x256xf32>
    %195 = vector.broadcast %194 : vector<1x256xf32> to vector<16x256xf32>
    %196 = arith.mulf %193, %195 : vector<16x256xf32>
    %c0_106 = arith.constant 0 : index
    %c0_107 = arith.constant 0 : index
    %197 = vector.load %arg16[%c0_106, %c0_107] : memref<144x256xf32, #tpu.memory_space<vmem>>, vector<16x256xf32>
    tpu.vector_store %arg16[%c0_106, %c0_107], %196 {strides = array<i32>} : memref<144x256xf32, #tpu.memory_space<vmem>>, vector<16x256xf32>,
    %c16_i32_108 = arith.constant 16 : i32
    %198 = tpu.dynamic_rotate %192 by %c16_i32_108 dim 1 : vector<16x256xf32>, i32 -> vector<16x256xf32>
    %c1_109 = arith.constant 1 : index
    %c0_110 = arith.constant 0 : index
    %199 = vector.load %arg2[%c1_109, %c0_110] : memref<9x256xf32, #tpu.memory_space<vmem>>, vector<1x256xf32>
    %200 = vector.broadcast %199 : vector<1x256xf32> to vector<16x256xf32>
    %201 = arith.mulf %198, %200 : vector<16x256xf32>
    %c16_111 = arith.constant 16 : index
    %c0_112 = arith.constant 0 : index
    %202 = vector.load %arg16[%c16_111, %c0_112] : memref<144x256xf32, #tpu.memory_space<vmem>>, vector<16x256xf32>
    tpu.vector_store %arg16[%c16_111, %c0_112], %201 {strides = array<i32>} : memref<144x256xf32, #tpu.memory_space<vmem>>, vector<16x256xf32>,
    %c15_i32_113 = arith.constant 15 : i32
    %203 = tpu.dynamic_rotate %192 by %c15_i32_113 dim 1 : vector<16x256xf32>, i32 -> vector<16x256xf32>
    %c2_114 = arith.constant 2 : index
    %c0_115 = arith.constant 0 : index
    %204 = vector.load %arg2[%c2_114, %c0_115] : memref<9x256xf32, #tpu.memory_space<vmem>>, vector<1x256xf32>
    %205 = vector.broadcast %204 : vector<1x256xf32> to vector<16x256xf32>
    %206 = arith.mulf %203, %205 : vector<16x256xf32>
    %c32_116 = arith.constant 32 : index
    %c0_117 = arith.constant 0 : index
    %207 = vector.load %arg16[%c32_116, %c0_117] : memref<144x256xf32, #tpu.memory_space<vmem>>, vector<16x256xf32>
    tpu.vector_store %arg16[%c32_116, %c0_117], %206 {strides = array<i32>} : memref<144x256xf32, #tpu.memory_space<vmem>>, vector<16x256xf32>,
    %c1_i32_118 = arith.constant 1 : i32
    %208 = tpu.dynamic_rotate %192 by %c1_i32_118 dim 1 : vector<16x256xf32>, i32 -> vector<16x256xf32>
    %c3_119 = arith.constant 3 : index
    %c0_120 = arith.constant 0 : index
    %209 = vector.load %arg2[%c3_119, %c0_120] : memref<9x256xf32, #tpu.memory_space<vmem>>, vector<1x256xf32>
    %210 = vector.broadcast %209 : vector<1x256xf32> to vector<16x256xf32>
    %211 = arith.mulf %208, %210 : vector<16x256xf32>
    %c48_121 = arith.constant 48 : index
    %c0_122 = arith.constant 0 : index
    %212 = vector.load %arg16[%c48_121, %c0_122] : memref<144x256xf32, #tpu.memory_space<vmem>>, vector<16x256xf32>
    tpu.vector_store %arg16[%c48_121, %c0_122], %211 {strides = array<i32>} : memref<144x256xf32, #tpu.memory_space<vmem>>, vector<16x256xf32>,
    %c64_123 = arith.constant 64 : index
    %c0_124 = arith.constant 0 : index
    %213 = vector.load %arg16[%c64_123, %c0_124] : memref<144x256xf32, #tpu.memory_space<vmem>>, vector<16x256xf32>
    tpu.vector_store %arg16[%c64_123, %c0_124], %192 {strides = array<i32>} : memref<144x256xf32, #tpu.memory_space<vmem>>, vector<16x256xf32>,
    %c255_i32_125 = arith.constant 255 : i32
    %214 = tpu.dynamic_rotate %192 by %c255_i32_125 dim 1 : vector<16x256xf32>, i32 -> vector<16x256xf32>
    %c5_126 = arith.constant 5 : index
    %c0_127 = arith.constant 0 : index
    %215 = vector.load %arg2[%c5_126, %c0_127] : memref<9x256xf32, #tpu.memory_space<vmem>>, vector<1x256xf32>
    %216 = vector.broadcast %215 : vector<1x256xf32> to vector<16x256xf32>
    %217 = arith.mulf %214, %216 : vector<16x256xf32>
    %c80_128 = arith.constant 80 : index
    %c0_129 = arith.constant 0 : index
    %218 = vector.load %arg16[%c80_128, %c0_129] : memref<144x256xf32, #tpu.memory_space<vmem>>, vector<16x256xf32>
    tpu.vector_store %arg16[%c80_128, %c0_129], %217 {strides = array<i32>} : memref<144x256xf32, #tpu.memory_space<vmem>>, vector<16x256xf32>,
    %c241_i32_130 = arith.constant 241 : i32
    %219 = tpu.dynamic_rotate %192 by %c241_i32_130 dim 1 : vector<16x256xf32>, i32 -> vector<16x256xf32>
    %c6_131 = arith.constant 6 : index
    %c0_132 = arith.constant 0 : index
    %220 = vector.load %arg2[%c6_131, %c0_132] : memref<9x256xf32, #tpu.memory_space<vmem>>, vector<1x256xf32>
    %221 = vector.broadcast %220 : vector<1x256xf32> to vector<16x256xf32>
    %222 = arith.mulf %219, %221 : vector<16x256xf32>
    %c96_133 = arith.constant 96 : index
    %c0_134 = arith.constant 0 : index
    %223 = vector.load %arg16[%c96_133, %c0_134] : memref<144x256xf32, #tpu.memory_space<vmem>>, vector<16x256xf32>
    tpu.vector_store %arg16[%c96_133, %c0_134], %222 {strides = array<i32>} : memref<144x256xf32, #tpu.memory_space<vmem>>, vector<16x256xf32>,
    %c240_i32_135 = arith.constant 240 : i32
    %224 = tpu.dynamic_rotate %192 by %c240_i32_135 dim 1 : vector<16x256xf32>, i32 -> vector<16x256xf32>
    %c7_136 = arith.constant 7 : index
    %c0_137 = arith.constant 0 : index
    %225 = vector.load %arg2[%c7_136, %c0_137] : memref<9x256xf32, #tpu.memory_space<vmem>>, vector<1x256xf32>
    %226 = vector.broadcast %225 : vector<1x256xf32> to vector<16x256xf32>
    %227 = arith.mulf %224, %226 : vector<16x256xf32>
    %c112_138 = arith.constant 112 : index
    %c0_139 = arith.constant 0 : index
    %228 = vector.load %arg16[%c112_138, %c0_139] : memref<144x256xf32, #tpu.memory_space<vmem>>, vector<16x256xf32>
    tpu.vector_store %arg16[%c112_138, %c0_139], %227 {strides = array<i32>} : memref<144x256xf32, #tpu.memory_space<vmem>>, vector<16x256xf32>,
    %c239_i32_140 = arith.constant 239 : i32
    %229 = tpu.dynamic_rotate %192 by %c239_i32_140 dim 1 : vector<16x256xf32>, i32 -> vector<16x256xf32>
    %c8_141 = arith.constant 8 : index
    %c0_142 = arith.constant 0 : index
    %230 = vector.load %arg2[%c8_141, %c0_142] : memref<9x256xf32, #tpu.memory_space<vmem>>, vector<1x256xf32>
    %231 = vector.broadcast %230 : vector<1x256xf32> to vector<16x256xf32>
    %232 = arith.mulf %229, %231 : vector<16x256xf32>
    %c128_143 = arith.constant 128 : index
    %c0_144 = arith.constant 0 : index
    %233 = vector.load %arg16[%c128_143, %c0_144] : memref<144x256xf32, #tpu.memory_space<vmem>>, vector<16x256xf32>
    tpu.vector_store %arg16[%c128_143, %c0_144], %232 {strides = array<i32>} : memref<144x256xf32, #tpu.memory_space<vmem>>, vector<16x256xf32>,
    %c0_145 = arith.constant 0 : index
    %c0_146 = arith.constant 0 : index
    %234 = vector.load %arg10[%c0_145, %c0_146] : memref<24x144xf32, #tpu.memory_space<vmem>>, vector<24x144xf32>
    %c0_147 = arith.constant 0 : index
    %c0_148 = arith.constant 0 : index
    %235 = vector.load %arg16[%c0_147, %c0_148] : memref<144x256xf32, #tpu.memory_space<vmem>>, vector<144x256xf32>
    %cst_149 = arith.constant dense<0.000000e+00> : vector<24x256xf32>
    %236 = tpu.matmul %234, %235, %cst_149 {dimension_numbers = #tpu.dot_dimension_numbers<[1], [0], [0], [1], [0, 0, 1, 1], [], []>} : vector<24x144xf32>, vector<144x256xf32>, vector<24x256xf32> -> vector<24x256xf32>
    %c0_150 = arith.constant 0 : index
    %c0_151 = arith.constant 0 : index
    %237 = vector.load %arg11[%c0_150, %c0_151] : memref<24x1xf32, #tpu.memory_space<vmem>>, vector<24x1xf32>
    %238 = vector.broadcast %237 : vector<24x1xf32> to vector<24x256xf32>
    %239 = arith.addf %236, %238 : vector<24x256xf32>
    %c17_i32_152 = arith.constant 17 : i32
    %240 = tpu.dynamic_rotate %239 by %c17_i32_152 dim 1 : vector<24x256xf32>, i32 -> vector<24x256xf32>
    %c0_153 = arith.constant 0 : index
    %c0_154 = arith.constant 0 : index
    %241 = vector.load %arg2[%c0_153, %c0_154] : memref<9x256xf32, #tpu.memory_space<vmem>>, vector<1x256xf32>
    %242 = vector.broadcast %241 : vector<1x256xf32> to vector<24x256xf32>
    %243 = arith.mulf %240, %242 : vector<24x256xf32>
    %c0_155 = arith.constant 0 : index
    %c0_156 = arith.constant 0 : index
    %244 = vector.load %arg17[%c0_155, %c0_156] : memref<216x256xf32, #tpu.memory_space<vmem>>, vector<24x256xf32>
    tpu.vector_store %arg17[%c0_155, %c0_156], %243 {strides = array<i32>} : memref<216x256xf32, #tpu.memory_space<vmem>>, vector<24x256xf32>,
    %c16_i32_157 = arith.constant 16 : i32
    %245 = tpu.dynamic_rotate %239 by %c16_i32_157 dim 1 : vector<24x256xf32>, i32 -> vector<24x256xf32>
    %c1_158 = arith.constant 1 : index
    %c0_159 = arith.constant 0 : index
    %246 = vector.load %arg2[%c1_158, %c0_159] : memref<9x256xf32, #tpu.memory_space<vmem>>, vector<1x256xf32>
    %247 = vector.broadcast %246 : vector<1x256xf32> to vector<24x256xf32>
    %248 = arith.mulf %245, %247 : vector<24x256xf32>
    %c24_160 = arith.constant 24 : index
    %c0_161 = arith.constant 0 : index
    %249 = vector.load %arg17[%c24_160, %c0_161] : memref<216x256xf32, #tpu.memory_space<vmem>>, vector<24x256xf32>
    tpu.vector_store %arg17[%c24_160, %c0_161], %248 {strides = array<i32>} : memref<216x256xf32, #tpu.memory_space<vmem>>, vector<24x256xf32>,
    %c15_i32_162 = arith.constant 15 : i32
    %250 = tpu.dynamic_rotate %239 by %c15_i32_162 dim 1 : vector<24x256xf32>, i32 -> vector<24x256xf32>
    %c2_163 = arith.constant 2 : index
    %c0_164 = arith.constant 0 : index
    %251 = vector.load %arg2[%c2_163, %c0_164] : memref<9x256xf32, #tpu.memory_space<vmem>>, vector<1x256xf32>
    %252 = vector.broadcast %251 : vector<1x256xf32> to vector<24x256xf32>
    %253 = arith.mulf %250, %252 : vector<24x256xf32>
    %c48_165 = arith.constant 48 : index
    %c0_166 = arith.constant 0 : index
    %254 = vector.load %arg17[%c48_165, %c0_166] : memref<216x256xf32, #tpu.memory_space<vmem>>, vector<24x256xf32>
    tpu.vector_store %arg17[%c48_165, %c0_166], %253 {strides = array<i32>} : memref<216x256xf32, #tpu.memory_space<vmem>>, vector<24x256xf32>,
    %c1_i32_167 = arith.constant 1 : i32
    %255 = tpu.dynamic_rotate %239 by %c1_i32_167 dim 1 : vector<24x256xf32>, i32 -> vector<24x256xf32>
    %c3_168 = arith.constant 3 : index
    %c0_169 = arith.constant 0 : index
    %256 = vector.load %arg2[%c3_168, %c0_169] : memref<9x256xf32, #tpu.memory_space<vmem>>, vector<1x256xf32>
    %257 = vector.broadcast %256 : vector<1x256xf32> to vector<24x256xf32>
    %258 = arith.mulf %255, %257 : vector<24x256xf32>
    %c72 = arith.constant 72 : index
    %c0_170 = arith.constant 0 : index
    %259 = vector.load %arg17[%c72, %c0_170] : memref<216x256xf32, #tpu.memory_space<vmem>>, vector<24x256xf32>
    tpu.vector_store %arg17[%c72, %c0_170], %258 {strides = array<i32>} : memref<216x256xf32, #tpu.memory_space<vmem>>, vector<24x256xf32>,
    %c96_171 = arith.constant 96 : index
    %c0_172 = arith.constant 0 : index
    %260 = vector.load %arg17[%c96_171, %c0_172] : memref<216x256xf32, #tpu.memory_space<vmem>>, vector<24x256xf32>
    tpu.vector_store %arg17[%c96_171, %c0_172], %239 {strides = array<i32>} : memref<216x256xf32, #tpu.memory_space<vmem>>, vector<24x256xf32>,
    %c255_i32_173 = arith.constant 255 : i32
    %261 = tpu.dynamic_rotate %239 by %c255_i32_173 dim 1 : vector<24x256xf32>, i32 -> vector<24x256xf32>
    %c5_174 = arith.constant 5 : index
    %c0_175 = arith.constant 0 : index
    %262 = vector.load %arg2[%c5_174, %c0_175] : memref<9x256xf32, #tpu.memory_space<vmem>>, vector<1x256xf32>
    %263 = vector.broadcast %262 : vector<1x256xf32> to vector<24x256xf32>
    %264 = arith.mulf %261, %263 : vector<24x256xf32>
    %c120 = arith.constant 120 : index
    %c0_176 = arith.constant 0 : index
    %265 = vector.load %arg17[%c120, %c0_176] : memref<216x256xf32, #tpu.memory_space<vmem>>, vector<24x256xf32>
    tpu.vector_store %arg17[%c120, %c0_176], %264 {strides = array<i32>} : memref<216x256xf32, #tpu.memory_space<vmem>>, vector<24x256xf32>,
    %c241_i32_177 = arith.constant 241 : i32
    %266 = tpu.dynamic_rotate %239 by %c241_i32_177 dim 1 : vector<24x256xf32>, i32 -> vector<24x256xf32>
    %c6_178 = arith.constant 6 : index
    %c0_179 = arith.constant 0 : index
    %267 = vector.load %arg2[%c6_178, %c0_179] : memref<9x256xf32, #tpu.memory_space<vmem>>, vector<1x256xf32>
    %268 = vector.broadcast %267 : vector<1x256xf32> to vector<24x256xf32>
    %269 = arith.mulf %266, %268 : vector<24x256xf32>
    %c144_180 = arith.constant 144 : index
    %c0_181 = arith.constant 0 : index
    %270 = vector.load %arg17[%c144_180, %c0_181] : memref<216x256xf32, #tpu.memory_space<vmem>>, vector<24x256xf32>
    tpu.vector_store %arg17[%c144_180, %c0_181], %269 {strides = array<i32>} : memref<216x256xf32, #tpu.memory_space<vmem>>, vector<24x256xf32>,
    %c240_i32_182 = arith.constant 240 : i32
    %271 = tpu.dynamic_rotate %239 by %c240_i32_182 dim 1 : vector<24x256xf32>, i32 -> vector<24x256xf32>
    %c7_183 = arith.constant 7 : index
    %c0_184 = arith.constant 0 : index
    %272 = vector.load %arg2[%c7_183, %c0_184] : memref<9x256xf32, #tpu.memory_space<vmem>>, vector<1x256xf32>
    %273 = vector.broadcast %272 : vector<1x256xf32> to vector<24x256xf32>
    %274 = arith.mulf %271, %273 : vector<24x256xf32>
    %c168 = arith.constant 168 : index
    %c0_185 = arith.constant 0 : index
    %275 = vector.load %arg17[%c168, %c0_185] : memref<216x256xf32, #tpu.memory_space<vmem>>, vector<24x256xf32>
    tpu.vector_store %arg17[%c168, %c0_185], %274 {strides = array<i32>} : memref<216x256xf32, #tpu.memory_space<vmem>>, vector<24x256xf32>,
    %c239_i32_186 = arith.constant 239 : i32
    %276 = tpu.dynamic_rotate %239 by %c239_i32_186 dim 1 : vector<24x256xf32>, i32 -> vector<24x256xf32>
    %c8_187 = arith.constant 8 : index
    %c0_188 = arith.constant 0 : index
    %277 = vector.load %arg2[%c8_187, %c0_188] : memref<9x256xf32, #tpu.memory_space<vmem>>, vector<1x256xf32>
    %278 = vector.broadcast %277 : vector<1x256xf32> to vector<24x256xf32>
    %279 = arith.mulf %276, %278 : vector<24x256xf32>
    %c192_189 = arith.constant 192 : index
    %c0_190 = arith.constant 0 : index
    %280 = vector.load %arg17[%c192_189, %c0_190] : memref<216x256xf32, #tpu.memory_space<vmem>>, vector<24x256xf32>
    tpu.vector_store %arg17[%c192_189, %c0_190], %279 {strides = array<i32>} : memref<216x256xf32, #tpu.memory_space<vmem>>, vector<24x256xf32>,
    %c0_191 = arith.constant 0 : index
    %c0_192 = arith.constant 0 : index
    %281 = vector.load %arg12[%c0_191, %c0_192] : memref<24x216xf32, #tpu.memory_space<vmem>>, vector<24x216xf32>
    %c0_193 = arith.constant 0 : index
    %c0_194 = arith.constant 0 : index
    %282 = vector.load %arg17[%c0_193, %c0_194] : memref<216x256xf32, #tpu.memory_space<vmem>>, vector<216x256xf32>
    %cst_195 = arith.constant dense<0.000000e+00> : vector<24x256xf32>
    %283 = tpu.matmul %281, %282, %cst_195 {dimension_numbers = #tpu.dot_dimension_numbers<[1], [0], [0], [1], [0, 0, 1, 1], [], []>} : vector<24x216xf32>, vector<216x256xf32>, vector<24x256xf32> -> vector<24x256xf32>
    %c0_196 = arith.constant 0 : index
    %c0_197 = arith.constant 0 : index
    %284 = vector.load %arg13[%c0_196, %c0_197] : memref<24x1xf32, #tpu.memory_space<vmem>>, vector<24x1xf32>
    %285 = vector.broadcast %284 : vector<24x1xf32> to vector<24x256xf32>
    %286 = arith.addf %283, %285 : vector<24x256xf32>
    %c0_198 = arith.constant 0 : index
    %c64_199 = arith.constant 64 : index
    %c0_200 = arith.constant 0 : index
    %287 = vector.load %arg14[%c0_198, %c64_199, %c0_200] : memref<1x88x256xf32, #tpu.memory_space<vmem>>, vector<1x24x256xf32>
    %288 = vector.shape_cast %287 : vector<1x24x256xf32> to vector<24x256xf32>
    %289 = vector.shape_cast %286 : vector<24x256xf32> to vector<1x24x256xf32>
    tpu.vector_store %arg14[%c0_198, %c64_199, %c0_200], %289 {strides = array<i32>} : memref<1x88x256xf32, #tpu.memory_space<vmem>>, vector<1x24x256xf32>,
    return
  }
  func.func @transform_0(%arg0: i32) -> (i32, i32, i32) {
    %c0_i32 = arith.constant 0 : i32
    %c0_i32_0 = arith.constant 0 : i32
    %c0_i32_1 = arith.constant 0 : i32
    return %arg0, %c0_i32, %c0_i32_0 : i32, i32, i32
  }
  func.func @transform_1(%arg0: i32) -> (i32, i32) {
    %c0_i32 = arith.constant 0 : i32
    %c0_i32_0 = arith.constant 0 : i32
    %c0_i32_1 = arith.constant 0 : i32
    return %c0_i32, %c0_i32_0 : i32, i32
  }
  func.func @transform_2(%arg0: i32) -> (i32, i32) {
    %c0_i32 = arith.constant 0 : i32
    %c0_i32_0 = arith.constant 0 : i32
    %c0_i32_1 = arith.constant 0 : i32
    return %c0_i32, %c0_i32_0 : i32, i32
  }
  func.func @transform_3(%arg0: i32) -> (i32, i32) {
    %c0_i32 = arith.constant 0 : i32
    %c0_i32_0 = arith.constant 0 : i32
    %c0_i32_1 = arith.constant 0 : i32
    return %c0_i32, %c0_i32_0 : i32, i32
  }
  func.func @transform_4(%arg0: i32) -> (i32, i32) {
    %c0_i32 = arith.constant 0 : i32
    %c0_i32_0 = arith.constant 0 : i32
    %c0_i32_1 = arith.constant 0 : i32
    return %c0_i32, %c0_i32_0 : i32, i32
  }
  func.func @transform_5(%arg0: i32) -> (i32, i32) {
    %c0_i32 = arith.constant 0 : i32
    %c0_i32_0 = arith.constant 0 : i32
    %c0_i32_1 = arith.constant 0 : i32
    return %c0_i32, %c0_i32_0 : i32, i32
  }
  func.func @transform_6(%arg0: i32) -> (i32, i32) {
    %c0_i32 = arith.constant 0 : i32
    %c0_i32_0 = arith.constant 0 : i32
    %c0_i32_1 = arith.constant 0 : i32
    return %c0_i32, %c0_i32_0 : i32, i32
  }
  func.func @transform_7(%arg0: i32) -> (i32, i32) {
    %c0_i32 = arith.constant 0 : i32
    %c0_i32_0 = arith.constant 0 : i32
    %c0_i32_1 = arith.constant 0 : i32
    return %c0_i32, %c0_i32_0 : i32, i32
  }
  func.func @transform_8(%arg0: i32) -> (i32, i32) {
    %c0_i32 = arith.constant 0 : i32
    %c0_i32_0 = arith.constant 0 : i32
    %c0_i32_1 = arith.constant 0 : i32
    return %c0_i32, %c0_i32_0 : i32, i32
  }
  func.func @transform_9(%arg0: i32) -> (i32, i32) {
    %c0_i32 = arith.constant 0 : i32
    %c0_i32_0 = arith.constant 0 : i32
    %c0_i32_1 = arith.constant 0 : i32
    return %c0_i32, %c0_i32_0 : i32, i32
  }
  func.func @transform_10(%arg0: i32) -> (i32, i32) {
    %c0_i32 = arith.constant 0 : i32
    %c0_i32_0 = arith.constant 0 : i32
    %c0_i32_1 = arith.constant 0 : i32
    return %c0_i32, %c0_i32_0 : i32, i32
  }
  func.func @transform_11(%arg0: i32) -> (i32, i32) {
    %c0_i32 = arith.constant 0 : i32
    %c0_i32_0 = arith.constant 0 : i32
    %c0_i32_1 = arith.constant 0 : i32
    return %c0_i32, %c0_i32_0 : i32, i32
  }
  func.func @transform_12(%arg0: i32) -> (i32, i32) {
    %c0_i32 = arith.constant 0 : i32
    %c0_i32_0 = arith.constant 0 : i32
    %c0_i32_1 = arith.constant 0 : i32
    return %c0_i32, %c0_i32_0 : i32, i32
  }
  func.func @transform_13(%arg0: i32) -> (i32, i32, i32) {
    %c0_i32 = arith.constant 0 : i32
    %c0_i32_0 = arith.constant 0 : i32
    %c0_i32_1 = arith.constant 0 : i32
    return %arg0, %c0_i32, %c0_i32_0 : i32, i32, i32
  }
}

</mosaic_0001>

<llo_original>
// kernel: inception_forward.1
$region0: #{inception_forward.1}
  #allocation0 [shape = 'u32[]', space=smem, size = 0x4, offset = 0x4, fixed_abs, tag = 'smem constant byte address 0x4 - core index']
  #allocation1 [shape = 'u32[144,128]{1,0:T(1,128)}', space=vmem, size = 0x12000, scoped, tag = 'internal scratch']
  #allocation2 [shape = 'f32[400,256]{1,0:T(8,128)}', space=vmem, size = 0x64000, scoped, tag = 'scratch operand']
  #allocation3 [shape = 'f32[144,256]{1,0:T(8,128)}', space=vmem, size = 0x24000, scoped, tag = 'scratch operand']
  #allocation4 [shape = 'f32[216,256]{1,0:T(8,128)}', space=vmem, size = 0x36000, scoped, tag = 'scratch operand']
  %s0 = inlined_call_operand.vmem [shape: f32[2,4,256], index: 0, kind: input, shape index: {}]
  %s1 = inlined_call_operand.vmem [shape: f32[9,256], index: 1, kind: input, shape index: {}]
  %s2 = inlined_call_operand.vmem [shape: f32[25,256], index: 2, kind: input, shape index: {}]
  %s3 = inlined_call_operand.vmem [shape: f32[48,4], index: 3, kind: input, shape index: {}]
  %s4 = inlined_call_operand.vmem [shape: f32[48,1], index: 4, kind: input, shape index: {}]
  %s5 = inlined_call_operand.vmem [shape: f32[24,4], index: 5, kind: input, shape index: {}]
  %s6 = inlined_call_operand.vmem [shape: f32[24,1], index: 6, kind: input, shape index: {}]
  %s7 = inlined_call_operand.vmem [shape: f32[24,400], index: 7, kind: input, shape index: {}]
  %s8 = inlined_call_operand.vmem [shape: f32[24,1], index: 8, kind: input, shape index: {}]
  %s9 = inlined_call_operand.vmem [shape: f32[24,144], index: 9, kind: input, shape index: {}]
  %s10 = inlined_call_operand.vmem [shape: f32[24,1], index: 10, kind: input, shape index: {}]
  %s11 = inlined_call_operand.vmem [shape: f32[24,216], index: 11, kind: input, shape index: {}]
  %s12 = inlined_call_operand.vmem [shape: f32[24,1], index: 12, kind: input, shape index: {}]
  %s13 = inlined_call_operand.vmem [shape: f32[2,88,256], index: 13, kind: output, shape index: {}]
  %s14 = sld [smem:[#allocation0]]
  $region85: #{inception_forward.1} parent=0
    _
  %s16 = ssub.s32 1, %s14
  %s17 = scalar_select 0, %s16, %s14
  loop: start=0, step=1, limit=4
  $region2: #{inception_forward.1} parent=0 // loop_pre_header
    _
  $region3: #{inception_forward.1} parent=0 // loop_header
    %s19 = sphi 0, %s23
    %p20 = scmp.ge.s32.totalorder %s19, 4
    %s29 = sphi 0, %s31
    %s32 = sphi 0, %s29
    %s33 = sphi 0, %s32
    %s49 = sphi 0, %s33
    %s53 = sphi 0, %s53
    %s55 = sphi 0, %s53
    %s56 = sphi 0, %s55
    %s70 = sphi 0, %s56
    %s74 = sphi 0, %s74
    %s76 = sphi 0, %s74
    %s77 = sphi 0, %s76
    %s91 = sphi 0, %s77
    %s95 = sphi 0, %s95
    %s97 = sphi 0, %s95
    %s98 = sphi 0, %s97
    %s112 = sphi 0, %s98
    %s116 = sphi 0, %s116
    %s118 = sphi 0, %s116
    %s119 = sphi 0, %s118
    %s133 = sphi 0, %s119
    %s137 = sphi 0, %s137
    %s139 = sphi 0, %s137
    %s140 = sphi 0, %s139
    %s154 = sphi 0, %s140
    %s158 = sphi 0, %s158
    %s160 = sphi 0, %s158
    %s161 = sphi 0, %s160
    %s175 = sphi 0, %s161
    %s179 = sphi 0, %s179
    %s181 = sphi 0, %s179
    %s182 = sphi 0, %s181
    %s196 = sphi 0, %s182
    %s200 = sphi 0, %s200
    %s202 = sphi 0, %s200
    %s203 = sphi 0, %s202
    %s217 = sphi 0, %s203
    %s221 = sphi 0, %s221
    %s223 = sphi 0, %s221
    %s224 = sphi 0, %s223
    %s238 = sphi 0, %s224
    %s242 = sphi 0, %s242
    %s244 = sphi 0, %s242
    %s245 = sphi 0, %s244
    %s259 = sphi 0, %s245
    %s263 = sphi 0, %s263
    %s265 = sphi 0, %s263
    %s266 = sphi 0, %s265
    %s280 = sphi 0, %s266
    %s284 = sphi 0, %s284
    %s286 = sphi 0, %s284
    %s287 = sphi 0, %s286
    %s301 = sphi 0, %s287
    %s307 = sphi 0, %s309
    %s310 = sphi 0, %s307
    %s311 = sphi 0, %s310
    %s327 = sphi 0, %s311
  $region4: #{inception_forward.1} parent=0 // loop_header_branch
    %22 = sbr.rel (%p20) target = $region8
  $region5: #{inception_forward.1} parent=0 // loop_body
    %s24 = ssub.s32 %s19, 1
    %s25 = ssub.s32 %s19, 2
    %s26 = sadd.s32 %s19, 1
    %s27 = ssub.s32 %s19, %s26
    %p28 = scmp.eq.s32.totalorder %s27, 0
    %s30 = sadd.s32 %s29, 1
    %s31 = scalar_select %p28, %s29, %s30
    %p34 = pneg %p28
    %p35 = scmp.eq.s32.totalorder %s19, 1
    %p36 = por %p34, %p35
    %p37 = scmp.ne.s32.totalorder %s29, %s32
    %p38 = scmp.eq.s32.totalorder %s19, 0
    %p39 = por %p37, %p38
    %p40 = scmp.ne.s32.totalorder %s29, %s32
    %p41 = scmp.eq.s32.totalorder %s24, 1
    %p42 = por %p40, %p41
    %p43 = scmp.ne.s32.totalorder %s32, %s33
    %p44 = scmp.eq.s32.totalorder %s24, 0
    %p45 = por %p43, %p44
    %p46 = scmp.ne.s32.totalorder %s32, %s33
    %p47 = scmp.eq.s32.totalorder %s25, 1
    %p48 = por %p46, %p47
    %p50 = scmp.ne.s32.totalorder %s33, %s49
    %p51 = scmp.eq.s32.totalorder %s25, 0
    %p52 = por %p50, %p51
    %s54 = sadd.s32 %s53, 1
    %p57 = scmp.eq.s32.totalorder %s19, 1
    %p58 = scmp.ne.s32.totalorder %s53, %s55
    %p59 = scmp.eq.s32.totalorder %s19, 0
    %p60 = por %p58, %p59
    %p61 = scmp.ne.s32.totalorder %s53, %s55
    %p62 = scmp.eq.s32.totalorder %s24, 1
    %p63 = por %p61, %p62
    %p64 = scmp.ne.s32.totalorder %s55, %s56
    %p65 = scmp.eq.s32.totalorder %s24, 0
    %p66 = por %p64, %p65
    %p67 = scmp.ne.s32.totalorder %s55, %s56
    %p68 = scmp.eq.s32.totalorder %s25, 1
    %p69 = por %p67, %p68
    %p71 = scmp.ne.s32.totalorder %s56, %s70
    %p72 = scmp.eq.s32.totalorder %s25, 0
    %p73 = por %p71, %p72
    %s75 = sadd.s32 %s74, 1
    %p78 = scmp.eq.s32.totalorder %s19, 1
    %p79 = scmp.ne.s32.totalorder %s74, %s76
    %p80 = scmp.eq.s32.totalorder %s19, 0
    %p81 = por %p79, %p80
    %p82 = scmp.ne.s32.totalorder %s74, %s76
    %p83 = scmp.eq.s32.totalorder %s24, 1
    %p84 = por %p82, %p83
    %p85 = scmp.ne.s32.totalorder %s76, %s77
    %p86 = scmp.eq.s32.totalorder %s24, 0
    %p87 = por %p85, %p86
    %p88 = scmp.ne.s32.totalorder %s76, %s77
    %p89 = scmp.eq.s32.totalorder %s25, 1
    %p90 = por %p88, %p89
    %p92 = scmp.ne.s32.totalorder %s77, %s91
    %p93 = scmp.eq.s32.totalorder %s25, 0
    %p94 = por %p92, %p93
    %s96 = sadd.s32 %s95, 1
    %p99 = scmp.eq.s32.totalorder %s19, 1
    %p100 = scmp.ne.s32.totalorder %s95, %s97
    %p101 = scmp.eq.s32.totalorder %s19, 0
    %p102 = por %p100, %p101
    %p103 = scmp.ne.s32.totalorder %s95, %s97
    %p104 = scmp.eq.s32.totalorder %s24, 1
    %p105 = por %p103, %p104
    %p106 = scmp.ne.s32.totalorder %s97, %s98
    %p107 = scmp.eq.s32.totalorder %s24, 0
    %p108 = por %p106, %p107
    %p109 = scmp.ne.s32.totalorder %s97, %s98
    %p110 = scmp.eq.s32.totalorder %s25, 1
    %p111 = por %p109, %p110
    %p113 = scmp.ne.s32.totalorder %s98, %s112
    %p114 = scmp.eq.s32.totalorder %s25, 0
    %p115 = por %p113, %p114
    %s117 = sadd.s32 %s116, 1
    %p120 = scmp.eq.s32.totalorder %s19, 1
    %p121 = scmp.ne.s32.totalorder %s116, %s118
    %p122 = scmp.eq.s32.totalorder %s19, 0
    %p123 = por %p121, %p122
    %p124 = scmp.ne.s32.totalorder %s116, %s118
    %p125 = scmp.eq.s32.totalorder %s24, 1
    %p126 = por %p124, %p125
    %p127 = scmp.ne.s32.totalorder %s118, %s119
    %p128 = scmp.eq.s32.totalorder %s24, 0
    %p129 = por %p127, %p128
    %p130 = scmp.ne.s32.totalorder %s118, %s119
    %p131 = scmp.eq.s32.totalorder %s25, 1
    %p132 = por %p130, %p131
    %p134 = scmp.ne.s32.totalorder %s119, %s133
    %p135 = scmp.eq.s32.totalorder %s25, 0
    %p136 = por %p134, %p135
    %s138 = sadd.s32 %s137, 1
    %p141 = scmp.eq.s32.totalorder %s19, 1
    %p142 = scmp.ne.s32.totalorder %s137, %s139
    %p143 = scmp.eq.s32.totalorder %s19, 0
    %p144 = por %p142, %p143
    %p145 = scmp.ne.s32.totalorder %s137, %s139
    %p146 = scmp.eq.s32.totalorder %s24, 1
    %p147 = por %p145, %p146
    %p148 = scmp.ne.s32.totalorder %s139, %s140
    %p149 = scmp.eq.s32.totalorder %s24, 0
    %p150 = por %p148, %p149
    %p151 = scmp.ne.s32.totalorder %s139, %s140
    %p152 = scmp.eq.s32.totalorder %s25, 1
    %p153 = por %p151, %p152
    %p155 = scmp.ne.s32.totalorder %s140, %s154
    %p156 = scmp.eq.s32.totalorder %s25, 0
    %p157 = por %p155, %p156
    %s159 = sadd.s32 %s158, 1
    %p162 = scmp.eq.s32.totalorder %s19, 1
    %p163 = scmp.ne.s32.totalorder %s158, %s160
    %p164 = scmp.eq.s32.totalorder %s19, 0
    %p165 = por %p163, %p164
    %p166 = scmp.ne.s32.totalorder %s158, %s160
    %p167 = scmp.eq.s32.totalorder %s24, 1
    %p168 = por %p166, %p167
    %p169 = scmp.ne.s32.totalorder %s160, %s161
    %p170 = scmp.eq.s32.totalorder %s24, 0
    %p171 = por %p169, %p170
    %p172 = scmp.ne.s32.totalorder %s160, %s161
    %p173 = scmp.eq.s32.totalorder %s25, 1
    %p174 = por %p172, %p173
    %p176 = scmp.ne.s32.totalorder %s161, %s175
    %p177 = scmp.eq.s32.totalorder %s25, 0
    %p178 = por %p176, %p177
    %s180 = sadd.s32 %s179, 1
    %p183 = scmp.eq.s32.totalorder %s19, 1
    %p184 = scmp.ne.s32.totalorder %s179, %s181
    %p185 = scmp.eq.s32.totalorder %s19, 0
    %p186 = por %p184, %p185
    %p187 = scmp.ne.s32.totalorder %s179, %s181
    %p188 = scmp.eq.s32.totalorder %s24, 1
    %p189 = por %p187, %p188
    %p190 = scmp.ne.s32.totalorder %s181, %s182
    %p191 = scmp.eq.s32.totalorder %s24, 0
    %p192 = por %p190, %p191
    %p193 = scmp.ne.s32.totalorder %s181, %s182
    %p194 = scmp.eq.s32.totalorder %s25, 1
    %p195 = por %p193, %p194
    %p197 = scmp.ne.s32.totalorder %s182, %s196
    %p198 = scmp.eq.s32.totalorder %s25, 0
    %p199 = por %p197, %p198
    %s201 = sadd.s32 %s200, 1
    %p204 = scmp.eq.s32.totalorder %s19, 1
    %p205 = scmp.ne.s32.totalorder %s200, %s202
    %p206 = scmp.eq.s32.totalorder %s19, 0
    %p207 = por %p205, %p206
    %p208 = scmp.ne.s32.totalorder %s200, %s202
    %p209 = scmp.eq.s32.totalorder %s24, 1
    %p210 = por %p208, %p209
    %p211 = scmp.ne.s32.totalorder %s202, %s203
    %p212 = scmp.eq.s32.totalorder %s24, 0
    %p213 = por %p211, %p212
    %p214 = scmp.ne.s32.totalorder %s202, %s203
    %p215 = scmp.eq.s32.totalorder %s25, 1
    %p216 = por %p214, %p215
    %p218 = scmp.ne.s32.totalorder %s203, %s217
    %p219 = scmp.eq.s32.totalorder %s25, 0
    %p220 = por %p218, %p219
    %s222 = sadd.s32 %s221, 1
    %p225 = scmp.eq.s32.totalorder %s19, 1
    %p226 = scmp.ne.s32.totalorder %s221, %s223
    %p227 = scmp.eq.s32.totalorder %s19, 0
    %p228 = por %p226, %p227
    %p229 = scmp.ne.s32.totalorder %s221, %s223
    %p230 = scmp.eq.s32.totalorder %s24, 1
    %p231 = por %p229, %p230
    %p232 = scmp.ne.s32.totalorder %s223, %s224
    %p233 = scmp.eq.s32.totalorder %s24, 0
    %p234 = por %p232, %p233
    %p235 = scmp.ne.s32.totalorder %s223, %s224
    %p236 = scmp.eq.s32.totalorder %s25, 1
    %p237 = por %p235, %p236
    %p239 = scmp.ne.s32.totalorder %s224, %s238
    %p240 = scmp.eq.s32.totalorder %s25, 0
    %p241 = por %p239, %p240
    %s243 = sadd.s32 %s242, 1
    %p246 = scmp.eq.s32.totalorder %s19, 1
    %p247 = scmp.ne.s32.totalorder %s242, %s244
    %p248 = scmp.eq.s32.totalorder %s19, 0
    %p249 = por %p247, %p248
    %p250 = scmp.ne.s32.totalorder %s242, %s244
    %p251 = scmp.eq.s32.totalorder %s24, 1
    %p252 = por %p250, %p251
    %p253 = scmp.ne.s32.totalorder %s244, %s245
    %p254 = scmp.eq.s32.totalorder %s24, 0
    %p255 = por %p253, %p254
    %p256 = scmp.ne.s32.totalorder %s244, %s245
    %p257 = scmp.eq.s32.totalorder %s25, 1
    %p258 = por %p256, %p257
    %p260 = scmp.ne.s32.totalorder %s245, %s259
    %p261 = scmp.eq.s32.totalorder %s25, 0
    %p262 = por %p260, %p261
    %s264 = sadd.s32 %s263, 1
    %p267 = scmp.eq.s32.totalorder %s19, 1
    %p268 = scmp.ne.s32.totalorder %s263, %s265
    %p269 = scmp.eq.s32.totalorder %s19, 0
    %p270 = por %p268, %p269
    %p271 = scmp.ne.s32.totalorder %s263, %s265
    %p272 = scmp.eq.s32.totalorder %s24, 1
    %p273 = por %p271, %p272
    %p274 = scmp.ne.s32.totalorder %s265, %s266
    %p275 = scmp.eq.s32.totalorder %s24, 0
    %p276 = por %p274, %p275
    %p277 = scmp.ne.s32.totalorder %s265, %s266
    %p278 = scmp.eq.s32.totalorder %s25, 1
    %p279 = por %p277, %p278
    %p281 = scmp.ne.s32.totalorder %s266, %s280
    %p282 = scmp.eq.s32.totalorder %s25, 0
    %p283 = por %p281, %p282
    %s285 = sadd.s32 %s284, 1
    %p288 = scmp.eq.s32.totalorder %s19, 1
    %p289 = scmp.ne.s32.totalorder %s284, %s286
    %p290 = scmp.eq.s32.totalorder %s19, 0
    %p291 = por %p289, %p290
    %p292 = scmp.ne.s32.totalorder %s284, %s286
    %p293 = scmp.eq.s32.totalorder %s24, 1
    %p294 = por %p292, %p293
    %p295 = scmp.ne.s32.totalorder %s286, %s287
    %p296 = scmp.eq.s32.totalorder %s24, 0
    %p297 = por %p295, %p296
    %p298 = scmp.ne.s32.totalorder %s286, %s287
    %p299 = scmp.eq.s32.totalorder %s25, 1
    %p300 = por %p298, %p299
    %p302 = scmp.ne.s32.totalorder %s287, %s301
    %p303 = scmp.eq.s32.totalorder %s25, 0
    %p304 = por %p302, %p303
    %s305 = ssub.s32 %s19, %s26
    %p306 = scmp.eq.s32.totalorder %s305, 0
    %s308 = sadd.s32 %s307, 1
    %s309 = scalar_select %p306, %s307, %s308
    %p312 = pneg %p306
    %p313 = scmp.eq.s32.totalorder %s19, 1
    %p314 = por %p312, %p313
    %p315 = scmp.ne.s32.totalorder %s307, %s310
    %p316 = scmp.eq.s32.totalorder %s19, 0
    %p317 = por %p315, %p316
    %p318 = scmp.ne.s32.totalorder %s307, %s310
    %p319 = scmp.eq.s32.totalorder %s24, 1
    %p320 = por %p318, %p319
    %p321 = scmp.ne.s32.totalorder %s310, %s311
    %p322 = scmp.eq.s32.totalorder %s24, 0
    %p323 = por %p321, %p322
    %p324 = scmp.ne.s32.totalorder %s310, %s311
    %p325 = scmp.eq.s32.totalorder %s25, 1
    %p326 = por %p324, %p325
    %p328 = scmp.ne.s32.totalorder %s311, %s327
    %p329 = scmp.eq.s32.totalorder %s25, 0
    %p330 = por %p328, %p329
    %p331 = scmp.le.s32.totalorder 1, %s19
    %p332 = scmp.lt.s32.totalorder %s19, 3
    %p333 = pnand %p331, %p332
    %p334 = pneg %p333
    // Predicated region
    $region9: #{inception_forward.1} parent=5 // pred_check
      _
    $region10: #{inception_forward.1} parent=5 // pred_check_branch
      %336 = sbr.rel (%p333) target = $region12
    $region11: #{inception_forward.1} parent=5 // pred_region
      %s337 = ssub.s32 %s19, 1
      // Predicated region
      $region13: #{inception_forward.1} parent=11 // pred_check
        %p338 = pneg %p66
      $region14: #{inception_forward.1} parent=11 // pred_check_branch
        %340 = sbr.rel (%p338) target = $region16
      $region15: #{inception_forward.1} parent=11 // pred_region
        _
      $region16: #{inception_forward.1} parent=11 // pred_fallthru
        _
      // Predicated region
      $region17: #{inception_forward.1} parent=11 // pred_check
        %p341 = pneg %p87
      $region18: #{inception_forward.1} parent=11 // pred_check_branch
        %343 = sbr.rel (%p341) target = $region20
      $region19: #{inception_forward.1} parent=11 // pred_region
        _
      $region20: #{inception_forward.1} parent=11 // pred_fallthru
        _
      // Predicated region
      $region21: #{inception_forward.1} parent=11 // pred_check
        %p344 = pneg %p108
      $region22: #{inception_forward.1} parent=11 // pred_check_branch
        %346 = sbr.rel (%p344) target = $region24
      $region23: #{inception_forward.1} parent=11 // pred_region
        _
      $region24: #{inception_forward.1} parent=11 // pred_fallthru
        _
      // Predicated region
      $region25: #{inception_forward.1} parent=11 // pred_check
        %p347 = pneg %p129
      $region26: #{inception_forward.1} parent=11 // pred_check_branch
        %349 = sbr.rel (%p347) target = $region28
      $region27: #{inception_forward.1} parent=11 // pred_region
        _
      $region28: #{inception_forward.1} parent=11 // pred_fallthru
        _
      // Predicated region
      $region29: #{inception_forward.1} parent=11 // pred_check
        %p350 = pneg %p150
      $region30: #{inception_forward.1} parent=11 // pred_check_branch
        %352 = sbr.rel (%p350) target = $region32
      $region31: #{inception_forward.1} parent=11 // pred_region
        _
      $region32: #{inception_forward.1} parent=11 // pred_fallthru
        _
      // Predicated region
      $region33: #{inception_forward.1} parent=11 // pred_check
        %p353 = pneg %p171
      $region34: #{inception_forward.1} parent=11 // pred_check_branch
        %355 = sbr.rel (%p353) target = $region36
      $region35: #{inception_forward.1} parent=11 // pred_region
        _
      $region36: #{inception_forward.1} parent=11 // pred_fallthru
        _
      // Predicated region
      $region37: #{inception_forward.1} parent=11 // pred_check
        %p356 = pneg %p192
      $region38: #{inception_forward.1} parent=11 // pred_check_branch
        %358 = sbr.rel (%p356) target = $region40
      $region39: #{inception_forward.1} parent=11 // pred_region
        _
      $region40: #{inception_forward.1} parent=11 // pred_fallthru
        _
      // Predicated region
      $region41: #{inception_forward.1} parent=11 // pred_check
        %p359 = pneg %p213
      $region42: #{inception_forward.1} parent=11 // pred_check_branch
        %361 = sbr.rel (%p359) target = $region44
      $region43: #{inception_forward.1} parent=11 // pred_region
        _
      $region44: #{inception_forward.1} parent=11 // pred_fallthru
        _
      // Predicated region
      $region45: #{inception_forward.1} parent=11 // pred_check
        %p362 = pneg %p234
      $region46: #{inception_forward.1} parent=11 // pred_check_branch
        %364 = sbr.rel (%p362) target = $region48
      $region47: #{inception_forward.1} parent=11 // pred_region
        _
      $region48: #{inception_forward.1} parent=11 // pred_fallthru
        _
      // Predicated region
      $region49: #{inception_forward.1} parent=11 // pred_check
        %p365 = pneg %p255
      $region50: #{inception_forward.1} parent=11 // pred_check_branch
        %367 = sbr.rel (%p365) target = $region52
      $region51: #{inception_forward.1} parent=11 // pred_region
        _
      $region52: #{inception_forward.1} parent=11 // pred_fallthru
        _
      // Predicated region
      $region53: #{inception_forward.1} parent=11 // pred_check
        %p368 = pneg %p276
      $region54: #{inception_forward.1} parent=11 // pred_check_branch
        %370 = sbr.rel (%p368) target = $region56
      $region55: #{inception_forward.1} parent=11 // pred_region
        _
      $region56: #{inception_forward.1} parent=11 // pred_fallthru
        _
      // Predicated region
      $region57: #{inception_forward.1} parent=11 // pred_check
        %p371 = pneg %p297
      $region58: #{inception_forward.1} parent=11 // pred_check_branch
        %373 = sbr.rel (%p371) target = $region60
      $region59: #{inception_forward.1} parent=11 // pred_region
        _
      $region60: #{inception_forward.1} parent=11 // pred_fallthru
        _
    $region12: #{inception_forward.1} parent=5 // pred_fallthru
      _
    %p374 = scmp.lt.s32.totalorder %s19, 2
    // Predicated region
    $region61: #{inception_forward.1} parent=5 // pred_check
      %p375 = pneg %p374
    $region62: #{inception_forward.1} parent=5 // pred_check_branch
      %377 = sbr.rel (%p375) target = $region64
    $region63: #{inception_forward.1} parent=5 // pred_region
      // Predicated region
      $region65: #{inception_forward.1} parent=63 // pred_check
        %p378 = pneg %p39
      $region66: #{inception_forward.1} parent=63 // pred_check_branch
        %380 = sbr.rel (%p378) target = $region68
      $region67: #{inception_forward.1} parent=63 // pred_region
        %p381 = scmp.lt.s32.totalorder %s19, 1
        %s382 = scalar_select %p381, %s19, 1
        %s383 = smul.addr %s382, 2
        %s384 = smul.addr %s383, 4
        %s385 = scalar_lea.vmem %s0, %s384
      $region68: #{inception_forward.1} parent=63 // pred_fallthru
        _
    $region64: #{inception_forward.1} parent=5 // pred_fallthru
      _
    %p386 = scmp.le.s32.totalorder 1, %s19
    %p387 = scmp.lt.s32.totalorder %s19, 3
    %p388 = pnand %p386, %p387
    %p389 = pneg %p388
    // Predicated region
    $region69: #{inception_forward.1} parent=5 // pred_check
      _
    $region70: #{inception_forward.1} parent=5 // pred_check_branch
      %391 = sbr.rel (%p388) target = $region72
    $region71: #{inception_forward.1} parent=5 // pred_region
      %s392 = ssub.s32 %s19, 1
      %p393 = scmp.lt.s32.totalorder %s24, 1
      %s394 = scalar_select %p393, %s24, 1
      %s395 = smul.addr %s394, 2
      %s396 = smul.addr %s395, 4
      %s397 = scalar_lea.vmem %s0, %s396
      %p398 = pneg %p45
      %p399 = pneg %p42
      %p400 = pneg %p66
      %p401 = pneg %p63
      %p402 = pneg %p87
      %p403 = pneg %p84
      %p404 = pneg %p108
      %p405 = pneg %p105
      %p406 = pneg %p129
      %p407 = pneg %p126
      %p408 = pneg %p150
      %p409 = pneg %p147
      %p410 = pneg %p171
      %p411 = pneg %p168
      %p412 = pneg %p192
      %p413 = pneg %p189
      %p414 = pneg %p213
      %p415 = pneg %p210
      %p416 = pneg %p234
      %p417 = pneg %p231
      %p418 = pneg %p255
      %p419 = pneg %p252
      %p420 = pneg %p276
      %p421 = pneg %p273
      %p422 = pneg %p297
      %p423 = pneg %p294
      %p424 = pneg %p323
      %p425 = pneg %p320
      %p426 = scmp.lt.s32.totalorder %s24, 1
      %s427 = scalar_select %p426, %s24, 1
      %s428 = smul.addr %s427, 22
      %s429 = smul.addr %s428, 8
      %s430 = scalar_lea.vmem %s13, %s429
      %p431 = scmp.lt.s32.totalorder %s24, 1
      %s432 = scalar_select %p431, %s24, 1
      %s433 = smul.addr %s432, 2
      %s434 = smul.addr %s433, 4
      %s435 = scalar_lea.vmem %s0, %s434
      %p436 = scmp.lt.s32.totalorder %s24, 1
      %s437 = scalar_select %p436, %s24, 1
      %s438 = smul.addr %s437, 22
      %s439 = smul.addr %s438, 8
      %s440 = scalar_lea.vmem %s13, %s439
      %v441 = vld [vmem:[%s435] sm:$0xff]
      %v442 = vld [vmem:[%s3] sm:$0xff]
      %v443 = vld [vmem:[%s3 + $0x8] sm:$0xff]
      %v444 = vld [vmem:[%s3 + $0x10] sm:$0xff]
      %v445 = vld [vmem:[%s3 + $0x18] sm:$0xff]
      %v446 = vld [vmem:[%s3 + $0x20] sm:$0xff]
      %v447 = vld [vmem:[%s3 + $0x28] sm:$0xff]
      %v448 = vld [vmem:[%s4] sm:$0xff]
      %v449 = vld [vmem:[%s4 + $0x8] sm:$0xff]
      %v450 = vld [vmem:[%s4 + $0x10] sm:$0xff]
      %v451 = vld [vmem:[%s4 + $0x18] sm:$0xff]
      %v452 = vld [vmem:[%s4 + $0x20] sm:$0xff]
      %v453 = vld [vmem:[%s4 + $0x28] sm:$0xff]
      %455 = vset.pattern.permute.xlu0 0
      %456 = vperm.xlu0 %455, %v448
      %v457 = vpop.permute.xlu0 %456
      %460 = vset.pattern.permute.xlu0 0
      %461 = vperm.xlu0 %460, %v449
      %v462 = vpop.permute.xlu0 %461
      %465 = vset.pattern.permute.xlu0 0
      %466 = vperm.xlu0 %465, %v450
      %v467 = vpop.permute.xlu0 %466
      %470 = vset.pattern.permute.xlu0 0
      %471 = vperm.xlu0 %470, %v451
      %v472 = vpop.permute.xlu0 %471
      %475 = vset.pattern.permute.xlu0 0
      %476 = vperm.xlu0 %475, %v452
      %v477 = vpop.permute.xlu0 %476
      %480 = vset.pattern.permute.xlu0 0
      %481 = vperm.xlu0 %480, %v453
      %v482 = vpop.permute.xlu0 %481
      %v485 = vcombine.high %v441, %v441
      %vm486 = vcmask 31744
      %v488 = vsel %vm486, %v442, 0
      %v491 = vsel %vm486, %v443, 0
      %v494 = vsel %vm486, %v444, 0
      %v497 = vsel %vm486, %v445, 0
      %v500 = vsel %vm486, %v446, 0
      %v503 = vsel %vm486, %v447, 0
      %vm505 = vcmask 1043456
      %v506 = vsel %vm505, %v441, 0
      %v508 = vsel %vm505, %v485, 0
      %510 = vmatprep.subr.mxu0 %v508
      %511 = vmatpush1.msra.mxu0 %v506
      %512 = vmatprep.subr.mxu0 0.0
      %513 = vmatpush1.msra.mxu0 0.0
      %514 = vmatprep.subr.mxu0 0.0
      %515 = vmatpush1.msra.mxu0 0.0
      %516 = vmatprep.subr.mxu0 0.0
      %517 = vmatpush1.msra.mxu0 0.0
      %518 = vmatprep.subr.mxu0 0.0
      %519 = vmatpush1.msra.mxu0 0.0
      %520 = vmatprep.subr.mxu0 0.0
      %521 = vmatpush1.msra.mxu0 0.0
      %522 = vmatprep.subr.mxu0 0.0
      %523 = vmatpush1.msra.mxu0 0.0
      %524 = vmatprep.subr.mxu0 0.0
      %525 = vmatpush1.msra.mxu0 0.0
      %526 = vmatprep.subr.mxu0 0.0
      %527 = vmatpush1.msra.mxu0 0.0
      %528 = vmatprep.subr.mxu0 0.0
      %529 = vmatpush1.msra.mxu0 0.0
      %530 = vmatprep.subr.mxu0 0.0
      %531 = vmatpush1.msra.mxu0 0.0
      %532 = vmatprep.subr.mxu0 0.0
      %533 = vmatpush1.msra.mxu0 0.0
      %534 = vmatprep.subr.mxu0 0.0
      %535 = vmatpush1.msra.mxu0 0.0
      %536 = vmatprep.subr.mxu0 0.0
      %537 = vmatpush1.msra.mxu0 0.0
      %538 = vmatprep.subr.mxu0 0.0
      %539 = vmatpush1.msra.mxu0 0.0
      %540 = vmatprep.subr.mxu0 0.0
      %541 = vmatpush1.msra.mxu0 0.0
      %542 = vmatprep.subr.mxu0 0.0
      %543 = vmatpush1.msra.mxu0 0.0
      %544 = vmatprep.subr.mxu0 0.0
      %545 = vmatpush1.msra.mxu0 0.0
      %546 = vmatprep.subr.mxu0 0.0
      %547 = vmatpush1.msra.mxu0 0.0
      %548 = vmatprep.subr.mxu0 0.0
      %549 = vmatpush1.msra.mxu0 0.0
      %550 = vmatprep.subr.mxu0 0.0
      %551 = vmatpush1.msra.mxu0 0.0
      %552 = vmatprep.subr.mxu0 0.0
      %553 = vmatpush1.msra.mxu0 0.0
      %554 = vmatprep.subr.mxu0 0.0
      %555 = vmatpush1.msra.mxu0 0.0
      %556 = vmatprep.subr.mxu0 0.0
      %557 = vmatpush1.msra.mxu0 0.0
      %558 = vmatprep.subr.mxu0 0.0
      %559 = vmatpush1.msra.mxu0 0.0
      %560 = vmatprep.subr.mxu0 0.0
      %561 = vmatpush1.msra.mxu0 0.0
      %562 = vmatprep.subr.mxu0 0.0
      %563 = vmatpush1.msra.mxu0 0.0
      %564 = vmatprep.subr.mxu0 0.0
      %565 = vmatpush1.msra.mxu0 0.0
      %566 = vmatprep.subr.mxu0 0.0
      %567 = vmatpush1.msra.mxu0 0.0
      %568 = vmatprep.subr.mxu0 0.0
      %569 = vmatpush1.msra.mxu0 0.0
      %570 = vmatprep.subr.mxu0 0.0
      %571 = vmatpush1.msra.mxu0 0.0
      %572 = vmatprep.subr.mxu0 0.0
      %573 = vmatpush1.msra.mxu0 0.0
      %574 = vmatprep.mubr.f32.mxu0 0.0
      %575 = vmatmul.mubr.f32.gmra.mrb[0].mxu0 %v488
      %v576 = vpop.f32.mrb[0].mxu0
      %v577 = vadd.f32 %v457, %v576
      %v578 = vpop.f32.mrb[0].mxu0
      %v579 = vadd.f32 %v457, %v578
      %580 = vmatprep.mubr.f32.mxu0 0.0
      %581 = vmatmul.mubr.f32.gmra.mrb[0].mxu0 %v491
      %v582 = vpop.f32.mrb[0].mxu0
      %v583 = vadd.f32 %v462, %v582
      %v584 = vpop.f32.mrb[0].mxu0
      %v585 = vadd.f32 %v462, %v584
      %586 = vmatprep.mubr.f32.mxu0 0.0
      %587 = vmatmul.mubr.f32.gmra.mrb[0].mxu0 %v494
      %v588 = vpop.f32.mrb[0].mxu0
      %v589 = vadd.f32 %v467, %v588
      %v590 = vpop.f32.mrb[0].mxu0
      %v591 = vadd.f32 %v467, %v590
      %592 = vmatprep.mubr.f32.mxu0 0.0
      %593 = vmatmul.mubr.f32.gmra.mrb[0].mxu0 %v497
      %v594 = vpop.f32.mrb[0].mxu0
      %v595 = vadd.f32 %v472, %v594
      %v596 = vpop.f32.mrb[0].mxu0
      %v597 = vadd.f32 %v472, %v596
      %598 = vmatprep.mubr.f32.mxu0 0.0
      %599 = vmatmul.mubr.f32.gmra.mrb[0].mxu0 %v500
      %v600 = vpop.f32.mrb[0].mxu0
      %v601 = vadd.f32 %v477, %v600
      %v602 = vpop.f32.mrb[0].mxu0
      %v603 = vadd.f32 %v477, %v602
      %604 = vmatprep.mubr.f32.mxu0 0.0
      %605 = vmatmul.mubr.f32.gmra.mrb[0].mxu0 %v503
      %v606 = vpop.f32.mrb[0].mxu0
      %v607 = vadd.f32 %v482, %v606
      %v608 = vpop.f32.mrb[0].mxu0
      %v609 = vadd.f32 %v482, %v608
      %610 = vdwg.mxu0
      %611 = vst [vmem:[%s440 + $0x30] sm:$0xff] %v577
      %612 = vst [vmem:[%s440 + $0x38] sm:$0xff] %v579
      %613 = vst [vmem:[%s440 + $0x40] sm:$0xff] %v583
      %614 = vst [vmem:[%s440 + $0x48] sm:$0xff] %v585
      %616 = vrot.lane.b32.xlu0 %v441, 17
      %v617 = vpop.permute.xlu0 %616
      %618 = vrot.lane.b32.xlu0 %v485, 17
      %v619 = vpop.permute.xlu0 %618
      %v620 = vlaneseq
      %v621 = vand.u32 %v620, 127
      %vm622 = vcmp.lt.s32.totalorder %v621, 17
      %v623 = vsel %vm622, %v617, %v619
      %v624 = vsel %vm622, %v619, %v617
      %v625 = vld [vmem:[%s1] ss:$8 sm:$0x3]
      %v627 = vlaneseq
      %v628 = vshrl.u32 %v627, 7
      %v629 = vsub.s32 0, %v628
      %v630 = vrot.slane %v625, %v629
      %v631 = vlaneseq
      %v632 = vshrl.u32 %v631, 7
      %v633 = vsub.s32 1, %v632
      %v634 = vrot.slane %v625, %v633
      %v637 = vmul.f32 %v624, %v630
      %v638 = vmul.f32 %v623, %v634
      %v641 = vcombine.low %v637, %v638
      %v643 = vadd.f32 %v441, %v641
      %644 = vrot.lane.b32.xlu0 %v441, 16
      %v645 = vpop.permute.xlu0 %644
      %646 = vrot.lane.b32.xlu0 %v485, 16
      %v647 = vpop.permute.xlu0 %646
      %vm648 = vcmp.lt.s32.totalorder %v621, 16
      %v649 = vsel %vm648, %v645, %v647
      %v650 = vsel %vm648, %v647, %v645
      %s651 = scalar_lea.vmem %s1, 1
      %v652 = vld [vmem:[%s651] ss:$8 sm:$0x3]
      %v654 = vlaneseq
      %v655 = vshrl.u32 %v654, 7
      %v656 = vsub.s32 0, %v655
      %v657 = vrot.slane %v652, %v656
      %v658 = vlaneseq
      %v659 = vshrl.u32 %v658, 7
      %v660 = vsub.s32 1, %v659
      %v661 = vrot.slane %v652, %v660
      %v664 = vmul.f32 %v650, %v657
      %v665 = vmul.f32 %v649, %v661
      %v668 = vcombine.low %v664, %v665
      %v670 = vadd.f32 %v643, %v668
      %671 = vrot.lane.b32.xlu0 %v441, 15
      %v672 = vpop.permute.xlu0 %671
      %673 = vrot.lane.b32.xlu0 %v485, 15
      %v674 = vpop.permute.xlu0 %673
      %vm675 = vcmp.lt.s32.totalorder %v621, 15
      %v676 = vsel %vm675, %v672, %v674
      %v677 = vsel %vm675, %v674, %v672
      %s678 = scalar_lea.vmem %s1, 2
      %v679 = vld [vmem:[%s678] ss:$8 sm:$0x3]
      %v681 = vlaneseq
      %v682 = vshrl.u32 %v681, 7
      %v683 = vsub.s32 0, %v682
      %v684 = vrot.slane %v679, %v683
      %v685 = vlaneseq
      %v686 = vshrl.u32 %v685, 7
      %v687 = vsub.s32 1, %v686
      %v688 = vrot.slane %v679, %v687
      %v691 = vmul.f32 %v677, %v684
      %v692 = vmul.f32 %v676, %v688
      %v695 = vcombine.low %v691, %v692
      %v697 = vadd.f32 %v670, %v695
      %698 = vrot.lane.b32.xlu0 %v441, 1
      %v699 = vpop.permute.xlu0 %698
      %700 = vrot.lane.b32.xlu0 %v485, 1
      %v701 = vpop.permute.xlu0 %700
      %vm702 = vcmp.lt.s32.totalorder %v621, 1
      %v703 = vsel %vm702, %v699, %v701
      %v704 = vsel %vm702, %v701, %v699
      %s705 = scalar_lea.vmem %s1, 3
      %v706 = vld [vmem:[%s705] ss:$8 sm:$0x3]
      %v708 = vlaneseq
      %v709 = vshrl.u32 %v708, 7
      %v710 = vsub.s32 0, %v709
      %v711 = vrot.slane %v706, %v710
      %v712 = vlaneseq
      %v713 = vshrl.u32 %v712, 7
      %v714 = vsub.s32 1, %v713
      %v715 = vrot.slane %v706, %v714
      %v718 = vmul.f32 %v704, %v711
      %v719 = vmul.f32 %v703, %v715
      %v722 = vcombine.low %v718, %v719
      %v724 = vadd.f32 %v697, %v722
      %725 = vrot.lane.b32.xlu0 %v441, 127
      %v726 = vpop.permute.xlu0 %725
      %727 = vrot.lane.b32.xlu0 %v485, 127
      %v728 = vpop.permute.xlu0 %727
      %vm729 = vcmp.lt.s32.totalorder %v621, 127
      %v730 = vsel %vm729, %v726, %v728
      %v731 = vsel %vm729, %v728, %v726
      %s732 = scalar_lea.vmem %s1, 5
      %v733 = vld [vmem:[%s732] ss:$8 sm:$0x3]
      %v735 = vlaneseq
      %v736 = vshrl.u32 %v735, 7
      %v737 = vsub.s32 0, %v736
      %v738 = vrot.slane %v733, %v737
      %v739 = vlaneseq
      %v740 = vshrl.u32 %v739, 7
      %v741 = vsub.s32 1, %v740
      %v742 = vrot.slane %v733, %v741
      %v745 = vmul.f32 %v730, %v738
      %v746 = vmul.f32 %v731, %v742
      %v749 = vcombine.low %v745, %v746
      %v751 = vadd.f32 %v724, %v749
      %752 = vrot.lane.b32.xlu0 %v441, 113
      %v753 = vpop.permute.xlu0 %752
      %754 = vrot.lane.b32.xlu0 %v485, 113
      %v755 = vpop.permute.xlu0 %754
      %vm756 = vcmp.lt.s32.totalorder %v621, 113
      %v757 = vsel %vm756, %v753, %v755
      %v758 = vsel %vm756, %v755, %v753
      %s759 = scalar_lea.vmem %s1, 6
      %v760 = vld [vmem:[%s759] ss:$8 sm:$0x3]
      %v762 = vlaneseq
      %v763 = vshrl.u32 %v762, 7
      %v764 = vsub.s32 0, %v763
      %v765 = vrot.slane %v760, %v764
      %v766 = vlaneseq
      %v767 = vshrl.u32 %v766, 7
      %v768 = vsub.s32 1, %v767
      %v769 = vrot.slane %v760, %v768
      %v772 = vmul.f32 %v757, %v765
      %v773 = vmul.f32 %v758, %v769
      %v776 = vcombine.low %v772, %v773
      %v778 = vadd.f32 %v751, %v776
      %779 = vrot.lane.b32.xlu0 %v441, 112
      %v780 = vpop.permute.xlu0 %779
      %781 = vrot.lane.b32.xlu0 %v485, 112
      %v782 = vpop.permute.xlu0 %781
      %vm783 = vcmp.lt.s32.totalorder %v621, 112
      %v784 = vsel %vm783, %v780, %v782
      %v785 = vsel %vm783, %v782, %v780
      %s786 = scalar_lea.vmem %s1, 7
      %v787 = vld [vmem:[%s786] ss:$8 sm:$0x3]
      %v789 = vlaneseq
      %v790 = vshrl.u32 %v789, 7
      %v791 = vsub.s32 0, %v790
      %v792 = vrot.slane %v787, %v791
      %v793 = vlaneseq
      %v794 = vshrl.u32 %v793, 7
      %v795 = vsub.s32 1, %v794
      %v796 = vrot.slane %v787, %v795
      %v799 = vmul.f32 %v784, %v792
      %v800 = vmul.f32 %v785, %v796
      %v803 = vcombine.low %v799, %v800
      %v805 = vadd.f32 %v778, %v803
      %806 = vrot.lane.b32.xlu0 %v441, 111
      %v807 = vpop.permute.xlu0 %806
      %808 = vrot.lane.b32.xlu0 %v485, 111
      %v809 = vpop.permute.xlu0 %808
      %vm810 = vcmp.lt.s32.totalorder %v621, 111
      %v811 = vsel %vm810, %v807, %v809
      %v812 = vsel %vm810, %v809, %v807
      %s813 = scalar_lea.vmem %s1, 16
      %v814 = vld [vmem:[%s813] ss:$8 sm:$0x3]
      %v816 = vlaneseq
      %v817 = vshrl.u32 %v816, 7
      %v818 = vsub.s32 0, %v817
      %v819 = vrot.slane %v814, %v818
      %v820 = vlaneseq
      %v821 = vshrl.u32 %v820, 7
      %v822 = vsub.s32 1, %v821
      %v823 = vrot.slane %v814, %v822
      %v826 = vmul.f32 %v811, %v819
      %v827 = vmul.f32 %v812, %v823
      %v830 = vcombine.low %v826, %v827
      %v832 = vadd.f32 %v805, %v830
      %v833 = vmul.f32 %v832, 0.11111111
      %v834 = vld [vmem:[%s5] sm:$0xff]
      %v835 = vld [vmem:[%s5 + $0x8] sm:$0xff]
      %v836 = vld [vmem:[%s5 + $0x10] sm:$0xff]
      %v837 = vld [vmem:[%s6] sm:$0xff]
      %v838 = vld [vmem:[%s6 + $0x8] sm:$0xff]
      %v839 = vld [vmem:[%s6 + $0x10] sm:$0xff]
      %841 = vset.pattern.permute.xlu0 0
      %842 = vperm.xlu0 %841, %v837
      %v843 = vpop.permute.xlu0 %842
      %846 = vset.pattern.permute.xlu0 0
      %847 = vperm.xlu0 %846, %v838
      %v848 = vpop.permute.xlu0 %847
      %851 = vset.pattern.permute.xlu0 0
      %852 = vperm.xlu0 %851, %v839
      %v853 = vpop.permute.xlu0 %852
      %v856 = vcombine.high %v833, %v833
      %v858 = vsel %vm486, %v834, 0
      %v861 = vsel %vm486, %v835, 0
      %v864 = vsel %vm486, %v836, 0
      %v866 = vsel %vm505, %v833, 0
      %v868 = vsel %vm505, %v856, 0
      %870 = vmatprep.subr.mxu0 %v868
      %871 = vmatpush1.msra.mxu0 %v866
      %872 = vmatprep.subr.mxu0 0.0
      %873 = vmatpush1.msra.mxu0 0.0
      %874 = vmatprep.subr.mxu0 0.0
      %875 = vmatpush1.msra.mxu0 0.0
      %876 = vmatprep.subr.mxu0 0.0
      %877 = vmatpush1.msra.mxu0 0.0
      %878 = vmatprep.subr.mxu0 0.0
      %879 = vmatpush1.msra.mxu0 0.0
      %880 = vmatprep.subr.mxu0 0.0
      %881 = vmatpush1.msra.mxu0 0.0
      %882 = vmatprep.subr.mxu0 0.0
      %883 = vmatpush1.msra.mxu0 0.0
      %884 = vmatprep.subr.mxu0 0.0
      %885 = vmatpush1.msra.mxu0 0.0
      %886 = vmatprep.subr.mxu0 0.0
      %887 = vmatpush1.msra.mxu0 0.0
      %888 = vmatprep.subr.mxu0 0.0
      %889 = vmatpush1.msra.mxu0 0.0
      %890 = vmatprep.subr.mxu0 0.0
      %891 = vmatpush1.msra.mxu0 0.0
      %892 = vmatprep.subr.mxu0 0.0
      %893 = vmatpush1.msra.mxu0 0.0
      %894 = vmatprep.subr.mxu0 0.0
      %895 = vmatpush1.msra.mxu0 0.0
      %896 = vmatprep.subr.mxu0 0.0
      %897 = vmatpush1.msra.mxu0 0.0
      %898 = vmatprep.subr.mxu0 0.0
      %899 = vmatpush1.msra.mxu0 0.0
      %900 = vmatprep.subr.mxu0 0.0
      %901 = vmatpush1.msra.mxu0 0.0
      %902 = vmatprep.subr.mxu0 0.0
      %903 = vmatpush1.msra.mxu0 0.0
      %904 = vmatprep.subr.mxu0 0.0
      %905 = vmatpush1.msra.mxu0 0.0
      %906 = vmatprep.subr.mxu0 0.0
      %907 = vmatpush1.msra.mxu0 0.0
      %908 = vmatprep.subr.mxu0 0.0
      %909 = vmatpush1.msra.mxu0 0.0
      %910 = vmatprep.subr.mxu0 0.0
      %911 = vmatpush1.msra.mxu0 0.0
      %912 = vmatprep.subr.mxu0 0.0
      %913 = vmatpush1.msra.mxu0 0.0
      %914 = vmatprep.subr.mxu0 0.0
      %915 = vmatpush1.msra.mxu0 0.0
      %916 = vmatprep.subr.mxu0 0.0
      %917 = vmatpush1.msra.mxu0 0.0
      %918 = vmatprep.subr.mxu0 0.0
      %919 = vmatpush1.msra.mxu0 0.0
      %920 = vmatprep.subr.mxu0 0.0
      %921 = vmatpush1.msra.mxu0 0.0
      %922 = vmatprep.subr.mxu0 0.0
      %923 = vmatpush1.msra.mxu0 0.0
      %924 = vmatprep.subr.mxu0 0.0
      %925 = vmatpush1.msra.mxu0 0.0
      %926 = vmatprep.subr.mxu0 0.0
      %927 = vmatpush1.msra.mxu0 0.0
      %928 = vmatprep.subr.mxu0 0.0
      %929 = vmatpush1.msra.mxu0 0.0
      %930 = vmatprep.subr.mxu0 0.0
      %931 = vmatpush1.msra.mxu0 0.0
      %932 = vmatprep.subr.mxu0 0.0
      %933 = vmatpush1.msra.mxu0 0.0
      %934 = vmatprep.mubr.f32.mxu0 0.0
      %935 = vmatmul.mubr.f32.gmra.mrb[0].mxu0 %v858
      %v936 = vpop.f32.mrb[0].mxu0
      %v937 = vadd.f32 %v843, %v936
      %v938 = vpop.f32.mrb[0].mxu0
      %v939 = vadd.f32 %v843, %v938
      %940 = vmatprep.mubr.f32.mxu0 0.0
      %941 = vmatmul.mubr.f32.gmra.mrb[0].mxu0 %v861
      %v942 = vpop.f32.mrb[0].mxu0
      %v943 = vadd.f32 %v848, %v942
      %v944 = vpop.f32.mrb[0].mxu0
      %v945 = vadd.f32 %v848, %v944
      %946 = vmatprep.mubr.f32.mxu0 0.0
      %947 = vmatmul.mubr.f32.gmra.mrb[0].mxu0 %v864
      %v948 = vpop.f32.mrb[0].mxu0
      %v949 = vadd.f32 %v853, %v948
      %v950 = vpop.f32.mrb[0].mxu0
      %v951 = vadd.f32 %v853, %v950
      %952 = vdwg.mxu0
      %953 = vst [vmem:[%s440] sm:$0xff] %v937
      %954 = vst [vmem:[%s440 + $0x8] sm:$0xff] %v939
      %955 = vst [vmem:[%s440 + $0x10] sm:$0xff] %v943
      %956 = vst [vmem:[%s440 + $0x18] sm:$0xff] %v945
      %957 = vst [vmem:[%s440 + $0x20] sm:$0xff] %v949
      %958 = vst [vmem:[%s440 + $0x28] sm:$0xff] %v951
      %959 = vrot.lane.b32.xlu0 %v589, 34
      %v960 = vpop.permute.xlu0 %959
      %961 = vrot.lane.b32.xlu0 %v595, 34
      %v962 = vpop.permute.xlu0 %961
      %963 = vrot.lane.b32.xlu0 %v591, 34
      %v964 = vpop.permute.xlu0 %963
      %965 = vrot.lane.b32.xlu0 %v597, 34
      %v966 = vpop.permute.xlu0 %965
      %vm967 = vcmp.lt.s32.totalorder %v621, 34
      %v968 = vsel %vm967, %v960, %v964
      %v969 = vsel %vm967, %v962, %v966
      %v970 = vsel %vm967, %v964, %v960
      %v971 = vsel %vm967, %v966, %v962
      %v972 = vld [vmem:[%s2] ss:$8 sm:$0x3]
      %v974 = vlaneseq
      %v975 = vshrl.u32 %v974, 7
      %v976 = vsub.s32 0, %v975
      %v977 = vrot.slane %v972, %v976
      %v978 = vlaneseq
      %v979 = vshrl.u32 %v978, 7
      %v980 = vsub.s32 1, %v979
      %v981 = vrot.slane %v972, %v980
      %v984 = vmul.f32 %v970, %v977
      %v985 = vmul.f32 %v968, %v981
      %v986 = vmul.f32 %v971, %v977
      %v987 = vmul.f32 %v969, %v981
      %988 = vst [vmem:[#allocation2] sm:$0xff] %v984
      %989 = vst [vmem:[#allocation2 + $0x8] sm:$0xff] %v985
      %990 = vst [vmem:[#allocation2 + $0x10] sm:$0xff] %v986
      %991 = vst [vmem:[#allocation2 + $0x18] sm:$0xff] %v987
      %992 = vrot.lane.b32.xlu0 %v589, 33
      %v993 = vpop.permute.xlu0 %992
      %994 = vrot.lane.b32.xlu0 %v595, 33
      %v995 = vpop.permute.xlu0 %994
      %996 = vrot.lane.b32.xlu0 %v591, 33
      %v997 = vpop.permute.xlu0 %996
      %998 = vrot.lane.b32.xlu0 %v597, 33
      %v999 = vpop.permute.xlu0 %998
      %vm1000 = vcmp.lt.s32.totalorder %v621, 33
      %v1001 = vsel %vm1000, %v993, %v997
      %v1002 = vsel %vm1000, %v995, %v999
      %v1003 = vsel %vm1000, %v997, %v993
      %v1004 = vsel %vm1000, %v999, %v995
      %s1005 = scalar_lea.vmem %s2, 1
      %v1006 = vld [vmem:[%s1005] ss:$8 sm:$0x3]
      %v1008 = vlaneseq
      %v1009 = vshrl.u32 %v1008, 7
      %v1010 = vsub.s32 0, %v1009
      %v1011 = vrot.slane %v1006, %v1010
      %v1012 = vlaneseq
      %v1013 = vshrl.u32 %v1012, 7
      %v1014 = vsub.s32 1, %v1013
      %v1015 = vrot.slane %v1006, %v1014
      %v1018 = vmul.f32 %v1003, %v1011
      %v1019 = vmul.f32 %v1001, %v1015
      %v1020 = vmul.f32 %v1004, %v1011
      %v1021 = vmul.f32 %v1002, %v1015
      %1022 = vst [vmem:[#allocation2 + $0x20] sm:$0xff] %v1018
      %1023 = vst [vmem:[#allocation2 + $0x28] sm:$0xff] %v1019
      %1024 = vst [vmem:[#allocation2 + $0x30] sm:$0xff] %v1020
      %1025 = vst [vmem:[#allocation2 + $0x38] sm:$0xff] %v1021
      %1026 = vrot.lane.b32.xlu0 %v589, 32
      %v1027 = vpop.permute.xlu0 %1026
      %1028 = vrot.lane.b32.xlu0 %v595, 32
      %v1029 = vpop.permute.xlu0 %1028
      %1030 = vrot.lane.b32.xlu0 %v591, 32
      %v1031 = vpop.permute.xlu0 %1030
      %1032 = vrot.lane.b32.xlu0 %v597, 32
      %v1033 = vpop.permute.xlu0 %1032
      %vm1034 = vcmp.lt.s32.totalorder %v621, 32
      %v1035 = vsel %vm1034, %v1027, %v1031
      %v1036 = vsel %vm1034, %v1029, %v1033
      %v1037 = vsel %vm1034, %v1031, %v1027
      %v1038 = vsel %vm1034, %v1033, %v1029
      %s1039 = scalar_lea.vmem %s2, 2
      %v1040 = vld [vmem:[%s1039] ss:$8 sm:$0x3]
      %v1042 = vlaneseq
      %v1043 = vshrl.u32 %v1042, 7
      %v1044 = vsub.s32 0, %v1043
      %v1045 = vrot.slane %v1040, %v1044
      %v1046 = vlaneseq
      %v1047 = vshrl.u32 %v1046, 7
      %v1048 = vsub.s32 1, %v1047
      %v1049 = vrot.slane %v1040, %v1048
      %v1052 = vmul.f32 %v1037, %v1045
      %v1053 = vmul.f32 %v1035, %v1049
      %v1054 = vmul.f32 %v1038, %v1045
      %v1055 = vmul.f32 %v1036, %v1049
      %1056 = vst [vmem:[#allocation2 + $0x40] sm:$0xff] %v1052
      %1057 = vst [vmem:[#allocation2 + $0x48] sm:$0xff] %v1053
      %1058 = vst [vmem:[#allocation2 + $0x50] sm:$0xff] %v1054
      %1059 = vst [vmem:[#allocation2 + $0x58] sm:$0xff] %v1055
      %1060 = vrot.lane.b32.xlu0 %v589, 31
      %v1061 = vpop.permute.xlu0 %1060
      %1062 = vrot.lane.b32.xlu0 %v595, 31
      %v1063 = vpop.permute.xlu0 %1062
      %1064 = vrot.lane.b32.xlu0 %v591, 31
      %v1065 = vpop.permute.xlu0 %1064
      %1066 = vrot.lane.b32.xlu0 %v597, 31
      %v1067 = vpop.permute.xlu0 %1066
      %vm1068 = vcmp.lt.s32.totalorder %v621, 31
      %v1069 = vsel %vm1068, %v1061, %v1065
      %v1070 = vsel %vm1068, %v1063, %v1067
      %v1071 = vsel %vm1068, %v1065, %v1061
      %v1072 = vsel %vm1068, %v1067, %v1063
      %s1073 = scalar_lea.vmem %s2, 3
      %v1074 = vld [vmem:[%s1073] ss:$8 sm:$0x3]
      %v1076 = vlaneseq
      %v1077 = vshrl.u32 %v1076, 7
      %v1078 = vsub.s32 0, %v1077
      %v1079 = vrot.slane %v1074, %v1078
      %v1080 = vlaneseq
      %v1081 = vshrl.u32 %v1080, 7
      %v1082 = vsub.s32 1, %v1081
      %v1083 = vrot.slane %v1074, %v1082
      %v1086 = vmul.f32 %v1071, %v1079
      %v1087 = vmul.f32 %v1069, %v1083
      %v1088 = vmul.f32 %v1072, %v1079
      %v1089 = vmul.f32 %v1070, %v1083
      %1090 = vst [vmem:[#allocation2 + $0x60] sm:$0xff] %v1086
      %1091 = vst [vmem:[#allocation2 + $0x68] sm:$0xff] %v1087
      %1092 = vst [vmem:[#allocation2 + $0x70] sm:$0xff] %v1088
      %1093 = vst [vmem:[#allocation2 + $0x78] sm:$0xff] %v1089
      %1094 = vrot.lane.b32.xlu0 %v589, 30
      %v1095 = vpop.permute.xlu0 %1094
      %1096 = vrot.lane.b32.xlu0 %v595, 30
      %v1097 = vpop.permute.xlu0 %1096
      %1098 = vrot.lane.b32.xlu0 %v591, 30
      %v1099 = vpop.permute.xlu0 %1098
      %1100 = vrot.lane.b32.xlu0 %v597, 30
      %v1101 = vpop.permute.xlu0 %1100
      %vm1102 = vcmp.lt.s32.totalorder %v621, 30
      %v1103 = vsel %vm1102, %v1095, %v1099
      %v1104 = vsel %vm1102, %v1097, %v1101
      %v1105 = vsel %vm1102, %v1099, %v1095
      %v1106 = vsel %vm1102, %v1101, %v1097
      %s1107 = scalar_lea.vmem %s2, 4
      %v1108 = vld [vmem:[%s1107] ss:$8 sm:$0x3]
      %v1110 = vlaneseq
      %v1111 = vshrl.u32 %v1110, 7
      %v1112 = vsub.s32 0, %v1111
      %v1113 = vrot.slane %v1108, %v1112
      %v1114 = vlaneseq
      %v1115 = vshrl.u32 %v1114, 7
      %v1116 = vsub.s32 1, %v1115
      %v1117 = vrot.slane %v1108, %v1116
      %v1120 = vmul.f32 %v1105, %v1113
      %v1121 = vmul.f32 %v1103, %v1117
      %v1122 = vmul.f32 %v1106, %v1113
      %v1123 = vmul.f32 %v1104, %v1117
      %1124 = vst [vmem:[#allocation2 + $0x80] sm:$0xff] %v1120
      %1125 = vst [vmem:[#allocation2 + $0x88] sm:$0xff] %v1121
      %1126 = vst [vmem:[#allocation2 + $0x90] sm:$0xff] %v1122
      %1127 = vst [vmem:[#allocation2 + $0x98] sm:$0xff] %v1123
      %1128 = vrot.lane.b32.xlu0 %v589, 18
      %v1129 = vpop.permute.xlu0 %1128
      %1130 = vrot.lane.b32.xlu0 %v595, 18
      %v1131 = vpop.permute.xlu0 %1130
      %1132 = vrot.lane.b32.xlu0 %v591, 18
      %v1133 = vpop.permute.xlu0 %1132
      %1134 = vrot.lane.b32.xlu0 %v597, 18
      %v1135 = vpop.permute.xlu0 %1134
      %vm1136 = vcmp.lt.s32.totalorder %v621, 18
      %v1137 = vsel %vm1136, %v1129, %v1133
      %v1138 = vsel %vm1136, %v1131, %v1135
      %v1139 = vsel %vm1136, %v1133, %v1129
      %v1140 = vsel %vm1136, %v1135, %v1131
      %s1141 = scalar_lea.vmem %s2, 5
      %v1142 = vld [vmem:[%s1141] ss:$8 sm:$0x3]
      %v1144 = vlaneseq
      %v1145 = vshrl.u32 %v1144, 7
      %v1146 = vsub.s32 0, %v1145
      %v1147 = vrot.slane %v1142, %v1146
      %v1148 = vlaneseq
      %v1149 = vshrl.u32 %v1148, 7
      %v1150 = vsub.s32 1, %v1149
      %v1151 = vrot.slane %v1142, %v1150
      %v1154 = vmul.f32 %v1139, %v1147
      %v1155 = vmul.f32 %v1137, %v1151
      %v1156 = vmul.f32 %v1140, %v1147
      %v1157 = vmul.f32 %v1138, %v1151
      %1158 = vst [vmem:[#allocation2 + $0xa0] sm:$0xff] %v1154
      %1159 = vst [vmem:[#allocation2 + $0xa8] sm:$0xff] %v1155
      %1160 = vst [vmem:[#allocation2 + $0xb0] sm:$0xff] %v1156
      %1161 = vst [vmem:[#allocation2 + $0xb8] sm:$0xff] %v1157
      %1162 = vrot.lane.b32.xlu0 %v589, 17
      %v1163 = vpop.permute.xlu0 %1162
      %1164 = vrot.lane.b32.xlu0 %v595, 17
      %v1165 = vpop.permute.xlu0 %1164
      %1166 = vrot.lane.b32.xlu0 %v591, 17
      %v1167 = vpop.permute.xlu0 %1166
      %1168 = vrot.lane.b32.xlu0 %v597, 17
      %v1169 = vpop.permute.xlu0 %1168
      %v1170 = vsel %vm622, %v1163, %v1167
      %v1171 = vsel %vm622, %v1165, %v1169
      %v1172 = vsel %vm622, %v1167, %v1163
      %v1173 = vsel %vm622, %v1169, %v1165
      %s1174 = scalar_lea.vmem %s2, 6
      %v1175 = vld [vmem:[%s1174] ss:$8 sm:$0x3]
      %v1177 = vlaneseq
      %v1178 = vshrl.u32 %v1177, 7
      %v1179 = vsub.s32 0, %v1178
      %v1180 = vrot.slane %v1175, %v1179
      %v1181 = vlaneseq
      %v1182 = vshrl.u32 %v1181, 7
      %v1183 = vsub.s32 1, %v1182
      %v1184 = vrot.slane %v1175, %v1183
      %v1187 = vmul.f32 %v1172, %v1180
      %v1188 = vmul.f32 %v1170, %v1184
      %v1189 = vmul.f32 %v1173, %v1180
      %v1190 = vmul.f32 %v1171, %v1184
      %1191 = vst [vmem:[#allocation2 + $0xc0] sm:$0xff] %v1187
      %1192 = vst [vmem:[#allocation2 + $0xc8] sm:$0xff] %v1188
      %1193 = vst [vmem:[#allocation2 + $0xd0] sm:$0xff] %v1189
      %1194 = vst [vmem:[#allocation2 + $0xd8] sm:$0xff] %v1190
      %1195 = vrot.lane.b32.xlu0 %v589, 16
      %v1196 = vpop.permute.xlu0 %1195
      %1197 = vrot.lane.b32.xlu0 %v595, 16
      %v1198 = vpop.permute.xlu0 %1197
      %1199 = vrot.lane.b32.xlu0 %v591, 16
      %v1200 = vpop.permute.xlu0 %1199
      %1201 = vrot.lane.b32.xlu0 %v597, 16
      %v1202 = vpop.permute.xlu0 %1201
      %v1203 = vsel %vm648, %v1196, %v1200
      %v1204 = vsel %vm648, %v1198, %v1202
      %v1205 = vsel %vm648, %v1200, %v1196
      %v1206 = vsel %vm648, %v1202, %v1198
      %s1207 = scalar_lea.vmem %s2, 7
      %v1208 = vld [vmem:[%s1207] ss:$8 sm:$0x3]
      %v1210 = vlaneseq
      %v1211 = vshrl.u32 %v1210, 7
      %v1212 = vsub.s32 0, %v1211
      %v1213 = vrot.slane %v1208, %v1212
      %v1214 = vlaneseq
      %v1215 = vshrl.u32 %v1214, 7
      %v1216 = vsub.s32 1, %v1215
      %v1217 = vrot.slane %v1208, %v1216
      %v1220 = vmul.f32 %v1205, %v1213
      %v1221 = vmul.f32 %v1203, %v1217
      %v1222 = vmul.f32 %v1206, %v1213
      %v1223 = vmul.f32 %v1204, %v1217
      %1224 = vst [vmem:[#allocation2 + $0xe0] sm:$0xff] %v1220
      %1225 = vst [vmem:[#allocation2 + $0xe8] sm:$0xff] %v1221
      %1226 = vst [vmem:[#allocation2 + $0xf0] sm:$0xff] %v1222
      %1227 = vst [vmem:[#allocation2 + $0xf8] sm:$0xff] %v1223
      %1228 = vrot.lane.b32.xlu0 %v589, 15
      %v1229 = vpop.permute.xlu0 %1228
      %1230 = vrot.lane.b32.xlu0 %v595, 15
      %v1231 = vpop.permute.xlu0 %1230
      %1232 = vrot.lane.b32.xlu0 %v591, 15
      %v1233 = vpop.permute.xlu0 %1232
      %1234 = vrot.lane.b32.xlu0 %v597, 15
      %v1235 = vpop.permute.xlu0 %1234
      %v1236 = vsel %vm675, %v1229, %v1233
      %v1237 = vsel %vm675, %v1231, %v1235
      %v1238 = vsel %vm675, %v1233, %v1229
      %v1239 = vsel %vm675, %v1235, %v1231
      %s1240 = scalar_lea.vmem %s2, 16
      %v1241 = vld [vmem:[%s1240] ss:$8 sm:$0x3]
      %v1243 = vlaneseq
      %v1244 = vshrl.u32 %v1243, 7
      %v1245 = vsub.s32 0, %v1244
      %v1246 = vrot.slane %v1241, %v1245
      %v1247 = vlaneseq
      %v1248 = vshrl.u32 %v1247, 7
      %v1249 = vsub.s32 1, %v1248
      %v1250 = vrot.slane %v1241, %v1249
      %v1253 = vmul.f32 %v1238, %v1246
      %v1254 = vmul.f32 %v1236, %v1250
      %v1255 = vmul.f32 %v1239, %v1246
      %v1256 = vmul.f32 %v1237, %v1250
      %1257 = vst [vmem:[#allocation2 + $0x100] sm:$0xff] %v1253
      %1258 = vst [vmem:[#allocation2 + $0x108] sm:$0xff] %v1254
      %1259 = vst [vmem:[#allocation2 + $0x110] sm:$0xff] %v1255
      %1260 = vst [vmem:[#allocation2 + $0x118] sm:$0xff] %v1256
      %1261 = vrot.lane.b32.xlu0 %v589, 14
      %v1262 = vpop.permute.xlu0 %1261
      %1263 = vrot.lane.b32.xlu0 %v595, 14
      %v1264 = vpop.permute.xlu0 %1263
      %1265 = vrot.lane.b32.xlu0 %v591, 14
      %v1266 = vpop.permute.xlu0 %1265
      %1267 = vrot.lane.b32.xlu0 %v597, 14
      %v1268 = vpop.permute.xlu0 %1267
      %vm1269 = vcmp.lt.s32.totalorder %v621, 14
      %v1270 = vsel %vm1269, %v1262, %v1266
      %v1271 = vsel %vm1269, %v1264, %v1268
      %v1272 = vsel %vm1269, %v1266, %v1262
      %v1273 = vsel %vm1269, %v1268, %v1264
      %s1274 = scalar_lea.vmem %s2, 17
      %v1275 = vld [vmem:[%s1274] ss:$8 sm:$0x3]
      %v1277 = vlaneseq
      %v1278 = vshrl.u32 %v1277, 7
      %v1279 = vsub.s32 0, %v1278
      %v1280 = vrot.slane %v1275, %v1279
      %v1281 = vlaneseq
      %v1282 = vshrl.u32 %v1281, 7
      %v1283 = vsub.s32 1, %v1282
      %v1284 = vrot.slane %v1275, %v1283
      %v1287 = vmul.f32 %v1272, %v1280
      %v1288 = vmul.f32 %v1270, %v1284
      %v1289 = vmul.f32 %v1273, %v1280
      %v1290 = vmul.f32 %v1271, %v1284
      %1291 = vst [vmem:[#allocation2 + $0x120] sm:$0xff] %v1287
      %1292 = vst [vmem:[#allocation2 + $0x128] sm:$0xff] %v1288
      %1293 = vst [vmem:[#allocation2 + $0x130] sm:$0xff] %v1289
      %1294 = vst [vmem:[#allocation2 + $0x138] sm:$0xff] %v1290
      %1295 = vrot.lane.b32.xlu0 %v589, 2
      %v1296 = vpop.permute.xlu0 %1295
      %1297 = vrot.lane.b32.xlu0 %v595, 2
      %v1298 = vpop.permute.xlu0 %1297
      %1299 = vrot.lane.b32.xlu0 %v591, 2
      %v1300 = vpop.permute.xlu0 %1299
      %1301 = vrot.lane.b32.xlu0 %v597, 2
      %v1302 = vpop.permute.xlu0 %1301
      %vm1303 = vcmp.lt.s32.totalorder %v621, 2
      %v1304 = vsel %vm1303, %v1296, %v1300
      %v1305 = vsel %vm1303, %v1298, %v1302
      %v1306 = vsel %vm1303, %v1300, %v1296
      %v1307 = vsel %vm1303, %v1302, %v1298
      %s1308 = scalar_lea.vmem %s2, 18
      %v1309 = vld [vmem:[%s1308] ss:$8 sm:$0x3]
      %v1311 = vlaneseq
      %v1312 = vshrl.u32 %v1311, 7
      %v1313 = vsub.s32 0, %v1312
      %v1314 = vrot.slane %v1309, %v1313
      %v1315 = vlaneseq
      %v1316 = vshrl.u32 %v1315, 7
      %v1317 = vsub.s32 1, %v1316
      %v1318 = vrot.slane %v1309, %v1317
      %v1321 = vmul.f32 %v1306, %v1314
      %v1322 = vmul.f32 %v1304, %v1318
      %v1323 = vmul.f32 %v1307, %v1314
      %v1324 = vmul.f32 %v1305, %v1318
      %1325 = vst [vmem:[#allocation2 + $0x140] sm:$0xff] %v1321
      %1326 = vst [vmem:[#allocation2 + $0x148] sm:$0xff] %v1322
      %1327 = vst [vmem:[#allocation2 + $0x150] sm:$0xff] %v1323
      %1328 = vst [vmem:[#allocation2 + $0x158] sm:$0xff] %v1324
      %1329 = vrot.lane.b32.xlu0 %v589, 1
      %v1330 = vpop.permute.xlu0 %1329
      %1331 = vrot.lane.b32.xlu0 %v595, 1
      %v1332 = vpop.permute.xlu0 %1331
      %1333 = vrot.lane.b32.xlu0 %v591, 1
      %v1334 = vpop.permute.xlu0 %1333
      %1335 = vrot.lane.b32.xlu0 %v597, 1
      %v1336 = vpop.permute.xlu0 %1335
      %v1337 = vsel %vm702, %v1330, %v1334
      %v1338 = vsel %vm702, %v1332, %v1336
      %v1339 = vsel %vm702, %v1334, %v1330
      %v1340 = vsel %vm702, %v1336, %v1332
      %s1341 = scalar_lea.vmem %s2, 19
      %v1342 = vld [vmem:[%s1341] ss:$8 sm:$0x3]
      %v1344 = vlaneseq
      %v1345 = vshrl.u32 %v1344, 7
      %v1346 = vsub.s32 0, %v1345
      %v1347 = vrot.slane %v1342, %v1346
      %v1348 = vlaneseq
      %v1349 = vshrl.u32 %v1348, 7
      %v1350 = vsub.s32 1, %v1349
      %v1351 = vrot.slane %v1342, %v1350
      %v1354 = vmul.f32 %v1339, %v1347
      %v1355 = vmul.f32 %v1337, %v1351
      %v1356 = vmul.f32 %v1340, %v1347
      %v1357 = vmul.f32 %v1338, %v1351
      %1358 = vst [vmem:[#allocation2 + $0x160] sm:$0xff] %v1354
      %1359 = vst [vmem:[#allocation2 + $0x168] sm:$0xff] %v1355
      %1360 = vst [vmem:[#allocation2 + $0x170] sm:$0xff] %v1356
      %1361 = vst [vmem:[#allocation2 + $0x178] sm:$0xff] %v1357
      %1362 = vst [vmem:[#allocation2 + $0x180] sm:$0xff] %v589
      %1363 = vst [vmem:[#allocation2 + $0x188] sm:$0xff] %v591
      %1364 = vst [vmem:[#allocation2 + $0x190] sm:$0xff] %v595
      %1365 = vst [vmem:[#allocation2 + $0x198] sm:$0xff] %v597
      %1366 = vrot.lane.b32.xlu0 %v589, 127
      %v1367 = vpop.permute.xlu0 %1366
      %1368 = vrot.lane.b32.xlu0 %v595, 127
      %v1369 = vpop.permute.xlu0 %1368
      %1370 = vrot.lane.b32.xlu0 %v591, 127
      %v1371 = vpop.permute.xlu0 %1370
      %1372 = vrot.lane.b32.xlu0 %v597, 127
      %v1373 = vpop.permute.xlu0 %1372
      %v1374 = vsel %vm729, %v1367, %v1371
      %v1375 = vsel %vm729, %v1369, %v1373
      %v1376 = vsel %vm729, %v1371, %v1367
      %v1377 = vsel %vm729, %v1373, %v1369
      %s1378 = scalar_lea.vmem %s2, 21
      %v1379 = vld [vmem:[%s1378] ss:$8 sm:$0x3]
      %v1381 = vlaneseq
      %v1382 = vshrl.u32 %v1381, 7
      %v1383 = vsub.s32 0, %v1382
      %v1384 = vrot.slane %v1379, %v1383
      %v1385 = vlaneseq
      %v1386 = vshrl.u32 %v1385, 7
      %v1387 = vsub.s32 1, %v1386
      %v1388 = vrot.slane %v1379, %v1387
      %v1391 = vmul.f32 %v1374, %v1384
      %v1392 = vmul.f32 %v1376, %v1388
      %v1393 = vmul.f32 %v1375, %v1384
      %v1394 = vmul.f32 %v1377, %v1388
      %1395 = vst [vmem:[#allocation2 + $0x1a0] sm:$0xff] %v1391
      %1396 = vst [vmem:[#allocation2 + $0x1a8] sm:$0xff] %v1392
      %1397 = vst [vmem:[#allocation2 + $0x1b0] sm:$0xff] %v1393
      %1398 = vst [vmem:[#allocation2 + $0x1b8] sm:$0xff] %v1394
      %1399 = vrot.lane.b32.xlu0 %v589, 126
      %v1400 = vpop.permute.xlu0 %1399
      %1401 = vrot.lane.b32.xlu0 %v595, 126
      %v1402 = vpop.permute.xlu0 %1401
      %1403 = vrot.lane.b32.xlu0 %v591, 126
      %v1404 = vpop.permute.xlu0 %1403
      %1405 = vrot.lane.b32.xlu0 %v597, 126
      %v1406 = vpop.permute.xlu0 %1405
      %vm1407 = vcmp.lt.s32.totalorder %v621, 126
      %v1408 = vsel %vm1407, %v1400, %v1404
      %v1409 = vsel %vm1407, %v1402, %v1406
      %v1410 = vsel %vm1407, %v1404, %v1400
      %v1411 = vsel %vm1407, %v1406, %v1402
      %s1412 = scalar_lea.vmem %s2, 22
      %v1413 = vld [vmem:[%s1412] ss:$8 sm:$0x3]
      %v1415 = vlaneseq
      %v1416 = vshrl.u32 %v1415, 7
      %v1417 = vsub.s32 0, %v1416
      %v1418 = vrot.slane %v1413, %v1417
      %v1419 = vlaneseq
      %v1420 = vshrl.u32 %v1419, 7
      %v1421 = vsub.s32 1, %v1420
      %v1422 = vrot.slane %v1413, %v1421
      %v1425 = vmul.f32 %v1408, %v1418
      %v1426 = vmul.f32 %v1410, %v1422
      %v1427 = vmul.f32 %v1409, %v1418
      %v1428 = vmul.f32 %v1411, %v1422
      %1429 = vst [vmem:[#allocation2 + $0x1c0] sm:$0xff] %v1425
      %1430 = vst [vmem:[#allocation2 + $0x1c8] sm:$0xff] %v1426
      %1431 = vst [vmem:[#allocation2 + $0x1d0] sm:$0xff] %v1427
      %1432 = vst [vmem:[#allocation2 + $0x1d8] sm:$0xff] %v1428
      %1433 = vrot.lane.b32.xlu0 %v589, 114
      %v1434 = vpop.permute.xlu0 %1433
      %1435 = vrot.lane.b32.xlu0 %v595, 114
      %v1436 = vpop.permute.xlu0 %1435
      %1437 = vrot.lane.b32.xlu0 %v591, 114
      %v1438 = vpop.permute.xlu0 %1437
      %1439 = vrot.lane.b32.xlu0 %v597, 114
      %v1440 = vpop.permute.xlu0 %1439
      %vm1441 = vcmp.lt.s32.totalorder %v621, 114
      %v1442 = vsel %vm1441, %v1434, %v1438
      %v1443 = vsel %vm1441, %v1436, %v1440
      %v1444 = vsel %vm1441, %v1438, %v1434
      %v1445 = vsel %vm1441, %v1440, %v1436
      %s1446 = scalar_lea.vmem %s2, 23
      %v1447 = vld [vmem:[%s1446] ss:$8 sm:$0x3]
      %v1449 = vlaneseq
      %v1450 = vshrl.u32 %v1449, 7
      %v1451 = vsub.s32 0, %v1450
      %v1452 = vrot.slane %v1447, %v1451
      %v1453 = vlaneseq
      %v1454 = vshrl.u32 %v1453, 7
      %v1455 = vsub.s32 1, %v1454
      %v1456 = vrot.slane %v1447, %v1455
      %v1459 = vmul.f32 %v1442, %v1452
      %v1460 = vmul.f32 %v1444, %v1456
      %v1461 = vmul.f32 %v1443, %v1452
      %v1462 = vmul.f32 %v1445, %v1456
      %1463 = vst [vmem:[#allocation2 + $0x1e0] sm:$0xff] %v1459
      %1464 = vst [vmem:[#allocation2 + $0x1e8] sm:$0xff] %v1460
      %1465 = vst [vmem:[#allocation2 + $0x1f0] sm:$0xff] %v1461
      %1466 = vst [vmem:[#allocation2 + $0x1f8] sm:$0xff] %v1462
      %1467 = vrot.lane.b32.xlu0 %v589, 113
      %v1468 = vpop.permute.xlu0 %1467
      %1469 = vrot.lane.b32.xlu0 %v595, 113
      %v1470 = vpop.permute.xlu0 %1469
      %1471 = vrot.lane.b32.xlu0 %v591, 113
      %v1472 = vpop.permute.xlu0 %1471
      %1473 = vrot.lane.b32.xlu0 %v597, 113
      %v1474 = vpop.permute.xlu0 %1473
      %v1475 = vsel %vm756, %v1468, %v1472
      %v1476 = vsel %vm756, %v1470, %v1474
      %v1477 = vsel %vm756, %v1472, %v1468
      %v1478 = vsel %vm756, %v1474, %v1470
      %s1479 = scalar_lea.vmem %s2, 32
      %v1480 = vld [vmem:[%s1479] ss:$8 sm:$0x3]
      %v1482 = vlaneseq
      %v1483 = vshrl.u32 %v1482, 7
      %v1484 = vsub.s32 0, %v1483
      %v1485 = vrot.slane %v1480, %v1484
      %v1486 = vlaneseq
      %v1487 = vshrl.u32 %v1486, 7
      %v1488 = vsub.s32 1, %v1487
      %v1489 = vrot.slane %v1480, %v1488
      %v1492 = vmul.f32 %v1475, %v1485
      %v1493 = vmul.f32 %v1477, %v1489
      %v1494 = vmul.f32 %v1476, %v1485
      %v1495 = vmul.f32 %v1478, %v1489
      %1496 = vst [vmem:[#allocation2 + $0x200] sm:$0xff] %v1492
      %1497 = vst [vmem:[#allocation2 + $0x208] sm:$0xff] %v1493
      %1498 = vst [vmem:[#allocation2 + $0x210] sm:$0xff] %v1494
      %1499 = vst [vmem:[#allocation2 + $0x218] sm:$0xff] %v1495
      %1500 = vrot.lane.b32.xlu0 %v589, 112
      %v1501 = vpop.permute.xlu0 %1500
      %1502 = vrot.lane.b32.xlu0 %v595, 112
      %v1503 = vpop.permute.xlu0 %1502
      %1504 = vrot.lane.b32.xlu0 %v591, 112
      %v1505 = vpop.permute.xlu0 %1504
      %1506 = vrot.lane.b32.xlu0 %v597, 112
      %v1507 = vpop.permute.xlu0 %1506
      %v1508 = vsel %vm783, %v1501, %v1505
      %v1509 = vsel %vm783, %v1503, %v1507
      %v1510 = vsel %vm783, %v1505, %v1501
      %v1511 = vsel %vm783, %v1507, %v1503
      %s1512 = scalar_lea.vmem %s2, 33
      %v1513 = vld [vmem:[%s1512] ss:$8 sm:$0x3]
      %v1515 = vlaneseq
      %v1516 = vshrl.u32 %v1515, 7
      %v1517 = vsub.s32 0, %v1516
      %v1518 = vrot.slane %v1513, %v1517
      %v1519 = vlaneseq
      %v1520 = vshrl.u32 %v1519, 7
      %v1521 = vsub.s32 1, %v1520
      %v1522 = vrot.slane %v1513, %v1521
      %v1525 = vmul.f32 %v1508, %v1518
      %v1526 = vmul.f32 %v1510, %v1522
      %v1527 = vmul.f32 %v1509, %v1518
      %v1528 = vmul.f32 %v1511, %v1522
      %1529 = vst [vmem:[#allocation2 + $0x220] sm:$0xff] %v1525
      %1530 = vst [vmem:[#allocation2 + $0x228] sm:$0xff] %v1526
      %1531 = vst [vmem:[#allocation2 + $0x230] sm:$0xff] %v1527
      %1532 = vst [vmem:[#allocation2 + $0x238] sm:$0xff] %v1528
      %1533 = vrot.lane.b32.xlu0 %v589, 111
      %v1534 = vpop.permute.xlu0 %1533
      %1535 = vrot.lane.b32.xlu0 %v595, 111
      %v1536 = vpop.permute.xlu0 %1535
      %1537 = vrot.lane.b32.xlu0 %v591, 111
      %v1538 = vpop.permute.xlu0 %1537
      %1539 = vrot.lane.b32.xlu0 %v597, 111
      %v1540 = vpop.permute.xlu0 %1539
      %v1541 = vsel %vm810, %v1534, %v1538
      %v1542 = vsel %vm810, %v1536, %v1540
      %v1543 = vsel %vm810, %v1538, %v1534
      %v1544 = vsel %vm810, %v1540, %v1536
      %s1545 = scalar_lea.vmem %s2, 34
      %v1546 = vld [vmem:[%s1545] ss:$8 sm:$0x3]
      %v1548 = vlaneseq
      %v1549 = vshrl.u32 %v1548, 7
      %v1550 = vsub.s32 0, %v1549
      %v1551 = vrot.slane %v1546, %v1550
      %v1552 = vlaneseq
      %v1553 = vshrl.u32 %v1552, 7
      %v1554 = vsub.s32 1, %v1553
      %v1555 = vrot.slane %v1546, %v1554
      %v1558 = vmul.f32 %v1541, %v1551
      %v1559 = vmul.f32 %v1543, %v1555
      %v1560 = vmul.f32 %v1542, %v1551
      %v1561 = vmul.f32 %v1544, %v1555
      %1562 = vst [vmem:[#allocation2 + $0x240] sm:$0xff] %v1558
      %1563 = vst [vmem:[#allocation2 + $0x248] sm:$0xff] %v1559
      %1564 = vst [vmem:[#allocation2 + $0x250] sm:$0xff] %v1560
      %1565 = vst [vmem:[#allocation2 + $0x258] sm:$0xff] %v1561
      %1566 = vrot.lane.b32.xlu0 %v589, 110
      %v1567 = vpop.permute.xlu0 %1566
      %1568 = vrot.lane.b32.xlu0 %v595, 110
      %v1569 = vpop.permute.xlu0 %1568
      %1570 = vrot.lane.b32.xlu0 %v591, 110
      %v1571 = vpop.permute.xlu0 %1570
      %1572 = vrot.lane.b32.xlu0 %v597, 110
      %v1573 = vpop.permute.xlu0 %1572
      %vm1574 = vcmp.lt.s32.totalorder %v621, 110
      %v1575 = vsel %vm1574, %v1567, %v1571
      %v1576 = vsel %vm1574, %v1569, %v1573
      %v1577 = vsel %vm1574, %v1571, %v1567
      %v1578 = vsel %vm1574, %v1573, %v1569
      %s1579 = scalar_lea.vmem %s2, 35
      %v1580 = vld [vmem:[%s1579] ss:$8 sm:$0x3]
      %v1582 = vlaneseq
      %v1583 = vshrl.u32 %v1582, 7
      %v1584 = vsub.s32 0, %v1583
      %v1585 = vrot.slane %v1580, %v1584
      %v1586 = vlaneseq
      %v1587 = vshrl.u32 %v1586, 7
      %v1588 = vsub.s32 1, %v1587
      %v1589 = vrot.slane %v1580, %v1588
      %v1592 = vmul.f32 %v1575, %v1585
      %v1593 = vmul.f32 %v1577, %v1589
      %v1594 = vmul.f32 %v1576, %v1585
      %v1595 = vmul.f32 %v1578, %v1589
      %1596 = vst [vmem:[#allocation2 + $0x260] sm:$0xff] %v1592
      %1597 = vst [vmem:[#allocation2 + $0x268] sm:$0xff] %v1593
      %1598 = vst [vmem:[#allocation2 + $0x270] sm:$0xff] %v1594
      %1599 = vst [vmem:[#allocation2 + $0x278] sm:$0xff] %v1595
      %1600 = vrot.lane.b32.xlu0 %v589, 98
      %v1601 = vpop.permute.xlu0 %1600
      %1602 = vrot.lane.b32.xlu0 %v595, 98
      %v1603 = vpop.permute.xlu0 %1602
      %1604 = vrot.lane.b32.xlu0 %v591, 98
      %v1605 = vpop.permute.xlu0 %1604
      %1606 = vrot.lane.b32.xlu0 %v597, 98
      %v1607 = vpop.permute.xlu0 %1606
      %vm1608 = vcmp.lt.s32.totalorder %v621, 98
      %v1609 = vsel %vm1608, %v1601, %v1605
      %v1610 = vsel %vm1608, %v1603, %v1607
      %v1611 = vsel %vm1608, %v1605, %v1601
      %v1612 = vsel %vm1608, %v1607, %v1603
      %s1613 = scalar_lea.vmem %s2, 36
      %v1614 = vld [vmem:[%s1613] ss:$8 sm:$0x3]
      %v1616 = vlaneseq
      %v1617 = vshrl.u32 %v1616, 7
      %v1618 = vsub.s32 0, %v1617
      %v1619 = vrot.slane %v1614, %v1618
      %v1620 = vlaneseq
      %v1621 = vshrl.u32 %v1620, 7
      %v1622 = vsub.s32 1, %v1621
      %v1623 = vrot.slane %v1614, %v1622
      %v1626 = vmul.f32 %v1609, %v1619
      %v1627 = vmul.f32 %v1611, %v1623
      %v1628 = vmul.f32 %v1610, %v1619
      %v1629 = vmul.f32 %v1612, %v1623
      %1630 = vst [vmem:[#allocation2 + $0x280] sm:$0xff] %v1626
      %1631 = vst [vmem:[#allocation2 + $0x288] sm:$0xff] %v1627
      %1632 = vst [vmem:[#allocation2 + $0x290] sm:$0xff] %v1628
      %1633 = vst [vmem:[#allocation2 + $0x298] sm:$0xff] %v1629
      %1634 = vrot.lane.b32.xlu0 %v589, 97
      %v1635 = vpop.permute.xlu0 %1634
      %1636 = vrot.lane.b32.xlu0 %v595, 97
      %v1637 = vpop.permute.xlu0 %1636
      %1638 = vrot.lane.b32.xlu0 %v591, 97
      %v1639 = vpop.permute.xlu0 %1638
      %1640 = vrot.lane.b32.xlu0 %v597, 97
      %v1641 = vpop.permute.xlu0 %1640
      %vm1642 = vcmp.lt.s32.totalorder %v621, 97
      %v1643 = vsel %vm1642, %v1635, %v1639
      %v1644 = vsel %vm1642, %v1637, %v1641
      %v1645 = vsel %vm1642, %v1639, %v1635
      %v1646 = vsel %vm1642, %v1641, %v1637
      %s1647 = scalar_lea.vmem %s2, 37
      %v1648 = vld [vmem:[%s1647] ss:$8 sm:$0x3]
      %v1650 = vlaneseq
      %v1651 = vshrl.u32 %v1650, 7
      %v1652 = vsub.s32 0, %v1651
      %v1653 = vrot.slane %v1648, %v1652
      %v1654 = vlaneseq
      %v1655 = vshrl.u32 %v1654, 7
      %v1656 = vsub.s32 1, %v1655
      %v1657 = vrot.slane %v1648, %v1656
      %v1660 = vmul.f32 %v1643, %v1653
      %v1661 = vmul.f32 %v1645, %v1657
      %v1662 = vmul.f32 %v1644, %v1653
      %v1663 = vmul.f32 %v1646, %v1657
      %1664 = vst [vmem:[#allocation2 + $0x2a0] sm:$0xff] %v1660
      %1665 = vst [vmem:[#allocation2 + $0x2a8] sm:$0xff] %v1661
      %1666 = vst [vmem:[#allocation2 + $0x2b0] sm:$0xff] %v1662
      %1667 = vst [vmem:[#allocation2 + $0x2b8] sm:$0xff] %v1663
      %1668 = vrot.lane.b32.xlu0 %v589, 96
      %v1669 = vpop.permute.xlu0 %1668
      %1670 = vrot.lane.b32.xlu0 %v595, 96
      %v1671 = vpop.permute.xlu0 %1670
      %1672 = vrot.lane.b32.xlu0 %v591, 96
      %v1673 = vpop.permute.xlu0 %1672
      %1674 = vrot.lane.b32.xlu0 %v597, 96
      %v1675 = vpop.permute.xlu0 %1674
      %vm1676 = vcmp.lt.s32.totalorder %v621, 96
      %v1677 = vsel %vm1676, %v1669, %v1673
      %v1678 = vsel %vm1676, %v1671, %v1675
      %v1679 = vsel %vm1676, %v1673, %v1669
      %v1680 = vsel %vm1676, %v1675, %v1671
      %s1681 = scalar_lea.vmem %s2, 38
      %v1682 = vld [vmem:[%s1681] ss:$8 sm:$0x3]
      %v1684 = vlaneseq
      %v1685 = vshrl.u32 %v1684, 7
      %v1686 = vsub.s32 0, %v1685
      %v1687 = vrot.slane %v1682, %v1686
      %v1688 = vlaneseq
      %v1689 = vshrl.u32 %v1688, 7
      %v1690 = vsub.s32 1, %v1689
      %v1691 = vrot.slane %v1682, %v1690
      %v1694 = vmul.f32 %v1677, %v1687
      %v1695 = vmul.f32 %v1679, %v1691
      %v1696 = vmul.f32 %v1678, %v1687
      %v1697 = vmul.f32 %v1680, %v1691
      %1698 = vst [vmem:[#allocation2 + $0x2c0] sm:$0xff] %v1694
      %1699 = vst [vmem:[#allocation2 + $0x2c8] sm:$0xff] %v1695
      %1700 = vst [vmem:[#allocation2 + $0x2d0] sm:$0xff] %v1696
      %1701 = vst [vmem:[#allocation2 + $0x2d8] sm:$0xff] %v1697
      %1702 = vrot.lane.b32.xlu0 %v589, 95
      %v1703 = vpop.permute.xlu0 %1702
      %1704 = vrot.lane.b32.xlu0 %v595, 95
      %v1705 = vpop.permute.xlu0 %1704
      %1706 = vrot.lane.b32.xlu0 %v591, 95
      %v1707 = vpop.permute.xlu0 %1706
      %1708 = vrot.lane.b32.xlu0 %v597, 95
      %v1709 = vpop.permute.xlu0 %1708
      %vm1710 = vcmp.lt.s32.totalorder %v621, 95
      %v1711 = vsel %vm1710, %v1703, %v1707
      %v1712 = vsel %vm1710, %v1705, %v1709
      %v1713 = vsel %vm1710, %v1707, %v1703
      %v1714 = vsel %vm1710, %v1709, %v1705
      %s1715 = scalar_lea.vmem %s2, 39
      %v1716 = vld [vmem:[%s1715] ss:$8 sm:$0x3]
      %v1718 = vlaneseq
      %v1719 = vshrl.u32 %v1718, 7
      %v1720 = vsub.s32 0, %v1719
      %v1721 = vrot.slane %v1716, %v1720
      %v1722 = vlaneseq
      %v1723 = vshrl.u32 %v1722, 7
      %v1724 = vsub.s32 1, %v1723
      %v1725 = vrot.slane %v1716, %v1724
      %v1728 = vmul.f32 %v1711, %v1721
      %v1729 = vmul.f32 %v1713, %v1725
      %v1730 = vmul.f32 %v1712, %v1721
      %v1731 = vmul.f32 %v1714, %v1725
      %1732 = vst [vmem:[#allocation2 + $0x2e0] sm:$0xff] %v1728
      %1733 = vst [vmem:[#allocation2 + $0x2e8] sm:$0xff] %v1729
      %1734 = vst [vmem:[#allocation2 + $0x2f0] sm:$0xff] %v1730
      %1735 = vst [vmem:[#allocation2 + $0x2f8] sm:$0xff] %v1731
      %1736 = vrot.lane.b32.xlu0 %v589, 94
      %v1737 = vpop.permute.xlu0 %1736
      %1738 = vrot.lane.b32.xlu0 %v595, 94
      %v1739 = vpop.permute.xlu0 %1738
      %1740 = vrot.lane.b32.xlu0 %v591, 94
      %v1741 = vpop.permute.xlu0 %1740
      %1742 = vrot.lane.b32.xlu0 %v597, 94
      %v1743 = vpop.permute.xlu0 %1742
      %vm1744 = vcmp.lt.s32.totalorder %v621, 94
      %v1745 = vsel %vm1744, %v1737, %v1741
      %v1746 = vsel %vm1744, %v1739, %v1743
      %v1747 = vsel %vm1744, %v1741, %v1737
      %v1748 = vsel %vm1744, %v1743, %v1739
      %s1749 = scalar_lea.vmem %s2, 48
      %v1750 = vld [vmem:[%s1749] ss:$8 sm:$0x3]
      %v1752 = vlaneseq
      %v1753 = vshrl.u32 %v1752, 7
      %v1754 = vsub.s32 0, %v1753
      %v1755 = vrot.slane %v1750, %v1754
      %v1756 = vlaneseq
      %v1757 = vshrl.u32 %v1756, 7
      %v1758 = vsub.s32 1, %v1757
      %v1759 = vrot.slane %v1750, %v1758
      %v1762 = vmul.f32 %v1745, %v1755
      %v1763 = vmul.f32 %v1747, %v1759
      %v1764 = vmul.f32 %v1746, %v1755
      %v1765 = vmul.f32 %v1748, %v1759
      %1766 = vst [vmem:[#allocation2 + $0x300] sm:$0xff] %v1762
      %1767 = vst [vmem:[#allocation2 + $0x308] sm:$0xff] %v1763
      %1768 = vst [vmem:[#allocation2 + $0x310] sm:$0xff] %v1764
      %1769 = vst [vmem:[#allocation2 + $0x318] sm:$0xff] %v1765
      %v1770 = vld [vmem:[%s7] sm:$0xff]
      %v1771 = vld [vmem:[%s7 + $0x8] sm:$0xff]
      %v1772 = vld [vmem:[%s7 + $0x10] sm:$0xff]
      %v1773 = vld [vmem:[%s7 + $0x18] sm:$0xff]
      %v1774 = vld [vmem:[%s7 + $0x20] sm:$0xff]
      %v1775 = vld [vmem:[%s7 + $0x28] sm:$0xff]
      %v1776 = vld [vmem:[%s7 + $0x30] sm:$0xff]
      %v1777 = vld [vmem:[%s7 + $0x38] sm:$0xff]
      %v1778 = vld [vmem:[%s7 + $0x40] sm:$0xff]
      %v1779 = vld [vmem:[%s7 + $0x48] sm:$0xff]
      %v1780 = vld [vmem:[%s7 + $0x50] sm:$0xff]
      %v1781 = vld [vmem:[%s7 + $0x58] sm:$0xff]
      %v1782 = vld [vmem:[#allocation2] sm:$0xff]
      %v1783 = vld [vmem:[#allocation2 + $0x8] sm:$0xff]
      %v1784 = vld [vmem:[#allocation2 + $0x10] sm:$0xff]
      %v1785 = vld [vmem:[#allocation2 + $0x18] sm:$0xff]
      %v1786 = vld [vmem:[#allocation2 + $0x20] sm:$0xff]
      %v1787 = vld [vmem:[#allocation2 + $0x28] sm:$0xff]
      %v1788 = vld [vmem:[#allocation2 + $0x30] sm:$0xff]
      %v1789 = vld [vmem:[#allocation2 + $0x38] sm:$0xff]
      %v1790 = vld [vmem:[#allocation2 + $0x40] sm:$0xff]
      %v1791 = vld [vmem:[#allocation2 + $0x48] sm:$0xff]
      %v1792 = vld [vmem:[#allocation2 + $0x50] sm:$0xff]
      %v1793 = vld [vmem:[#allocation2 + $0x58] sm:$0xff]
      %v1794 = vld [vmem:[#allocation2 + $0x60] sm:$0xff]
      %v1795 = vld [vmem:[#allocation2 + $0x68] sm:$0xff]
      %v1796 = vld [vmem:[#allocation2 + $0x70] sm:$0xff]
      %v1797 = vld [vmem:[#allocation2 + $0x78] sm:$0xff]
      %v1798 = vld [vmem:[#allocation2 + $0x80] sm:$0xff]
      %v1799 = vld [vmem:[#allocation2 + $0x88] sm:$0xff]
      %v1800 = vld [vmem:[#allocation2 + $0x90] sm:$0xff]
      %v1801 = vld [vmem:[#allocation2 + $0x98] sm:$0xff]
      %v1802 = vld [vmem:[#allocation2 + $0xa0] sm:$0xff]
      %v1803 = vld [vmem:[#allocation2 + $0xa8] sm:$0xff]
      %v1804 = vld [vmem:[#allocation2 + $0xb0] sm:$0xff]
      %v1805 = vld [vmem:[#allocation2 + $0xb8] sm:$0xff]
      %v1806 = vld [vmem:[#allocation2 + $0xc0] sm:$0xff]
      %v1807 = vld [vmem:[#allocation2 + $0xc8] sm:$0xff]
      %v1808 = vld [vmem:[#allocation2 + $0xd0] sm:$0xff]
      %v1809 = vld [vmem:[#allocation2 + $0xd8] sm:$0xff]
      %v1810 = vld [vmem:[#allocation2 + $0xe0] sm:$0xff]
      %v1811 = vld [vmem:[#allocation2 + $0xe8] sm:$0xff]
      %v1812 = vld [vmem:[#allocation2 + $0xf0] sm:$0xff]
      %v1813 = vld [vmem:[#allocation2 + $0xf8] sm:$0xff]
      %v1814 = vld [vmem:[#allocation2 + $0x100] sm:$0xff]
      %v1815 = vld [vmem:[#allocation2 + $0x108] sm:$0xff]
      %v1816 = vld [vmem:[#allocation2 + $0x110] sm:$0xff]
      %v1817 = vld [vmem:[#allocation2 + $0x118] sm:$0xff]
      %v1818 = vld [vmem:[#allocation2 + $0x120] sm:$0xff]
      %v1819 = vld [vmem:[#allocation2 + $0x128] sm:$0xff]
      %v1820 = vld [vmem:[#allocation2 + $0x130] sm:$0xff]
      %v1821 = vld [vmem:[#allocation2 + $0x138] sm:$0xff]
      %v1822 = vld [vmem:[#allocation2 + $0x140] sm:$0xff]
      %v1823 = vld [vmem:[#allocation2 + $0x148] sm:$0xff]
      %v1824 = vld [vmem:[#allocation2 + $0x150] sm:$0xff]
      %v1825 = vld [vmem:[#allocation2 + $0x158] sm:$0xff]
      %v1826 = vld [vmem:[#allocation2 + $0x160] sm:$0xff]
      %v1827 = vld [vmem:[#allocation2 + $0x168] sm:$0xff]
      %v1828 = vld [vmem:[#allocation2 + $0x170] sm:$0xff]
      %v1829 = vld [vmem:[#allocation2 + $0x178] sm:$0xff]
      %v1830 = vld [vmem:[#allocation2 + $0x180] sm:$0xff]
      %v1831 = vld [vmem:[#allocation2 + $0x188] sm:$0xff]
      %v1832 = vld [vmem:[#allocation2 + $0x190] sm:$0xff]
      %v1833 = vld [vmem:[#allocation2 + $0x198] sm:$0xff]
      %v1834 = vld [vmem:[#allocation2 + $0x1a0] sm:$0xff]
      %v1835 = vld [vmem:[#allocation2 + $0x1a8] sm:$0xff]
      %v1836 = vld [vmem:[#allocation2 + $0x1b0] sm:$0xff]
      %v1837 = vld [vmem:[#allocation2 + $0x1b8] sm:$0xff]
      %v1838 = vld [vmem:[#allocation2 + $0x1c0] sm:$0xff]
      %v1839 = vld [vmem:[#allocation2 + $0x1c8] sm:$0xff]
      %v1840 = vld [vmem:[#allocation2 + $0x1d0] sm:$0xff]
      %v1841 = vld [vmem:[#allocation2 + $0x1d8] sm:$0xff]
      %v1842 = vld [vmem:[#allocation2 + $0x1e0] sm:$0xff]
      %v1843 = vld [vmem:[#allocation2 + $0x1e8] sm:$0xff]
      %v1844 = vld [vmem:[#allocation2 + $0x1f0] sm:$0xff]
      %v1845 = vld [vmem:[#allocation2 + $0x1f8] sm:$0xff]
      %v1846 = vld [vmem:[#allocation2 + $0x200] sm:$0xff]
      %v1847 = vld [vmem:[#allocation2 + $0x208] sm:$0xff]
      %v1848 = vld [vmem:[#allocation2 + $0x210] sm:$0xff]
      %v1849 = vld [vmem:[#allocation2 + $0x218] sm:$0xff]
      %v1850 = vld [vmem:[#allocation2 + $0x220] sm:$0xff]
      %v1851 = vld [vmem:[#allocation2 + $0x228] sm:$0xff]
      %v1852 = vld [vmem:[#allocation2 + $0x230] sm:$0xff]
      %v1853 = vld [vmem:[#allocation2 + $0x238] sm:$0xff]
      %v1854 = vld [vmem:[#allocation2 + $0x240] sm:$0xff]
      %v1855 = vld [vmem:[#allocation2 + $0x248] sm:$0xff]
      %v1856 = vld [vmem:[#allocation2 + $0x250] sm:$0xff]
      %v1857 = vld [vmem:[#allocation2 + $0x258] sm:$0xff]
      %v1858 = vld [vmem:[#allocation2 + $0x260] sm:$0xff]
      %v1859 = vld [vmem:[#allocation2 + $0x268] sm:$0xff]
      %v1860 = vld [vmem:[#allocation2 + $0x270] sm:$0xff]
      %v1861 = vld [vmem:[#allocation2 + $0x278] sm:$0xff]
      %v1862 = vld [vmem:[#allocation2 + $0x280] sm:$0xff]
      %v1863 = vld [vmem:[#allocation2 + $0x288] sm:$0xff]
      %v1864 = vld [vmem:[#allocation2 + $0x290] sm:$0xff]
      %v1865 = vld [vmem:[#allocation2 + $0x298] sm:$0xff]
      %v1866 = vld [vmem:[#allocation2 + $0x2a0] sm:$0xff]
      %v1867 = vld [vmem:[#allocation2 + $0x2a8] sm:$0xff]
      %v1868 = vld [vmem:[#allocation2 + $0x2b0] sm:$0xff]
      %v1869 = vld [vmem:[#allocation2 + $0x2b8] sm:$0xff]
      %v1870 = vld [vmem:[#allocation2 + $0x2c0] sm:$0xff]
      %v1871 = vld [vmem:[#allocation2 + $0x2c8] sm:$0xff]
      %v1872 = vld [vmem:[#allocation2 + $0x2d0] sm:$0xff]
      %v1873 = vld [vmem:[#allocation2 + $0x2d8] sm:$0xff]
      %v1874 = vld [vmem:[#allocation2 + $0x2e0] sm:$0xff]
      %v1875 = vld [vmem:[#allocation2 + $0x2e8] sm:$0xff]
      %v1876 = vld [vmem:[#allocation2 + $0x2f0] sm:$0xff]
      %v1877 = vld [vmem:[#allocation2 + $0x2f8] sm:$0xff]
      %v1878 = vld [vmem:[#allocation2 + $0x300] sm:$0xff]
      %v1879 = vld [vmem:[#allocation2 + $0x308] sm:$0xff]
      %v1880 = vld [vmem:[#allocation2 + $0x310] sm:$0xff]
      %v1881 = vld [vmem:[#allocation2 + $0x318] sm:$0xff]
      %v1882 = vld [vmem:[%s8] sm:$0xff]
      %v1883 = vld [vmem:[%s8 + $0x8] sm:$0xff]
      %v1884 = vld [vmem:[%s8 + $0x10] sm:$0xff]
      %1886 = vset.pattern.permute.xlu0 0
      %1887 = vperm.xlu0 %1886, %v1882
      %v1888 = vpop.permute.xlu0 %1887
      %1891 = vset.pattern.permute.xlu0 0
      %1892 = vperm.xlu0 %1891, %v1883
      %v1893 = vpop.permute.xlu0 %1892
      %1896 = vset.pattern.permute.xlu0 0
      %1897 = vperm.xlu0 %1896, %v1884
      %v1898 = vpop.permute.xlu0 %1897
      %vm1900 = vcmask 130048
      %v1902 = vsel %vm1900, %v1773, 0
      %v1905 = vsel %vm1900, %v1777, 0
      %v1908 = vsel %vm1900, %v1781, 0
      %1910 = vmatprep.subr.mxu0 %v1783
      %1911 = vmatpush1.msra.mxu0 %v1782
      %1912 = vmatprep.subr.mxu0 %v1785
      %1913 = vmatpush1.msra.mxu0 %v1784
      %1914 = vmatprep.subr.mxu0 %v1787
      %1915 = vmatpush1.msra.mxu0 %v1786
      %1916 = vmatprep.subr.mxu0 %v1789
      %1917 = vmatpush1.msra.mxu0 %v1788
      %1918 = vmatprep.subr.mxu0 %v1791
      %1919 = vmatpush1.msra.mxu0 %v1790
      %1920 = vmatprep.subr.mxu0 %v1793
      %1921 = vmatpush1.msra.mxu0 %v1792
      %1922 = vmatprep.subr.mxu0 %v1795
      %1923 = vmatpush1.msra.mxu0 %v1794
      %1924 = vmatprep.subr.mxu0 %v1797
      %1925 = vmatpush1.msra.mxu0 %v1796
      %1926 = vmatprep.subr.mxu0 %v1799
      %1927 = vmatpush1.msra.mxu0 %v1798
      %1928 = vmatprep.subr.mxu0 %v1801
      %1929 = vmatpush1.msra.mxu0 %v1800
      %1930 = vmatprep.subr.mxu0 %v1803
      %1931 = vmatpush1.msra.mxu0 %v1802
      %1932 = vmatprep.subr.mxu0 %v1805
      %1933 = vmatpush1.msra.mxu0 %v1804
      %1934 = vmatprep.subr.mxu0 %v1807
      %1935 = vmatpush1.msra.mxu0 %v1806
      %1936 = vmatprep.subr.mxu0 %v1809
      %1937 = vmatpush1.msra.mxu0 %v1808
      %1938 = vmatprep.subr.mxu0 %v1811
      %1939 = vmatpush1.msra.mxu0 %v1810
      %1940 = vmatprep.subr.mxu0 %v1813
      %1941 = vmatpush1.msra.mxu0 %v1812
      %1942 = vmatprep.subr.mxu0 %v1815
      %1943 = vmatpush1.msra.mxu0 %v1814
      %1944 = vmatprep.subr.mxu0 %v1817
      %1945 = vmatpush1.msra.mxu0 %v1816
      %1946 = vmatprep.subr.mxu0 %v1819
      %1947 = vmatpush1.msra.mxu0 %v1818
      %1948 = vmatprep.subr.mxu0 %v1821
      %1949 = vmatpush1.msra.mxu0 %v1820
      %1950 = vmatprep.subr.mxu0 %v1823
      %1951 = vmatpush1.msra.mxu0 %v1822
      %1952 = vmatprep.subr.mxu0 %v1825
      %1953 = vmatpush1.msra.mxu0 %v1824
      %1954 = vmatprep.subr.mxu0 %v1827
      %1955 = vmatpush1.msra.mxu0 %v1826
      %1956 = vmatprep.subr.mxu0 %v1829
      %1957 = vmatpush1.msra.mxu0 %v1828
      %1958 = vmatprep.subr.mxu0 %v1831
      %1959 = vmatpush1.msra.mxu0 %v1830
      %1960 = vmatprep.subr.mxu0 %v1833
      %1961 = vmatpush1.msra.mxu0 %v1832
      %1962 = vmatprep.subr.mxu0 %v1835
      %1963 = vmatpush1.msra.mxu0 %v1834
      %1964 = vmatprep.subr.mxu0 %v1837
      %1965 = vmatpush1.msra.mxu0 %v1836
      %1966 = vmatprep.subr.mxu0 %v1839
      %1967 = vmatpush1.msra.mxu0 %v1838
      %1968 = vmatprep.subr.mxu0 %v1841
      %1969 = vmatpush1.msra.mxu0 %v1840
      %1970 = vmatprep.subr.mxu0 %v1843
      %1971 = vmatpush1.msra.mxu0 %v1842
      %1972 = vmatprep.subr.mxu0 %v1845
      %1973 = vmatpush1.msra.mxu0 %v1844
      %1974 = vmatprep.mubr.f32.mxu0 %v1771
      %1975 = vmatmul.mubr.f32.gmra.mrb[0].mxu0 %v1770
      %v1976 = vpop.f32.mrb[0].mxu0
      %v1977 = vadd.f32 %v1888, %v1976
      %v1978 = vpop.f32.mrb[0].mxu0
      %v1979 = vadd.f32 %v1888, %v1978
      %1980 = vmatprep.mubr.f32.mxu0 %v1775
      %1981 = vmatmul.mubr.f32.gmra.mrb[0].mxu0 %v1774
      %v1982 = vpop.f32.mrb[0].mxu0
      %v1983 = vadd.f32 %v1893, %v1982
      %v1984 = vpop.f32.mrb[0].mxu0
      %v1985 = vadd.f32 %v1893, %v1984
      %1986 = vmatprep.mubr.f32.mxu0 %v1779
      %1987 = vmatmul.mubr.f32.gmra.mrb[0].mxu0 %v1778
      %v1988 = vpop.f32.mrb[0].mxu0
      %v1989 = vadd.f32 %v1898, %v1988
      %v1990 = vpop.f32.mrb[0].mxu0
      %v1991 = vadd.f32 %v1898, %v1990
      %1992 = vdwg.mxu0
      %1993 = vmatprep.subr.mxu0 %v1847
      %1994 = vmatpush1.msra.mxu0 %v1846
      %1995 = vmatprep.subr.mxu0 %v1849
      %1996 = vmatpush1.msra.mxu0 %v1848
      %1997 = vmatprep.subr.mxu0 %v1851
      %1998 = vmatpush1.msra.mxu0 %v1850
      %1999 = vmatprep.subr.mxu0 %v1853
      %2000 = vmatpush1.msra.mxu0 %v1852
      %2001 = vmatprep.subr.mxu0 %v1855
      %2002 = vmatpush1.msra.mxu0 %v1854
      %2003 = vmatprep.subr.mxu0 %v1857
      %2004 = vmatpush1.msra.mxu0 %v1856
      %2005 = vmatprep.subr.mxu0 %v1859
      %2006 = vmatpush1.msra.mxu0 %v1858
      %2007 = vmatprep.subr.mxu0 %v1861
      %2008 = vmatpush1.msra.mxu0 %v1860
      %2009 = vmatprep.subr.mxu0 %v1863
      %2010 = vmatpush1.msra.mxu0 %v1862
      %2011 = vmatprep.subr.mxu0 %v1865
      %2012 = vmatpush1.msra.mxu0 %v1864
      %2013 = vmatprep.subr.mxu0 %v1867
      %2014 = vmatpush1.msra.mxu0 %v1866
      %2015 = vmatprep.subr.mxu0 %v1869
      %2016 = vmatpush1.msra.mxu0 %v1868
      %2017 = vmatprep.subr.mxu0 %v1871
      %2018 = vmatpush1.msra.mxu0 %v1870
      %2019 = vmatprep.subr.mxu0 %v1873
      %2020 = vmatpush1.msra.mxu0 %v1872
      %2021 = vmatprep.subr.mxu0 %v1875
      %2022 = vmatpush1.msra.mxu0 %v1874
      %2023 = vmatprep.subr.mxu0 %v1877
      %2024 = vmatpush1.msra.mxu0 %v1876
      %2025 = vmatprep.subr.mxu0 %v1879
      %2026 = vmatpush1.msra.mxu0 %v1878
      %2027 = vmatprep.subr.mxu0 %v1881
      %2028 = vmatpush1.msra.mxu0 %v1880
      %2029 = vmatprep.subr.mxu0 0.0
      %2030 = vmatpush1.msra.mxu0 0.0
      %2031 = vmatprep.subr.mxu0 0.0
      %2032 = vmatpush1.msra.mxu0 0.0
      %2033 = vmatprep.subr.mxu0 0.0
      %2034 = vmatpush1.msra.mxu0 0.0
      %2035 = vmatprep.subr.mxu0 0.0
      %2036 = vmatpush1.msra.mxu0 0.0
      %2037 = vmatprep.subr.mxu0 0.0
      %2038 = vmatpush1.msra.mxu0 0.0
      %2039 = vmatprep.subr.mxu0 0.0
      %2040 = vmatpush1.msra.mxu0 0.0
      %2041 = vmatprep.subr.mxu0 0.0
      %2042 = vmatpush1.msra.mxu0 0.0
      %2043 = vmatprep.subr.mxu0 0.0
      %2044 = vmatpush1.msra.mxu0 0.0
      %2045 = vmatprep.subr.mxu0 0.0
      %2046 = vmatpush1.msra.mxu0 0.0
      %2047 = vmatprep.subr.mxu0 0.0
      %2048 = vmatpush1.msra.mxu0 0.0
      %2049 = vmatprep.subr.mxu0 0.0
      %2050 = vmatpush1.msra.mxu0 0.0
      %2051 = vmatprep.subr.mxu0 0.0
      %2052 = vmatpush1.msra.mxu0 0.0
      %2053 = vmatprep.subr.mxu0 0.0
      %2054 = vmatpush1.msra.mxu0 0.0
      %2055 = vmatprep.subr.mxu0 0.0
      %2056 = vmatpush1.msra.mxu0 0.0
      %2057 = vmatprep.mubr.f32.mxu0 %v1902
      %2058 = vmatmul.mubr.f32.gmra.mrb[0].mxu0 %v1772
      %v2059 = vpop.f32.mrb[0].mxu0
      %v2060 = vadd.f32 %v1977, %v2059
      %v2061 = vpop.f32.mrb[0].mxu0
      %v2062 = vadd.f32 %v1979, %v2061
      %2063 = vmatprep.mubr.f32.mxu0 %v1905
      %2064 = vmatmul.mubr.f32.gmra.mrb[0].mxu0 %v1776
      %v2065 = vpop.f32.mrb[0].mxu0
      %v2066 = vadd.f32 %v1983, %v2065
      %v2067 = vpop.f32.mrb[0].mxu0
      %v2068 = vadd.f32 %v1985, %v2067
      %2069 = vmatprep.mubr.f32.mxu0 %v1908
      %2070 = vmatmul.mubr.f32.gmra.mrb[0].mxu0 %v1780
      %v2071 = vpop.f32.mrb[0].mxu0
      %v2072 = vadd.f32 %v1989, %v2071
      %v2073 = vpop.f32.mrb[0].mxu0
      %v2074 = vadd.f32 %v1991, %v2073
      %2075 = vdwg.mxu0
      %2076 = vst [vmem:[%s440 + $0x50] sm:$0xff] %v2060
      %2077 = vst [vmem:[%s440 + $0x58] sm:$0xff] %v2062
      %2078 = vst [vmem:[%s440 + $0x60] sm:$0xff] %v2066
      %2079 = vst [vmem:[%s440 + $0x68] sm:$0xff] %v2068
      %2080 = vst [vmem:[%s440 + $0x70] sm:$0xff] %v2072
      %2081 = vst [vmem:[%s440 + $0x78] sm:$0xff] %v2074
      %2082 = vrot.lane.b32.xlu0 %v601, 17
      %v2083 = vpop.permute.xlu0 %2082
      %2084 = vrot.lane.b32.xlu0 %v607, 17
      %v2085 = vpop.permute.xlu0 %2084
      %2086 = vrot.lane.b32.xlu0 %v603, 17
      %v2087 = vpop.permute.xlu0 %2086
      %2088 = vrot.lane.b32.xlu0 %v609, 17
      %v2089 = vpop.permute.xlu0 %2088
      %v2090 = vsel %vm622, %v2083, %v2087
      %v2091 = vsel %vm622, %v2085, %v2089
      %v2092 = vsel %vm622, %v2087, %v2083
      %v2093 = vsel %vm622, %v2089, %v2085
      %v2094 = vld [vmem:[%s1] ss:$8 sm:$0x3]
      %v2096 = vlaneseq
      %v2097 = vshrl.u32 %v2096, 7
      %v2098 = vsub.s32 0, %v2097
      %v2099 = vrot.slane %v2094, %v2098
      %v2100 = vlaneseq
      %v2101 = vshrl.u32 %v2100, 7
      %v2102 = vsub.s32 1, %v2101
      %v2103 = vrot.slane %v2094, %v2102
      %v2106 = vmul.f32 %v2092, %v2099
      %v2107 = vmul.f32 %v2090, %v2103
      %v2108 = vmul.f32 %v2093, %v2099
      %v2109 = vmul.f32 %v2091, %v2103
      %2110 = vst [vmem:[#allocation3] sm:$0xff] %v2106
      %2111 = vst [vmem:[#allocation3 + $0x8] sm:$0xff] %v2107
      %2112 = vst [vmem:[#allocation3 + $0x10] sm:$0xff] %v2108
      %2113 = vst [vmem:[#allocation3 + $0x18] sm:$0xff] %v2109
      %2114 = vrot.lane.b32.xlu0 %v601, 16
      %v2115 = vpop.permute.xlu0 %2114
      %2116 = vrot.lane.b32.xlu0 %v607, 16
      %v2117 = vpop.permute.xlu0 %2116
      %2118 = vrot.lane.b32.xlu0 %v603, 16
      %v2119 = vpop.permute.xlu0 %2118
      %2120 = vrot.lane.b32.xlu0 %v609, 16
      %v2121 = vpop.permute.xlu0 %2120
      %v2122 = vsel %vm648, %v2115, %v2119
      %v2123 = vsel %vm648, %v2117, %v2121
      %v2124 = vsel %vm648, %v2119, %v2115
      %v2125 = vsel %vm648, %v2121, %v2117
      %v2126 = vld [vmem:[%s651] ss:$8 sm:$0x3]
      %v2128 = vlaneseq
      %v2129 = vshrl.u32 %v2128, 7
      %v2130 = vsub.s32 0, %v2129
      %v2131 = vrot.slane %v2126, %v2130
      %v2132 = vlaneseq
      %v2133 = vshrl.u32 %v2132, 7
      %v2134 = vsub.s32 1, %v2133
      %v2135 = vrot.slane %v2126, %v2134
      %v2138 = vmul.f32 %v2124, %v2131
      %v2139 = vmul.f32 %v2122, %v2135
      %v2140 = vmul.f32 %v2125, %v2131
      %v2141 = vmul.f32 %v2123, %v2135
      %2142 = vst [vmem:[#allocation3 + $0x20] sm:$0xff] %v2138
      %2143 = vst [vmem:[#allocation3 + $0x28] sm:$0xff] %v2139
      %2144 = vst [vmem:[#allocation3 + $0x30] sm:$0xff] %v2140
      %2145 = vst [vmem:[#allocation3 + $0x38] sm:$0xff] %v2141
      %2146 = vrot.lane.b32.xlu0 %v601, 15
      %v2147 = vpop.permute.xlu0 %2146
      %2148 = vrot.lane.b32.xlu0 %v607, 15
      %v2149 = vpop.permute.xlu0 %2148
      %2150 = vrot.lane.b32.xlu0 %v603, 15
      %v2151 = vpop.permute.xlu0 %2150
      %2152 = vrot.lane.b32.xlu0 %v609, 15
      %v2153 = vpop.permute.xlu0 %2152
      %v2154 = vsel %vm675, %v2147, %v2151
      %v2155 = vsel %vm675, %v2149, %v2153
      %v2156 = vsel %vm675, %v2151, %v2147
      %v2157 = vsel %vm675, %v2153, %v2149
      %v2158 = vld [vmem:[%s678] ss:$8 sm:$0x3]
      %v2160 = vlaneseq
      %v2161 = vshrl.u32 %v2160, 7
      %v2162 = vsub.s32 0, %v2161
      %v2163 = vrot.slane %v2158, %v2162
      %v2164 = vlaneseq
      %v2165 = vshrl.u32 %v2164, 7
      %v2166 = vsub.s32 1, %v2165
      %v2167 = vrot.slane %v2158, %v2166
      %v2170 = vmul.f32 %v2156, %v2163
      %v2171 = vmul.f32 %v2154, %v2167
      %v2172 = vmul.f32 %v2157, %v2163
      %v2173 = vmul.f32 %v2155, %v2167
      %2174 = vst [vmem:[#allocation3 + $0x40] sm:$0xff] %v2170
      %2175 = vst [vmem:[#allocation3 + $0x48] sm:$0xff] %v2171
      %2176 = vst [vmem:[#allocation3 + $0x50] sm:$0xff] %v2172
      %2177 = vst [vmem:[#allocation3 + $0x58] sm:$0xff] %v2173
      %2178 = vrot.lane.b32.xlu0 %v601, 1
      %v2179 = vpop.permute.xlu0 %2178
      %2180 = vrot.lane.b32.xlu0 %v607, 1
      %v2181 = vpop.permute.xlu0 %2180
      %2182 = vrot.lane.b32.xlu0 %v603, 1
      %v2183 = vpop.permute.xlu0 %2182
      %2184 = vrot.lane.b32.xlu0 %v609, 1
      %v2185 = vpop.permute.xlu0 %2184
      %v2186 = vsel %vm702, %v2179, %v2183
      %v2187 = vsel %vm702, %v2181, %v2185
      %v2188 = vsel %vm702, %v2183, %v2179
      %v2189 = vsel %vm702, %v2185, %v2181
      %v2190 = vld [vmem:[%s705] ss:$8 sm:$0x3]
      %v2192 = vlaneseq
      %v2193 = vshrl.u32 %v2192, 7
      %v2194 = vsub.s32 0, %v2193
      %v2195 = vrot.slane %v2190, %v2194
      %v2196 = vlaneseq
      %v2197 = vshrl.u32 %v2196, 7
      %v2198 = vsub.s32 1, %v2197
      %v2199 = vrot.slane %v2190, %v2198
      %v2202 = vmul.f32 %v2188, %v2195
      %v2203 = vmul.f32 %v2186, %v2199
      %v2204 = vmul.f32 %v2189, %v2195
      %v2205 = vmul.f32 %v2187, %v2199
      %2206 = vst [vmem:[#allocation3 + $0x60] sm:$0xff] %v2202
      %2207 = vst [vmem:[#allocation3 + $0x68] sm:$0xff] %v2203
      %2208 = vst [vmem:[#allocation3 + $0x70] sm:$0xff] %v2204
      %2209 = vst [vmem:[#allocation3 + $0x78] sm:$0xff] %v2205
      %2210 = vst [vmem:[#allocation3 + $0x80] sm:$0xff] %v601
      %2211 = vst [vmem:[#allocation3 + $0x88] sm:$0xff] %v603
      %2212 = vst [vmem:[#allocation3 + $0x90] sm:$0xff] %v607
      %2213 = vst [vmem:[#allocation3 + $0x98] sm:$0xff] %v609
      %2214 = vrot.lane.b32.xlu0 %v601, 127
      %v2215 = vpop.permute.xlu0 %2214
      %2216 = vrot.lane.b32.xlu0 %v607, 127
      %v2217 = vpop.permute.xlu0 %2216
      %2218 = vrot.lane.b32.xlu0 %v603, 127
      %v2219 = vpop.permute.xlu0 %2218
      %2220 = vrot.lane.b32.xlu0 %v609, 127
      %v2221 = vpop.permute.xlu0 %2220
      %v2222 = vsel %vm729, %v2215, %v2219
      %v2223 = vsel %vm729, %v2217, %v2221
      %v2224 = vsel %vm729, %v2219, %v2215
      %v2225 = vsel %vm729, %v2221, %v2217
      %v2226 = vld [vmem:[%s732] ss:$8 sm:$0x3]
      %v2228 = vlaneseq
      %v2229 = vshrl.u32 %v2228, 7
      %v2230 = vsub.s32 0, %v2229
      %v2231 = vrot.slane %v2226, %v2230
      %v2232 = vlaneseq
      %v2233 = vshrl.u32 %v2232, 7
      %v2234 = vsub.s32 1, %v2233
      %v2235 = vrot.slane %v2226, %v2234
      %v2238 = vmul.f32 %v2222, %v2231
      %v2239 = vmul.f32 %v2224, %v2235
      %v2240 = vmul.f32 %v2223, %v2231
      %v2241 = vmul.f32 %v2225, %v2235
      %2242 = vst [vmem:[#allocation3 + $0xa0] sm:$0xff] %v2238
      %2243 = vst [vmem:[#allocation3 + $0xa8] sm:$0xff] %v2239
      %2244 = vst [vmem:[#allocation3 + $0xb0] sm:$0xff] %v2240
      %2245 = vst [vmem:[#allocation3 + $0xb8] sm:$0xff] %v2241
      %2246 = vrot.lane.b32.xlu0 %v601, 113
      %v2247 = vpop.permute.xlu0 %2246
      %2248 = vrot.lane.b32.xlu0 %v607, 113
      %v2249 = vpop.permute.xlu0 %2248
      %2250 = vrot.lane.b32.xlu0 %v603, 113
      %v2251 = vpop.permute.xlu0 %2250
      %2252 = vrot.lane.b32.xlu0 %v609, 113
      %v2253 = vpop.permute.xlu0 %2252
      %v2254 = vsel %vm756, %v2247, %v2251
      %v2255 = vsel %vm756, %v2249, %v2253
      %v2256 = vsel %vm756, %v2251, %v2247
      %v2257 = vsel %vm756, %v2253, %v2249
      %v2258 = vld [vmem:[%s759] ss:$8 sm:$0x3]
      %v2260 = vlaneseq
      %v2261 = vshrl.u32 %v2260, 7
      %v2262 = vsub.s32 0, %v2261
      %v2263 = vrot.slane %v2258, %v2262
      %v2264 = vlaneseq
      %v2265 = vshrl.u32 %v2264, 7
      %v2266 = vsub.s32 1, %v2265
      %v2267 = vrot.slane %v2258, %v2266
      %v2270 = vmul.f32 %v2254, %v2263
      %v2271 = vmul.f32 %v2256, %v2267
      %v2272 = vmul.f32 %v2255, %v2263
      %v2273 = vmul.f32 %v2257, %v2267
      %2274 = vst [vmem:[#allocation3 + $0xc0] sm:$0xff] %v2270
      %2275 = vst [vmem:[#allocation3 + $0xc8] sm:$0xff] %v2271
      %2276 = vst [vmem:[#allocation3 + $0xd0] sm:$0xff] %v2272
      %2277 = vst [vmem:[#allocation3 + $0xd8] sm:$0xff] %v2273
      %2278 = vrot.lane.b32.xlu0 %v601, 112
      %v2279 = vpop.permute.xlu0 %2278
      %2280 = vrot.lane.b32.xlu0 %v607, 112
      %v2281 = vpop.permute.xlu0 %2280
      %2282 = vrot.lane.b32.xlu0 %v603, 112
      %v2283 = vpop.permute.xlu0 %2282
      %2284 = vrot.lane.b32.xlu0 %v609, 112
      %v2285 = vpop.permute.xlu0 %2284
      %v2286 = vsel %vm783, %v2279, %v2283
      %v2287 = vsel %vm783, %v2281, %v2285
      %v2288 = vsel %vm783, %v2283, %v2279
      %v2289 = vsel %vm783, %v2285, %v2281
      %v2290 = vld [vmem:[%s786] ss:$8 sm:$0x3]
      %v2292 = vlaneseq
      %v2293 = vshrl.u32 %v2292, 7
      %v2294 = vsub.s32 0, %v2293
      %v2295 = vrot.slane %v2290, %v2294
      %v2296 = vlaneseq
      %v2297 = vshrl.u32 %v2296, 7
      %v2298 = vsub.s32 1, %v2297
      %v2299 = vrot.slane %v2290, %v2298
      %v2302 = vmul.f32 %v2286, %v2295
      %v2303 = vmul.f32 %v2288, %v2299
      %v2304 = vmul.f32 %v2287, %v2295
      %v2305 = vmul.f32 %v2289, %v2299
      %2306 = vst [vmem:[#allocation3 + $0xe0] sm:$0xff] %v2302
      %2307 = vst [vmem:[#allocation3 + $0xe8] sm:$0xff] %v2303
      %2308 = vst [vmem:[#allocation3 + $0xf0] sm:$0xff] %v2304
      %2309 = vst [vmem:[#allocation3 + $0xf8] sm:$0xff] %v2305
      %2310 = vrot.lane.b32.xlu0 %v601, 111
      %v2311 = vpop.permute.xlu0 %2310
      %2312 = vrot.lane.b32.xlu0 %v607, 111
      %v2313 = vpop.permute.xlu0 %2312
      %2314 = vrot.lane.b32.xlu0 %v603, 111
      %v2315 = vpop.permute.xlu0 %2314
      %2316 = vrot.lane.b32.xlu0 %v609, 111
      %v2317 = vpop.permute.xlu0 %2316
      %v2318 = vsel %vm810, %v2311, %v2315
      %v2319 = vsel %vm810, %v2313, %v2317
      %v2320 = vsel %vm810, %v2315, %v2311
      %v2321 = vsel %vm810, %v2317, %v2313
      %v2322 = vld [vmem:[%s813] ss:$8 sm:$0x3]
      %v2324 = vlaneseq
      %v2325 = vshrl.u32 %v2324, 7
      %v2326 = vsub.s32 0, %v2325
      %v2327 = vrot.slane %v2322, %v2326
      %v2328 = vlaneseq
      %v2329 = vshrl.u32 %v2328, 7
      %v2330 = vsub.s32 1, %v2329
      %v2331 = vrot.slane %v2322, %v2330
      %v2334 = vmul.f32 %v2318, %v2327
      %v2335 = vmul.f32 %v2320, %v2331
      %v2336 = vmul.f32 %v2319, %v2327
      %v2337 = vmul.f32 %v2321, %v2331
      %2338 = vst [vmem:[#allocation3 + $0x100] sm:$0xff] %v2334
      %2339 = vst [vmem:[#allocation3 + $0x108] sm:$0xff] %v2335
      %2340 = vst [vmem:[#allocation3 + $0x110] sm:$0xff] %v2336
      %2341 = vst [vmem:[#allocation3 + $0x118] sm:$0xff] %v2337
      %v2342 = vld [vmem:[%s9] sm:$0xff]
      %v2343 = vld [vmem:[%s9 + $0x8] sm:$0xff]
      %v2344 = vld [vmem:[%s9 + $0x10] sm:$0xff]
      %v2345 = vld [vmem:[%s9 + $0x18] sm:$0xff]
      %v2346 = vld [vmem:[%s9 + $0x20] sm:$0xff]
      %v2347 = vld [vmem:[%s9 + $0x28] sm:$0xff]
      %v2348 = vld [vmem:[#allocation3] sm:$0xff]
      %v2349 = vld [vmem:[#allocation3 + $0x8] sm:$0xff]
      %v2350 = vld [vmem:[#allocation3 + $0x10] sm:$0xff]
      %v2351 = vld [vmem:[#allocation3 + $0x18] sm:$0xff]
      %v2352 = vld [vmem:[#allocation3 + $0x20] sm:$0xff]
      %v2353 = vld [vmem:[#allocation3 + $0x28] sm:$0xff]
      %v2354 = vld [vmem:[#allocation3 + $0x30] sm:$0xff]
      %v2355 = vld [vmem:[#allocation3 + $0x38] sm:$0xff]
      %v2356 = vld [vmem:[#allocation3 + $0x40] sm:$0xff]
      %v2357 = vld [vmem:[#allocation3 + $0x48] sm:$0xff]
      %v2358 = vld [vmem:[#allocation3 + $0x50] sm:$0xff]
      %v2359 = vld [vmem:[#allocation3 + $0x58] sm:$0xff]
      %v2360 = vld [vmem:[#allocation3 + $0x60] sm:$0xff]
      %v2361 = vld [vmem:[#allocation3 + $0x68] sm:$0xff]
      %v2362 = vld [vmem:[#allocation3 + $0x70] sm:$0xff]
      %v2363 = vld [vmem:[#allocation3 + $0x78] sm:$0xff]
      %v2364 = vld [vmem:[#allocation3 + $0x80] sm:$0xff]
      %v2365 = vld [vmem:[#allocation3 + $0x88] sm:$0xff]
      %v2366 = vld [vmem:[#allocation3 + $0x90] sm:$0xff]
      %v2367 = vld [vmem:[#allocation3 + $0x98] sm:$0xff]
      %v2368 = vld [vmem:[#allocation3 + $0xa0] sm:$0xff]
      %v2369 = vld [vmem:[#allocation3 + $0xa8] sm:$0xff]
      %v2370 = vld [vmem:[#allocation3 + $0xb0] sm:$0xff]
      %v2371 = vld [vmem:[#allocation3 + $0xb8] sm:$0xff]
      %v2372 = vld [vmem:[#allocation3 + $0xc0] sm:$0xff]
      %v2373 = vld [vmem:[#allocation3 + $0xc8] sm:$0xff]
      %v2374 = vld [vmem:[#allocation3 + $0xd0] sm:$0xff]
      %v2375 = vld [vmem:[#allocation3 + $0xd8] sm:$0xff]
      %v2376 = vld [vmem:[#allocation3 + $0xe0] sm:$0xff]
      %v2377 = vld [vmem:[#allocation3 + $0xe8] sm:$0xff]
      %v2378 = vld [vmem:[#allocation3 + $0xf0] sm:$0xff]
      %v2379 = vld [vmem:[#allocation3 + $0xf8] sm:$0xff]
      %v2380 = vld [vmem:[#allocation3 + $0x100] sm:$0xff]
      %v2381 = vld [vmem:[#allocation3 + $0x108] sm:$0xff]
      %v2382 = vld [vmem:[#allocation3 + $0x110] sm:$0xff]
      %v2383 = vld [vmem:[#allocation3 + $0x118] sm:$0xff]
      %v2384 = vld [vmem:[%s10] sm:$0xff]
      %v2385 = vld [vmem:[%s10 + $0x8] sm:$0xff]
      %v2386 = vld [vmem:[%s10 + $0x10] sm:$0xff]
      %2388 = vset.pattern.permute.xlu0 0
      %2389 = vperm.xlu0 %2388, %v2384
      %v2390 = vpop.permute.xlu0 %2389
      %2393 = vset.pattern.permute.xlu0 0
      %2394 = vperm.xlu0 %2393, %v2385
      %v2395 = vpop.permute.xlu0 %2394
      %2398 = vset.pattern.permute.xlu0 0
      %2399 = vperm.xlu0 %2398, %v2386
      %v2400 = vpop.permute.xlu0 %2399
      %v2403 = vsel %vm1900, %v2343, 0
      %v2406 = vsel %vm1900, %v2345, 0
      %v2409 = vsel %vm1900, %v2347, 0
      %2411 = vmatprep.subr.mxu0 %v2349
      %2412 = vmatpush1.msra.mxu0 %v2348
      %2413 = vmatprep.subr.mxu0 %v2351
      %2414 = vmatpush1.msra.mxu0 %v2350
      %2415 = vmatprep.subr.mxu0 %v2353
      %2416 = vmatpush1.msra.mxu0 %v2352
      %2417 = vmatprep.subr.mxu0 %v2355
      %2418 = vmatpush1.msra.mxu0 %v2354
      %2419 = vmatprep.subr.mxu0 %v2357
      %2420 = vmatpush1.msra.mxu0 %v2356
      %2421 = vmatprep.subr.mxu0 %v2359
      %2422 = vmatpush1.msra.mxu0 %v2358
      %2423 = vmatprep.subr.mxu0 %v2361
      %2424 = vmatpush1.msra.mxu0 %v2360
      %2425 = vmatprep.subr.mxu0 %v2363
      %2426 = vmatpush1.msra.mxu0 %v2362
      %2427 = vmatprep.subr.mxu0 %v2365
      %2428 = vmatpush1.msra.mxu0 %v2364
      %2429 = vmatprep.subr.mxu0 %v2367
      %2430 = vmatpush1.msra.mxu0 %v2366
      %2431 = vmatprep.subr.mxu0 %v2369
      %2432 = vmatpush1.msra.mxu0 %v2368
      %2433 = vmatprep.subr.mxu0 %v2371
      %2434 = vmatpush1.msra.mxu0 %v2370
      %2435 = vmatprep.subr.mxu0 %v2373
      %2436 = vmatpush1.msra.mxu0 %v2372
      %2437 = vmatprep.subr.mxu0 %v2375
      %2438 = vmatpush1.msra.mxu0 %v2374
      %2439 = vmatprep.subr.mxu0 %v2377
      %2440 = vmatpush1.msra.mxu0 %v2376
      %2441 = vmatprep.subr.mxu0 %v2379
      %2442 = vmatpush1.msra.mxu0 %v2378
      %2443 = vmatprep.subr.mxu0 %v2381
      %2444 = vmatpush1.msra.mxu0 %v2380
      %2445 = vmatprep.subr.mxu0 %v2383
      %2446 = vmatpush1.msra.mxu0 %v2382
      %2447 = vmatprep.subr.mxu0 0.0
      %2448 = vmatpush1.msra.mxu0 0.0
      %2449 = vmatprep.subr.mxu0 0.0
      %2450 = vmatpush1.msra.mxu0 0.0
      %2451 = vmatprep.subr.mxu0 0.0
      %2452 = vmatpush1.msra.mxu0 0.0
      %2453 = vmatprep.subr.mxu0 0.0
      %2454 = vmatpush1.msra.mxu0 0.0
      %2455 = vmatprep.subr.mxu0 0.0
      %2456 = vmatpush1.msra.mxu0 0.0
      %2457 = vmatprep.subr.mxu0 0.0
      %2458 = vmatpush1.msra.mxu0 0.0
      %2459 = vmatprep.subr.mxu0 0.0
      %2460 = vmatpush1.msra.mxu0 0.0
      %2461 = vmatprep.subr.mxu0 0.0
      %2462 = vmatpush1.msra.mxu0 0.0
      %2463 = vmatprep.subr.mxu0 0.0
      %2464 = vmatpush1.msra.mxu0 0.0
      %2465 = vmatprep.subr.mxu0 0.0
      %2466 = vmatpush1.msra.mxu0 0.0
      %2467 = vmatprep.subr.mxu0 0.0
      %2468 = vmatpush1.msra.mxu0 0.0
      %2469 = vmatprep.subr.mxu0 0.0
      %2470 = vmatpush1.msra.mxu0 0.0
      %2471 = vmatprep.subr.mxu0 0.0
      %2472 = vmatpush1.msra.mxu0 0.0
      %2473 = vmatprep.subr.mxu0 0.0
      %2474 = vmatpush1.msra.mxu0 0.0
      %2475 = vmatprep.mubr.f32.mxu0 %v2403
      %2476 = vmatmul.mubr.f32.gmra.mrb[0].mxu0 %v2342
      %v2477 = vpop.f32.mrb[0].mxu0
      %v2478 = vadd.f32 %v2390, %v2477
      %v2479 = vpop.f32.mrb[0].mxu0
      %v2480 = vadd.f32 %v2390, %v2479
      %2481 = vmatprep.mubr.f32.mxu0 %v2406
      %2482 = vmatmul.mubr.f32.gmra.mrb[0].mxu0 %v2344
      %v2483 = vpop.f32.mrb[0].mxu0
      %v2484 = vadd.f32 %v2395, %v2483
      %v2485 = vpop.f32.mrb[0].mxu0
      %v2486 = vadd.f32 %v2395, %v2485
      %2487 = vmatprep.mubr.f32.mxu0 %v2409
      %2488 = vmatmul.mubr.f32.gmra.mrb[0].mxu0 %v2346
      %v2489 = vpop.f32.mrb[0].mxu0
      %v2490 = vadd.f32 %v2400, %v2489
      %v2491 = vpop.f32.mrb[0].mxu0
      %v2492 = vadd.f32 %v2400, %v2491
      %2493 = vdwg.mxu0
      %2494 = vrot.lane.b32.xlu0 %v2478, 17
      %v2495 = vpop.permute.xlu0 %2494
      %2496 = vrot.lane.b32.xlu0 %v2484, 17
      %v2497 = vpop.permute.xlu0 %2496
      %2498 = vrot.lane.b32.xlu0 %v2490, 17
      %v2499 = vpop.permute.xlu0 %2498
      %2500 = vrot.lane.b32.xlu0 %v2480, 17
      %v2501 = vpop.permute.xlu0 %2500
      %2502 = vrot.lane.b32.xlu0 %v2486, 17
      %v2503 = vpop.permute.xlu0 %2502
      %2504 = vrot.lane.b32.xlu0 %v2492, 17
      %v2505 = vpop.permute.xlu0 %2504
      %v2506 = vsel %vm622, %v2495, %v2501
      %v2507 = vsel %vm622, %v2497, %v2503
      %v2508 = vsel %vm622, %v2499, %v2505
      %v2509 = vsel %vm622, %v2501, %v2495
      %v2510 = vsel %vm622, %v2503, %v2497
      %v2511 = vsel %vm622, %v2505, %v2499
      %v2512 = vld [vmem:[%s1] ss:$8 sm:$0x3]
      %v2514 = vlaneseq
      %v2515 = vshrl.u32 %v2514, 7
      %v2516 = vsub.s32 0, %v2515
      %v2517 = vrot.slane %v2512, %v2516
      %v2518 = vlaneseq
      %v2519 = vshrl.u32 %v2518, 7
      %v2520 = vsub.s32 1, %v2519
      %v2521 = vrot.slane %v2512, %v2520
      %v2524 = vmul.f32 %v2509, %v2517
      %v2525 = vmul.f32 %v2506, %v2521
      %v2526 = vmul.f32 %v2510, %v2517
      %v2527 = vmul.f32 %v2507, %v2521
      %v2528 = vmul.f32 %v2511, %v2517
      %v2529 = vmul.f32 %v2508, %v2521
      %2530 = vst [vmem:[#allocation4] sm:$0xff] %v2524
      %2531 = vst [vmem:[#allocation4 + $0x8] sm:$0xff] %v2525
      %2532 = vst [vmem:[#allocation4 + $0x10] sm:$0xff] %v2526
      %2533 = vst [vmem:[#allocation4 + $0x18] sm:$0xff] %v2527
      %2534 = vst [vmem:[#allocation4 + $0x20] sm:$0xff] %v2528
      %2535 = vst [vmem:[#allocation4 + $0x28] sm:$0xff] %v2529
      %2536 = vrot.lane.b32.xlu0 %v2478, 16
      %v2537 = vpop.permute.xlu0 %2536
      %2538 = vrot.lane.b32.xlu0 %v2484, 16
      %v2539 = vpop.permute.xlu0 %2538
      %2540 = vrot.lane.b32.xlu0 %v2490, 16
      %v2541 = vpop.permute.xlu0 %2540
      %2542 = vrot.lane.b32.xlu0 %v2480, 16
      %v2543 = vpop.permute.xlu0 %2542
      %2544 = vrot.lane.b32.xlu0 %v2486, 16
      %v2545 = vpop.permute.xlu0 %2544
      %2546 = vrot.lane.b32.xlu0 %v2492, 16
      %v2547 = vpop.permute.xlu0 %2546
      %v2548 = vsel %vm648, %v2537, %v2543
      %v2549 = vsel %vm648, %v2539, %v2545
      %v2550 = vsel %vm648, %v2541, %v2547
      %v2551 = vsel %vm648, %v2543, %v2537
      %v2552 = vsel %vm648, %v2545, %v2539
      %v2553 = vsel %vm648, %v2547, %v2541
      %v2554 = vld [vmem:[%s651] ss:$8 sm:$0x3]
      %v2556 = vlaneseq
      %v2557 = vshrl.u32 %v2556, 7
      %v2558 = vsub.s32 0, %v2557
      %v2559 = vrot.slane %v2554, %v2558
      %v2560 = vlaneseq
      %v2561 = vshrl.u32 %v2560, 7
      %v2562 = vsub.s32 1, %v2561
      %v2563 = vrot.slane %v2554, %v2562
      %v2566 = vmul.f32 %v2551, %v2559
      %v2567 = vmul.f32 %v2548, %v2563
      %v2568 = vmul.f32 %v2552, %v2559
      %v2569 = vmul.f32 %v2549, %v2563
      %v2570 = vmul.f32 %v2553, %v2559
      %v2571 = vmul.f32 %v2550, %v2563
      %2572 = vst [vmem:[#allocation4 + $0x30] sm:$0xff] %v2566
      %2573 = vst [vmem:[#allocation4 + $0x38] sm:$0xff] %v2567
      %2574 = vst [vmem:[#allocation4 + $0x40] sm:$0xff] %v2568
      %2575 = vst [vmem:[#allocation4 + $0x48] sm:$0xff] %v2569
      %2576 = vst [vmem:[#allocation4 + $0x50] sm:$0xff] %v2570
      %2577 = vst [vmem:[#allocation4 + $0x58] sm:$0xff] %v2571
      %2578 = vrot.lane.b32.xlu0 %v2478, 15
      %v2579 = vpop.permute.xlu0 %2578
      %2580 = vrot.lane.b32.xlu0 %v2484, 15
      %v2581 = vpop.permute.xlu0 %2580
      %2582 = vrot.lane.b32.xlu0 %v2490, 15
      %v2583 = vpop.permute.xlu0 %2582
      %2584 = vrot.lane.b32.xlu0 %v2480, 15
      %v2585 = vpop.permute.xlu0 %2584
      %2586 = vrot.lane.b32.xlu0 %v2486, 15
      %v2587 = vpop.permute.xlu0 %2586
      %2588 = vrot.lane.b32.xlu0 %v2492, 15
      %v2589 = vpop.permute.xlu0 %2588
      %v2590 = vsel %vm675, %v2579, %v2585
      %v2591 = vsel %vm675, %v2581, %v2587
      %v2592 = vsel %vm675, %v2583, %v2589
      %v2593 = vsel %vm675, %v2585, %v2579
      %v2594 = vsel %vm675, %v2587, %v2581
      %v2595 = vsel %vm675, %v2589, %v2583
      %v2596 = vld [vmem:[%s678] ss:$8 sm:$0x3]
      %v2598 = vlaneseq
      %v2599 = vshrl.u32 %v2598, 7
      %v2600 = vsub.s32 0, %v2599
      %v2601 = vrot.slane %v2596, %v2600
      %v2602 = vlaneseq
      %v2603 = vshrl.u32 %v2602, 7
      %v2604 = vsub.s32 1, %v2603
      %v2605 = vrot.slane %v2596, %v2604
      %v2608 = vmul.f32 %v2593, %v2601
      %v2609 = vmul.f32 %v2590, %v2605
      %v2610 = vmul.f32 %v2594, %v2601
      %v2611 = vmul.f32 %v2591, %v2605
      %v2612 = vmul.f32 %v2595, %v2601
      %v2613 = vmul.f32 %v2592, %v2605
      %2614 = vst [vmem:[#allocation4 + $0x60] sm:$0xff] %v2608
      %2615 = vst [vmem:[#allocation4 + $0x68] sm:$0xff] %v2609
      %2616 = vst [vmem:[#allocation4 + $0x70] sm:$0xff] %v2610
      %2617 = vst [vmem:[#allocation4 + $0x78] sm:$0xff] %v2611
      %2618 = vst [vmem:[#allocation4 + $0x80] sm:$0xff] %v2612
      %2619 = vst [vmem:[#allocation4 + $0x88] sm:$0xff] %v2613
      %2620 = vrot.lane.b32.xlu0 %v2478, 1
      %v2621 = vpop.permute.xlu0 %2620
      %2622 = vrot.lane.b32.xlu0 %v2484, 1
      %v2623 = vpop.permute.xlu0 %2622
      %2624 = vrot.lane.b32.xlu0 %v2490, 1
      %v2625 = vpop.permute.xlu0 %2624
      %2626 = vrot.lane.b32.xlu0 %v2480, 1
      %v2627 = vpop.permute.xlu0 %2626
      %2628 = vrot.lane.b32.xlu0 %v2486, 1
      %v2629 = vpop.permute.xlu0 %2628
      %2630 = vrot.lane.b32.xlu0 %v2492, 1
      %v2631 = vpop.permute.xlu0 %2630
      %v2632 = vsel %vm702, %v2621, %v2627
      %v2633 = vsel %vm702, %v2623, %v2629
      %v2634 = vsel %vm702, %v2625, %v2631
      %v2635 = vsel %vm702, %v2627, %v2621
      %v2636 = vsel %vm702, %v2629, %v2623
      %v2637 = vsel %vm702, %v2631, %v2625
      %v2638 = vld [vmem:[%s705] ss:$8 sm:$0x3]
      %v2640 = vlaneseq
      %v2641 = vshrl.u32 %v2640, 7
      %v2642 = vsub.s32 0, %v2641
      %v2643 = vrot.slane %v2638, %v2642
      %v2644 = vlaneseq
      %v2645 = vshrl.u32 %v2644, 7
      %v2646 = vsub.s32 1, %v2645
      %v2647 = vrot.slane %v2638, %v2646
      %v2650 = vmul.f32 %v2635, %v2643
      %v2651 = vmul.f32 %v2632, %v2647
      %v2652 = vmul.f32 %v2636, %v2643
      %v2653 = vmul.f32 %v2633, %v2647
      %v2654 = vmul.f32 %v2637, %v2643
      %v2655 = vmul.f32 %v2634, %v2647
      %2656 = vst [vmem:[#allocation4 + $0x90] sm:$0xff] %v2650
      %2657 = vst [vmem:[#allocation4 + $0x98] sm:$0xff] %v2651
      %2658 = vst [vmem:[#allocation4 + $0xa0] sm:$0xff] %v2652
      %2659 = vst [vmem:[#allocation4 + $0xa8] sm:$0xff] %v2653
      %2660 = vst [vmem:[#allocation4 + $0xb0] sm:$0xff] %v2654
      %2661 = vst [vmem:[#allocation4 + $0xb8] sm:$0xff] %v2655
      %2662 = vst [vmem:[#allocation4 + $0xc0] sm:$0xff] %v2478
      %2663 = vst [vmem:[#allocation4 + $0xc8] sm:$0xff] %v2480
      %2664 = vst [vmem:[#allocation4 + $0xd0] sm:$0xff] %v2484
      %2665 = vst [vmem:[#allocation4 + $0xd8] sm:$0xff] %v2486
      %2666 = vst [vmem:[#allocation4 + $0xe0] sm:$0xff] %v2490
      %2667 = vst [vmem:[#allocation4 + $0xe8] sm:$0xff] %v2492
      %2668 = vrot.lane.b32.xlu0 %v2478, 127
      %v2669 = vpop.permute.xlu0 %2668
      %2670 = vrot.lane.b32.xlu0 %v2484, 127
      %v2671 = vpop.permute.xlu0 %2670
      %2672 = vrot.lane.b32.xlu0 %v2490, 127
      %v2673 = vpop.permute.xlu0 %2672
      %2674 = vrot.lane.b32.xlu0 %v2480, 127
      %v2675 = vpop.permute.xlu0 %2674
      %2676 = vrot.lane.b32.xlu0 %v2486, 127
      %v2677 = vpop.permute.xlu0 %2676
      %2678 = vrot.lane.b32.xlu0 %v2492, 127
      %v2679 = vpop.permute.xlu0 %2678
      %v2680 = vsel %vm729, %v2669, %v2675
      %v2681 = vsel %vm729, %v2671, %v2677
      %v2682 = vsel %vm729, %v2673, %v2679
      %v2683 = vsel %vm729, %v2675, %v2669
      %v2684 = vsel %vm729, %v2677, %v2671
      %v2685 = vsel %vm729, %v2679, %v2673
      %v2686 = vld [vmem:[%s732] ss:$8 sm:$0x3]
      %v2688 = vlaneseq
      %v2689 = vshrl.u32 %v2688, 7
      %v2690 = vsub.s32 0, %v2689
      %v2691 = vrot.slane %v2686, %v2690
      %v2692 = vlaneseq
      %v2693 = vshrl.u32 %v2692, 7
      %v2694 = vsub.s32 1, %v2693
      %v2695 = vrot.slane %v2686, %v2694
      %v2698 = vmul.f32 %v2680, %v2691
      %v2699 = vmul.f32 %v2683, %v2695
      %v2700 = vmul.f32 %v2681, %v2691
      %v2701 = vmul.f32 %v2684, %v2695
      %v2702 = vmul.f32 %v2682, %v2691
      %v2703 = vmul.f32 %v2685, %v2695
      %2704 = vst [vmem:[#allocation4 + $0xf0] sm:$0xff] %v2698
      %2705 = vst [vmem:[#allocation4 + $0xf8] sm:$0xff] %v2699
      %2706 = vst [vmem:[#allocation4 + $0x100] sm:$0xff] %v2700
      %2707 = vst [vmem:[#allocation4 + $0x108] sm:$0xff] %v2701
      %2708 = vst [vmem:[#allocation4 + $0x110] sm:$0xff] %v2702
      %2709 = vst [vmem:[#allocation4 + $0x118] sm:$0xff] %v2703
      %2710 = vrot.lane.b32.xlu0 %v2478, 113
      %v2711 = vpop.permute.xlu0 %2710
      %2712 = vrot.lane.b32.xlu0 %v2484, 113
      %v2713 = vpop.permute.xlu0 %2712
      %2714 = vrot.lane.b32.xlu0 %v2490, 113
      %v2715 = vpop.permute.xlu0 %2714
      %2716 = vrot.lane.b32.xlu0 %v2480, 113
      %v2717 = vpop.permute.xlu0 %2716
      %2718 = vrot.lane.b32.xlu0 %v2486, 113
      %v2719 = vpop.permute.xlu0 %2718
      %2720 = vrot.lane.b32.xlu0 %v2492, 113
      %v2721 = vpop.permute.xlu0 %2720
      %v2722 = vsel %vm756, %v2711, %v2717
      %v2723 = vsel %vm756, %v2713, %v2719
      %v2724 = vsel %vm756, %v2715, %v2721
      %v2725 = vsel %vm756, %v2717, %v2711
      %v2726 = vsel %vm756, %v2719, %v2713
      %v2727 = vsel %vm756, %v2721, %v2715
      %v2728 = vld [vmem:[%s759] ss:$8 sm:$0x3]
      %v2730 = vlaneseq
      %v2731 = vshrl.u32 %v2730, 7
      %v2732 = vsub.s32 0, %v2731
      %v2733 = vrot.slane %v2728, %v2732
      %v2734 = vlaneseq
      %v2735 = vshrl.u32 %v2734, 7
      %v2736 = vsub.s32 1, %v2735
      %v2737 = vrot.slane %v2728, %v2736
      %v2740 = vmul.f32 %v2722, %v2733
      %v2741 = vmul.f32 %v2725, %v2737
      %v2742 = vmul.f32 %v2723, %v2733
      %v2743 = vmul.f32 %v2726, %v2737
      %v2744 = vmul.f32 %v2724, %v2733
      %v2745 = vmul.f32 %v2727, %v2737
      %2746 = vst [vmem:[#allocation4 + $0x120] sm:$0xff] %v2740
      %2747 = vst [vmem:[#allocation4 + $0x128] sm:$0xff] %v2741
      %2748 = vst [vmem:[#allocation4 + $0x130] sm:$0xff] %v2742
      %2749 = vst [vmem:[#allocation4 + $0x138] sm:$0xff] %v2743
      %2750 = vst [vmem:[#allocation4 + $0x140] sm:$0xff] %v2744
      %2751 = vst [vmem:[#allocation4 + $0x148] sm:$0xff] %v2745
      %2752 = vrot.lane.b32.xlu0 %v2478, 112
      %v2753 = vpop.permute.xlu0 %2752
      %2754 = vrot.lane.b32.xlu0 %v2484, 112
      %v2755 = vpop.permute.xlu0 %2754
      %2756 = vrot.lane.b32.xlu0 %v2490, 112
      %v2757 = vpop.permute.xlu0 %2756
      %2758 = vrot.lane.b32.xlu0 %v2480, 112
      %v2759 = vpop.permute.xlu0 %2758
      %2760 = vrot.lane.b32.xlu0 %v2486, 112
      %v2761 = vpop.permute.xlu0 %2760
      %2762 = vrot.lane.b32.xlu0 %v2492, 112
      %v2763 = vpop.permute.xlu0 %2762
      %v2764 = vsel %vm783, %v2753, %v2759
      %v2765 = vsel %vm783, %v2755, %v2761
      %v2766 = vsel %vm783, %v2757, %v2763
      %v2767 = vsel %vm783, %v2759, %v2753
      %v2768 = vsel %vm783, %v2761, %v2755
      %v2769 = vsel %vm783, %v2763, %v2757
      %v2770 = vld [vmem:[%s786] ss:$8 sm:$0x3]
      %v2772 = vlaneseq
      %v2773 = vshrl.u32 %v2772, 7
      %v2774 = vsub.s32 0, %v2773
      %v2775 = vrot.slane %v2770, %v2774
      %v2776 = vlaneseq
      %v2777 = vshrl.u32 %v2776, 7
      %v2778 = vsub.s32 1, %v2777
      %v2779 = vrot.slane %v2770, %v2778
      %v2782 = vmul.f32 %v2764, %v2775
      %v2783 = vmul.f32 %v2767, %v2779
      %v2784 = vmul.f32 %v2765, %v2775
      %v2785 = vmul.f32 %v2768, %v2779
      %v2786 = vmul.f32 %v2766, %v2775
      %v2787 = vmul.f32 %v2769, %v2779
      %2788 = vst [vmem:[#allocation4 + $0x150] sm:$0xff] %v2782
      %2789 = vst [vmem:[#allocation4 + $0x158] sm:$0xff] %v2783
      %2790 = vst [vmem:[#allocation4 + $0x160] sm:$0xff] %v2784
      %2791 = vst [vmem:[#allocation4 + $0x168] sm:$0xff] %v2785
      %2792 = vst [vmem:[#allocation4 + $0x170] sm:$0xff] %v2786
      %2793 = vst [vmem:[#allocation4 + $0x178] sm:$0xff] %v2787
      %2794 = vrot.lane.b32.xlu0 %v2478, 111
      %v2795 = vpop.permute.xlu0 %2794
      %2796 = vrot.lane.b32.xlu0 %v2484, 111
      %v2797 = vpop.permute.xlu0 %2796
      %2798 = vrot.lane.b32.xlu0 %v2490, 111
      %v2799 = vpop.permute.xlu0 %2798
      %2800 = vrot.lane.b32.xlu0 %v2480, 111
      %v2801 = vpop.permute.xlu0 %2800
      %2802 = vrot.lane.b32.xlu0 %v2486, 111
      %v2803 = vpop.permute.xlu0 %2802
      %2804 = vrot.lane.b32.xlu0 %v2492, 111
      %v2805 = vpop.permute.xlu0 %2804
      %v2806 = vsel %vm810, %v2795, %v2801
      %v2807 = vsel %vm810, %v2797, %v2803
      %v2808 = vsel %vm810, %v2799, %v2805
      %v2809 = vsel %vm810, %v2801, %v2795
      %v2810 = vsel %vm810, %v2803, %v2797
      %v2811 = vsel %vm810, %v2805, %v2799
      %v2812 = vld [vmem:[%s813] ss:$8 sm:$0x3]
      %v2814 = vlaneseq
      %v2815 = vshrl.u32 %v2814, 7
      %v2816 = vsub.s32 0, %v2815
      %v2817 = vrot.slane %v2812, %v2816
      %v2818 = vlaneseq
      %v2819 = vshrl.u32 %v2818, 7
      %v2820 = vsub.s32 1, %v2819
      %v2821 = vrot.slane %v2812, %v2820
      %v2824 = vmul.f32 %v2806, %v2817
      %v2825 = vmul.f32 %v2809, %v2821
      %v2826 = vmul.f32 %v2807, %v2817
      %v2827 = vmul.f32 %v2810, %v2821
      %v2828 = vmul.f32 %v2808, %v2817
      %v2829 = vmul.f32 %v2811, %v2821
      %2830 = vst [vmem:[#allocation4 + $0x180] sm:$0xff] %v2824
      %2831 = vst [vmem:[#allocation4 + $0x188] sm:$0xff] %v2825
      %2832 = vst [vmem:[#allocation4 + $0x190] sm:$0xff] %v2826
      %2833 = vst [vmem:[#allocation4 + $0x198] sm:$0xff] %v2827
      %2834 = vst [vmem:[#allocation4 + $0x1a0] sm:$0xff] %v2828
      %2835 = vst [vmem:[#allocation4 + $0x1a8] sm:$0xff] %v2829
      %v2836 = vld [vmem:[%s11] sm:$0xff]
      %v2837 = vld [vmem:[%s11 + $0x8] sm:$0xff]
      %v2838 = vld [vmem:[%s11 + $0x10] sm:$0xff]
      %v2839 = vld [vmem:[%s11 + $0x18] sm:$0xff]
      %v2840 = vld [vmem:[%s11 + $0x20] sm:$0xff]
      %v2841 = vld [vmem:[%s11 + $0x28] sm:$0xff]
      %v2842 = vld [vmem:[#allocation4] sm:$0xff]
      %v2843 = vld [vmem:[#allocation4 + $0x8] sm:$0xff]
      %v2844 = vld [vmem:[#allocation4 + $0x10] sm:$0xff]
      %v2845 = vld [vmem:[#allocation4 + $0x18] sm:$0xff]
      %v2846 = vld [vmem:[#allocation4 + $0x20] sm:$0xff]
      %v2847 = vld [vmem:[#allocation4 + $0x28] sm:$0xff]
      %v2848 = vld [vmem:[#allocation4 + $0x30] sm:$0xff]
      %v2849 = vld [vmem:[#allocation4 + $0x38] sm:$0xff]
      %v2850 = vld [vmem:[#allocation4 + $0x40] sm:$0xff]
      %v2851 = vld [vmem:[#allocation4 + $0x48] sm:$0xff]
      %v2852 = vld [vmem:[#allocation4 + $0x50] sm:$0xff]
      %v2853 = vld [vmem:[#allocation4 + $0x58] sm:$0xff]
      %v2854 = vld [vmem:[#allocation4 + $0x60] sm:$0xff]
      %v2855 = vld [vmem:[#allocation4 + $0x68] sm:$0xff]
      %v2856 = vld [vmem:[#allocation4 + $0x70] sm:$0xff]
      %v2857 = vld [vmem:[#allocation4 + $0x78] sm:$0xff]
      %v2858 = vld [vmem:[#allocation4 + $0x80] sm:$0xff]
      %v2859 = vld [vmem:[#allocation4 + $0x88] sm:$0xff]
      %v2860 = vld [vmem:[#allocation4 + $0x90] sm:$0xff]
      %v2861 = vld [vmem:[#allocation4 + $0x98] sm:$0xff]
      %v2862 = vld [vmem:[#allocation4 + $0xa0] sm:$0xff]
      %v2863 = vld [vmem:[#allocation4 + $0xa8] sm:$0xff]
      %v2864 = vld [vmem:[#allocation4 + $0xb0] sm:$0xff]
      %v2865 = vld [vmem:[#allocation4 + $0xb8] sm:$0xff]
      %v2866 = vld [vmem:[#allocation4 + $0xc0] sm:$0xff]
      %v2867 = vld [vmem:[#allocation4 + $0xc8] sm:$0xff]
      %v2868 = vld [vmem:[#allocation4 + $0xd0] sm:$0xff]
      %v2869 = vld [vmem:[#allocation4 + $0xd8] sm:$0xff]
      %v2870 = vld [vmem:[#allocation4 + $0xe0] sm:$0xff]
      %v2871 = vld [vmem:[#allocation4 + $0xe8] sm:$0xff]
      %v2872 = vld [vmem:[#allocation4 + $0xf0] sm:$0xff]
      %v2873 = vld [vmem:[#allocation4 + $0xf8] sm:$0xff]
      %v2874 = vld [vmem:[#allocation4 + $0x100] sm:$0xff]
      %v2875 = vld [vmem:[#allocation4 + $0x108] sm:$0xff]
      %v2876 = vld [vmem:[#allocation4 + $0x110] sm:$0xff]
      %v2877 = vld [vmem:[#allocation4 + $0x118] sm:$0xff]
      %v2878 = vld [vmem:[#allocation4 + $0x120] sm:$0xff]
      %v2879 = vld [vmem:[#allocation4 + $0x128] sm:$0xff]
      %v2880 = vld [vmem:[#allocation4 + $0x130] sm:$0xff]
      %v2881 = vld [vmem:[#allocation4 + $0x138] sm:$0xff]
      %v2882 = vld [vmem:[#allocation4 + $0x140] sm:$0xff]
      %v2883 = vld [vmem:[#allocation4 + $0x148] sm:$0xff]
      %v2884 = vld [vmem:[#allocation4 + $0x150] sm:$0xff]
      %v2885 = vld [vmem:[#allocation4 + $0x158] sm:$0xff]
      %v2886 = vld [vmem:[#allocation4 + $0x160] sm:$0xff]
      %v2887 = vld [vmem:[#allocation4 + $0x168] sm:$0xff]
      %v2888 = vld [vmem:[#allocation4 + $0x170] sm:$0xff]
      %v2889 = vld [vmem:[#allocation4 + $0x178] sm:$0xff]
      %v2890 = vld [vmem:[#allocation4 + $0x180] sm:$0xff]
      %v2891 = vld [vmem:[#allocation4 + $0x188] sm:$0xff]
      %v2892 = vld [vmem:[#allocation4 + $0x190] sm:$0xff]
      %v2893 = vld [vmem:[#allocation4 + $0x198] sm:$0xff]
      %v2894 = vld [vmem:[#allocation4 + $0x1a0] sm:$0xff]
      %v2895 = vld [vmem:[#allocation4 + $0x1a8] sm:$0xff]
      %v2896 = vld [vmem:[%s12] sm:$0xff]
      %v2897 = vld [vmem:[%s12 + $0x8] sm:$0xff]
      %v2898 = vld [vmem:[%s12 + $0x10] sm:$0xff]
      %2900 = vset.pattern.permute.xlu0 0
      %2901 = vperm.xlu0 %2900, %v2896
      %v2902 = vpop.permute.xlu0 %2901
      %2905 = vset.pattern.permute.xlu0 0
      %2906 = vperm.xlu0 %2905, %v2897
      %v2907 = vpop.permute.xlu0 %2906
      %2910 = vset.pattern.permute.xlu0 0
      %2911 = vperm.xlu0 %2910, %v2898
      %v2912 = vpop.permute.xlu0 %2911
      %vm2914 = vcmask 719872
      %v2916 = vsel %vm2914, %v2837, 0
      %v2919 = vsel %vm2914, %v2839, 0
      %v2922 = vsel %vm2914, %v2841, 0
      %2924 = vmatprep.subr.mxu0 %v2843
      %2925 = vmatpush1.msra.mxu0 %v2842
      %2926 = vmatprep.subr.mxu0 %v2845
      %2927 = vmatpush1.msra.mxu0 %v2844
      %2928 = vmatprep.subr.mxu0 %v2847
      %2929 = vmatpush1.msra.mxu0 %v2846
      %2930 = vmatprep.subr.mxu0 %v2849
      %2931 = vmatpush1.msra.mxu0 %v2848
      %2932 = vmatprep.subr.mxu0 %v2851
      %2933 = vmatpush1.msra.mxu0 %v2850
      %2934 = vmatprep.subr.mxu0 %v2853
      %2935 = vmatpush1.msra.mxu0 %v2852
      %2936 = vmatprep.subr.mxu0 %v2855
      %2937 = vmatpush1.msra.mxu0 %v2854
      %2938 = vmatprep.subr.mxu0 %v2857
      %2939 = vmatpush1.msra.mxu0 %v2856
      %2940 = vmatprep.subr.mxu0 %v2859
      %2941 = vmatpush1.msra.mxu0 %v2858
      %2942 = vmatprep.subr.mxu0 %v2861
      %2943 = vmatpush1.msra.mxu0 %v2860
      %2944 = vmatprep.subr.mxu0 %v2863
      %2945 = vmatpush1.msra.mxu0 %v2862
      %2946 = vmatprep.subr.mxu0 %v2865
      %2947 = vmatpush1.msra.mxu0 %v2864
      %2948 = vmatprep.subr.mxu0 %v2867
      %2949 = vmatpush1.msra.mxu0 %v2866
      %2950 = vmatprep.subr.mxu0 %v2869
      %2951 = vmatpush1.msra.mxu0 %v2868
      %2952 = vmatprep.subr.mxu0 %v2871
      %2953 = vmatpush1.msra.mxu0 %v2870
      %2954 = vmatprep.subr.mxu0 %v2873
      %2955 = vmatpush1.msra.mxu0 %v2872
      %2956 = vmatprep.subr.mxu0 %v2875
      %2957 = vmatpush1.msra.mxu0 %v2874
      %2958 = vmatprep.subr.mxu0 %v2877
      %2959 = vmatpush1.msra.mxu0 %v2876
      %2960 = vmatprep.subr.mxu0 %v2879
      %2961 = vmatpush1.msra.mxu0 %v2878
      %2962 = vmatprep.subr.mxu0 %v2881
      %2963 = vmatpush1.msra.mxu0 %v2880
      %2964 = vmatprep.subr.mxu0 %v2883
      %2965 = vmatpush1.msra.mxu0 %v2882
      %2966 = vmatprep.subr.mxu0 %v2885
      %2967 = vmatpush1.msra.mxu0 %v2884
      %2968 = vmatprep.subr.mxu0 %v2887
      %2969 = vmatpush1.msra.mxu0 %v2886
      %2970 = vmatprep.subr.mxu0 %v2889
      %2971 = vmatpush1.msra.mxu0 %v2888
      %2972 = vmatprep.subr.mxu0 %v2891
      %2973 = vmatpush1.msra.mxu0 %v2890
      %2974 = vmatprep.subr.mxu0 %v2893
      %2975 = vmatpush1.msra.mxu0 %v2892
      %2976 = vmatprep.subr.mxu0 %v2895
      %2977 = vmatpush1.msra.mxu0 %v2894
      %2978 = vmatprep.subr.mxu0 0.0
      %2979 = vmatpush1.msra.mxu0 0.0
      %2980 = vmatprep.subr.mxu0 0.0
      %2981 = vmatpush1.msra.mxu0 0.0
      %2982 = vmatprep.subr.mxu0 0.0
      %2983 = vmatpush1.msra.mxu0 0.0
      %2984 = vmatprep.subr.mxu0 0.0
      %2985 = vmatpush1.msra.mxu0 0.0
      %2986 = vmatprep.subr.mxu0 0.0
      %2987 = vmatpush1.msra.mxu0 0.0
      %2988 = vmatprep.mubr.f32.mxu0 %v2916
      %2989 = vmatmul.mubr.f32.gmra.mrb[0].mxu0 %v2836
      %v2990 = vpop.f32.mrb[0].mxu0
      %v2991 = vadd.f32 %v2902, %v2990
      %v2992 = vpop.f32.mrb[0].mxu0
      %v2993 = vadd.f32 %v2902, %v2992
      %2994 = vmatprep.mubr.f32.mxu0 %v2919
      %2995 = vmatmul.mubr.f32.gmra.mrb[0].mxu0 %v2838
      %v2996 = vpop.f32.mrb[0].mxu0
      %v2997 = vadd.f32 %v2907, %v2996
      %v2998 = vpop.f32.mrb[0].mxu0
      %v2999 = vadd.f32 %v2907, %v2998
      %3000 = vmatprep.mubr.f32.mxu0 %v2922
      %3001 = vmatmul.mubr.f32.gmra.mrb[0].mxu0 %v2840
      %v3002 = vpop.f32.mrb[0].mxu0
      %v3003 = vadd.f32 %v2912, %v3002
      %v3004 = vpop.f32.mrb[0].mxu0
      %v3005 = vadd.f32 %v2912, %v3004
      %3006 = vdwg.mxu0
      %3007 = vst [vmem:[%s440 + $0x80] sm:$0xff] %v2991
      %3008 = vst [vmem:[%s440 + $0x88] sm:$0xff] %v2993
      %3009 = vst [vmem:[%s440 + $0x90] sm:$0xff] %v2997
      %3010 = vst [vmem:[%s440 + $0x98] sm:$0xff] %v2999
      %3011 = vst [vmem:[%s440 + $0xa0] sm:$0xff] %v3003
      %3012 = vst [vmem:[%s440 + $0xa8] sm:$0xff] %v3005
      %p3013 = scmp.lt.s32.totalorder %s24, 1
      %s3014 = scalar_select %p3013, %s24, 1
      %s3015 = smul.addr %s3014, 22
      %s3016 = smul.addr %s3015, 8
      %s3017 = scalar_lea.vmem %s13, %s3016
      // Predicated region
      $region73: #{inception_forward.1} parent=71 // pred_check
        %p3018 = pneg %p320
      $region74: #{inception_forward.1} parent=71 // pred_check_branch
        %3020 = sbr.rel (%p3018) target = $region76
      $region75: #{inception_forward.1} parent=71 // pred_region
        _
      $region76: #{inception_forward.1} parent=71 // pred_fallthru
        _
    $region72: #{inception_forward.1} parent=5 // pred_fallthru
      _
    %p3021 = scmp.le.s32.totalorder 2, %s19
    // Predicated region
    $region77: #{inception_forward.1} parent=5 // pred_check
      %p3022 = pneg %p3021
    $region78: #{inception_forward.1} parent=5 // pred_check_branch
      %3024 = sbr.rel (%p3022) target = $region80
    $region79: #{inception_forward.1} parent=5 // pred_region
      %s3025 = ssub.s32 %s19, 2
      // Predicated region
      $region81: #{inception_forward.1} parent=79 // pred_check
        %p3026 = pneg %p326
      $region82: #{inception_forward.1} parent=79 // pred_check_branch
        %3028 = sbr.rel (%p3026) target = $region84
      $region83: #{inception_forward.1} parent=79 // pred_region
        %p3029 = scmp.lt.s32.totalorder %s25, 1
        %s3030 = scalar_select %p3029, %s25, 1
        %s3031 = smul.addr %s3030, 22
        %s3032 = smul.addr %s3031, 8
        %s3033 = scalar_lea.vmem %s13, %s3032
      $region84: #{inception_forward.1} parent=79 // pred_fallthru
        _
    $region80: #{inception_forward.1} parent=5 // pred_fallthru
      _
  $region6: #{inception_forward.1} parent=0 // loop_footer
    %s23 = sadd.s32 1, %s19
  $region7: #{inception_forward.1} parent=0 // loop_footer_branch
    %18 = sbr.rel target = $region3
  $region8: #{inception_forward.1} parent=0 // loop_exit
    _

</llo_original>
